<compile_context>
chip_gen: v5e
topology: v5e:2x2
jax: 0.10.0
libtpu: 0.0.40
codegen_flags: <defaults>
</compile_context>

<pallas_src>
import functools
import math

import jax
import jax.numpy as jnp
from jax.experimental import pallas as pl
from jax.experimental.pallas import tpu as pltpu


# ---------------------------------------------------------------------------
# Fused forward kernel (channels-first):  all TCN blocks + head + MSE partial
# ---------------------------------------------------------------------------
def _fused_forward_kernel(T, dilations, has_ds, *refs):
    """One grid step: a (C, ROWS) slab of whole sequences (ROWS % T == 0)."""
    it = iter(refs)

    x_ref = next(it)          # (D_in, ROWS)  raindrop (channels-first)
    rh_ref = next(it)         # (1, ROWS)     runoff_history
    ro_ref = next(it)         # (1, ROWS)     runoff target

    layer_refs = []
    for ds in has_ds:
        w1a, w1b, b1 = next(it), next(it), next(it)
        w2a, w2b, b2 = next(it), next(it), next(it)
        wd = next(it) if ds else None
        bd = next(it) if ds else None
        layer_refs.append((w1a, w1b, b1, w2a, w2b, b2, wd, bd))

    w1f_ref, w1r_ref, hb1_ref = next(it), next(it), next(it)
    hw2_ref, hb2_ref = next(it), next(it)
    hw3_ref, hb3_ref = next(it), next(it)

    pred_ref = next(it)       # (1, ROWS)        lane-dense prediction
    loss_ref = next(it)       # (1, 1, 1)        per-tile sum of squared error

    rows = x_ref.shape[-1]

    # Hoisted: one iota + one float mask per unique (dilation, width) pair.
    lane_t = jax.lax.broadcasted_iota(jnp.int32, (1, rows), 1) % T
    mask_f = {}
    for lr, d in zip(layer_refs, dilations):
        for width in (lr[0].shape[1], lr[3].shape[1]):   # conv1 / conv2 input widths
            if (d, width) not in mask_f:
                mask_f[(d, width)] = jnp.broadcast_to(
                    (lane_t >= d).astype(jnp.float32), (width, rows))

    def causal_shift(v, d):
        # lane n <- lane n-d; zeros for t = n % T < d.  The lane roll wraps
        # across sequence boundaries inside the tile; the mask zeroes exactly
        # those lanes, so causality is preserved per sequence.
        if d <= 0:
            return v
        return pltpu.roll(v, shift=d, axis=1) * mask_f[(d, v.shape[0])]

    x = x_ref[...]
    rh = rh_ref[...]

    for (w1a, w1b, b1, w2a, w2b, b2, wd, bd), d in zip(layer_refs, dilations):
        # conv1 (k=2, dilation=d) + chomp + relu   (dropout = eval identity)
        h = (jnp.dot(w1a[...], causal_shift(x, d), preferred_element_type=jnp.float32)
             + jnp.dot(w1b[...], x, preferred_element_type=jnp.float32)
             + b1[...])
        h = jnp.maximum(h, 0.0)
        # conv2 (k=2, dilation=d) + chomp + relu
        h2 = (jnp.dot(w2a[...], causal_shift(h, d), preferred_element_type=jnp.float32)
              + jnp.dot(w2b[...], h, preferred_element_type=jnp.float32)
              + b2[...])
        h2 = jnp.maximum(h2, 0.0)
        # residual path (1x1 downsample conv when channel counts differ)
        if wd is not None:
            res = jnp.dot(wd[...], x, preferred_element_type=jnp.float32) + bd[...]
        else:
            res = x
        x = jnp.maximum(h2 + res, 0.0)

    # Linear head: Linear(hidden+1 -> HH) on concat([feature, runoff_history]),
    # with the first weight split into a feature block + runoff column.
    z = jnp.maximum(
        jnp.dot(w1f_ref[...], x, preferred_element_type=jnp.float32)
        + w1r_ref[...] * rh + hb1_ref[...], 0.0)
    z = jnp.maximum(
        jnp.dot(hw2_ref[...], z, preferred_element_type=jnp.float32) + hb2_ref[...],
        0.0)
    pred = (jnp.dot(hw3_ref[...], z, preferred_element_type=jnp.float32)
            + hb3_ref[...] + rh)                       # residual connection

    pred_ref[...] = pred
    diff = pred - ro_ref[...]
    # Per-tile partial sum of squared error; mean taken in the wrapper.
    loss_ref[0] = jnp.sum(diff * diff, axis=1, keepdims=True)


# ---------------------------------------------------------------------------
# Tile selection: whole sequences, 128-lane aligned, divides B*T evenly
# ---------------------------------------------------------------------------
def _pick_rows_per_tile(BT, T, target_rows=512):
    unit = T * 128 // math.gcd(T, 128)          # lcm(T, 128)
    if BT % unit != 0:
        return BT                               # fallback: one full-width tile
    rows = unit
    while rows * 2 <= min(target_rows, BT) and BT % (rows * 2) == 0:
        rows *= 2
    return rows


# ---------------------------------------------------------------------------
# Wrapper: channels-first layout, sequence-tiled grid, single pallas_call
# ---------------------------------------------------------------------------
def raindrop_encoder_forward(raindrop, runoff_history, runoff,
                             tcn_params, head_params, target_rows=512):
    B, T, D_in = raindrop.shape
    BT = B * T

    # Channels-on-sublane / time-on-lane layout (wrapper-side layout plumbing).
    x_cf = raindrop.reshape(BT, D_in).T          # (D_in, BT)
    rh_cf = runoff_history.reshape(1, BT)        # (1, BT)
    ro_cf = runoff.reshape(1, BT)                # (1, BT)

    rows = _pick_rows_per_tile(BT, T, target_rows)
    num_tiles = BT // rows

    dilations, has_ds, weight_args = [], [], []
    for i, p in enumerate(tcn_params):
        dilations.append(2 ** i)
        has_ds.append("wd" in p)
        weight_args += [p["w1a"], p["w1b"], p["b1"], p["w2a"], p["w2b"], p["b2"]]
        if "wd" in p:
            weight_args += [p["wd"], p["bd"]]
    hp = head_params
    weight_args += [hp["w1f"], hp["w1r"], hp["b1"],
                    hp["w2"], hp["b2"], hp["w3"], hp["b3"]]

    args = [x_cf, rh_cf, ro_cf] + weight_args

    def stream_spec(c):
        return pl.BlockSpec((c, rows), lambda i: (0, i))

    in_specs = [stream_spec(D_in), stream_spec(1), stream_spec(1)]
    # Weights/biases: constant block index -> resident in VMEM across steps.
    in_specs += [pl.BlockSpec(w.shape, lambda i: (0, 0)) for w in weight_args]

    out_specs = (pl.BlockSpec((1, rows), lambda i: (0, i)),        # prediction
                 pl.BlockSpec((1, 1, 1), lambda i: (i, 0, 0)))     # loss partials
    out_shape = (jax.ShapeDtypeStruct((1, BT), jnp.float32),
                 jax.ShapeDtypeStruct((num_tiles, 1, 1), jnp.float32))

    kernel = functools.partial(
        _fused_forward_kernel, T, tuple(dilations), tuple(has_ds))

    # Cost estimate (advisory for the XLA scheduler).
    flops = 0
    for p in tcn_params:
        cout, cin = p["w1a"].shape
        flops += 2 * BT * (2 * cin * cout + 2 * cout * cout)
        if "wd" in p:
            flops += 2 * BT * cin * cout
    hh, hid = hp["w1f"].shape
    flops += 2 * BT * ((hid + 1) * hh + hh * hh + hh)
    bytes_accessed = 4 * (x_cf.size + rh_cf.size + ro_cf.size + BT + num_tiles
                          + sum(int(w.size) for w in weight_args))

    pred_cf, loss_parts = pl.pallas_call(
        kernel,
        out_shape=out_shape,
        grid=(num_tiles,),
        in_specs=in_specs,
        out_specs=out_specs,
        compiler_params=pltpu.CompilerParams(
            dimension_semantics=("parallel",),
            vmem_limit_bytes=32 * 1024 * 1024),
        cost_estimate=pl.CostEstimate(flops=int(flops), transcendentals=0,
                                      bytes_accessed=int(bytes_accessed)),
    )(*args)

    prediction = pred_cf.reshape(B, T)
    loss = jnp.sum(loss_parts) * (1.0 / BT)
    return loss, prediction


# ---------------------------------------------------------------------------
# Pure-JAX reference (for validation)
# ---------------------------------------------------------------------------
def _ref_forward(raindrop, runoff_history, runoff, tcn_params, head_params):
    def shift(a, d):
        B, T, C = a.shape
        return jnp.concatenate(
            [jnp.zeros((B, d, C), a.dtype), a[:, : T - d, :]], axis=1)

    x = raindrop
    for i, p in enumerate(tcn_params):
        d = 2 ** i
        h = jax.nn.relu(shift(x, d) @ p["w1a"].T + x @ p["w1b"].T + p["b1"].T)
        h = jax.nn.relu(shift(h, d) @ p["w2a"].T + h @ p["w2b"].T + p["b2"].T)
        res = x @ p["wd"].T + p["bd"].T if "wd" in p else x
        x = jax.nn.relu(h + res)
    rh = runoff_history[..., None]
    hp = head_params
    z = jax.nn.relu(x @ hp["w1f"].T + rh * hp["w1r"].T + hp["b1"].T)
    z = jax.nn.relu(z @ hp["w2"].T + hp["b2"].T)
    pred = (z @ hp["w3"].T + hp["b3"].T + rh)[..., 0]
    loss = jnp.mean((pred - runoff) ** 2)
    return loss, pred


# ---------------------------------------------------------------------------
# Deterministic parameter construction (shapes from Raindrop_encoder.__init__)
# Conv/linear weights stored torch-style as (Cout, Cin).
# ---------------------------------------------------------------------------
def make_params(key, input_size, hidden, num_layers, head_hidden):
    def nrm(k, shape, scale=0.01):
        return scale * jax.random.normal(k, shape, dtype=jnp.float32)

    keys = iter(jax.random.split(key, 64))
    tcn_params = []
    for i in range(num_layers):
        cin = input_size if i == 0 else hidden
        p = {
            # torch Conv1d weight (Cout, Cin, 2) stored as two (Cout, Cin) taps
            "w1a": nrm(next(keys), (hidden, cin)),   # tap applied to x[t-d]
            "w1b": nrm(next(keys), (hidden, cin)),   # tap applied to x[t]
            "b1": nrm(next(keys), (hidden, 1)),
            "w2a": nrm(next(keys), (hidden, hidden)),
            "w2b": nrm(next(keys), (hidden, hidden)),
            "b2": nrm(next(keys), (hidden, 1)),
        }
        if cin != hidden:                            # 1x1 downsample conv
            p["wd"] = nrm(next(keys), (hidden, cin))
            p["bd"] = nrm(next(keys), (hidden, 1))
        tcn_params.append(p)

    head_params = {
        # Linear(hidden+1 -> head_hidden) split into feature block + runoff col
        "w1f": nrm(next(keys), (head_hidden, hidden), 0.1),
        "w1r": nrm(next(keys), (head_hidden, 1), 0.1),
        "b1": nrm(next(keys), (head_hidden, 1), 0.1),
        "w2": nrm(next(keys), (head_hidden, head_hidden), 0.1),
        "b2": nrm(next(keys), (head_hidden, 1), 0.1),
        "w3": nrm(next(keys), (1, head_hidden), 0.1),
        "b3": nrm(next(keys), (1, 1), 0.1),
    }
    return tcn_params, head_params


if __name__ == "__main__":
    INPUT_SIZE, HIDDEN, NUM_LAYERS = 4, 32, 2        # backbone_num_layers=2
    HEAD_HIDDEN = 36                                 # head_num_layers=3

    key = jax.random.PRNGKey(0)
    k_params, k_data = jax.random.split(key)
    tcn_params, head_params = make_params(k_params, INPUT_SIZE, HIDDEN,
                                          NUM_LAYERS, HEAD_HIDDEN)

    # (B=16, T=64): BT=1024 -> 2 pipelined grid steps of 512 lanes each.
    # (B=2,  T=64): BT=128  -> single full-width tile (fallback path).
    for (B, T) in [(16, 64), (2, 64)]:
        k_in, k_rh, k_ro, k_data = jax.random.split(k_data, 4)
        raindrop = jax.random.normal(k_in, (B, T, INPUT_SIZE), dtype=jnp.float32)
        runoff_history = jax.random.normal(k_rh, (B, T), dtype=jnp.float32)
        runoff = jax.random.normal(k_ro, (B, T), dtype=jnp.float32)

        loss, prediction = raindrop_encoder_forward(
            raindrop, runoff_history, runoff, tcn_params, head_params)
        jax.block_until_ready((loss, prediction))

        ref_loss, ref_pred = _ref_forward(
            raindrop, runoff_history, runoff, tcn_params, head_params)
        assert jnp.allclose(prediction, ref_pred, atol=1e-4, rtol=1e-4), (B, T)
        assert jnp.allclose(loss, ref_loss, atol=1e-4, rtol=1e-4), (B, T)

    print("KERNEL_OK")
</pallas_src>

<mosaic_0001>
module attributes {stable_mosaic.version = 11 : i64} {
  func.func @_fused_forward_kernel(%arg0: i32, %arg1: memref<4x512xf32, #tpu.memory_space<vmem>>, %arg2: memref<1x512xf32, #tpu.memory_space<vmem>>, %arg3: memref<1x512xf32, #tpu.memory_space<vmem>>, %arg4: memref<32x4xf32, #tpu.memory_space<vmem>>, %arg5: memref<32x4xf32, #tpu.memory_space<vmem>>, %arg6: memref<32x1xf32, #tpu.memory_space<vmem>>, %arg7: memref<32x32xf32, #tpu.memory_space<vmem>>, %arg8: memref<32x32xf32, #tpu.memory_space<vmem>>, %arg9: memref<32x1xf32, #tpu.memory_space<vmem>>, %arg10: memref<32x4xf32, #tpu.memory_space<vmem>>, %arg11: memref<32x1xf32, #tpu.memory_space<vmem>>, %arg12: memref<32x32xf32, #tpu.memory_space<vmem>>, %arg13: memref<32x32xf32, #tpu.memory_space<vmem>>, %arg14: memref<32x1xf32, #tpu.memory_space<vmem>>, %arg15: memref<32x32xf32, #tpu.memory_space<vmem>>, %arg16: memref<32x32xf32, #tpu.memory_space<vmem>>, %arg17: memref<32x1xf32, #tpu.memory_space<vmem>>, %arg18: memref<36x32xf32, #tpu.memory_space<vmem>>, %arg19: memref<36x1xf32, #tpu.memory_space<vmem>>, %arg20: memref<36x1xf32, #tpu.memory_space<vmem>>, %arg21: memref<36x36xf32, #tpu.memory_space<vmem>>, %arg22: memref<36x1xf32, #tpu.memory_space<vmem>>, %arg23: memref<1x36xf32, #tpu.memory_space<vmem>>, %arg24: memref<1x1xf32, #tpu.memory_space<vmem>>, %arg25: memref<1x512xf32, #tpu.memory_space<vmem>>, %arg26: memref<1x1x1xf32, #tpu.memory_space<vmem>>) attributes {dimension_semantics = [#tpu.dimension_semantics<parallel>], iteration_bounds = array<i64: 2>, scalar_prefetch = 0 : i64, scratch_operands = 0 : i64, tpu.core_type = #tpu.core_type<tc>, window_params = [{transform_indices = @transform_0, window_bounds = array<i64: 4, 512>}, {transform_indices = @transform_1, window_bounds = array<i64: 1, 512>}, {transform_indices = @transform_2, window_bounds = array<i64: 1, 512>}, {pipeline_mode = #tpu.pipeline_mode<synchronous>, transform_indices = @transform_3, window_bounds = array<i64: 32, 4>}, {pipeline_mode = #tpu.pipeline_mode<synchronous>, transform_indices = @transform_4, window_bounds = array<i64: 32, 4>}, {pipeline_mode = #tpu.pipeline_mode<synchronous>, transform_indices = @transform_5, window_bounds = array<i64: 32, 1>}, {pipeline_mode = #tpu.pipeline_mode<synchronous>, transform_indices = @transform_6, window_bounds = array<i64: 32, 32>}, {pipeline_mode = #tpu.pipeline_mode<synchronous>, transform_indices = @transform_7, window_bounds = array<i64: 32, 32>}, {pipeline_mode = #tpu.pipeline_mode<synchronous>, transform_indices = @transform_8, window_bounds = array<i64: 32, 1>}, {pipeline_mode = #tpu.pipeline_mode<synchronous>, transform_indices = @transform_9, window_bounds = array<i64: 32, 4>}, {pipeline_mode = #tpu.pipeline_mode<synchronous>, transform_indices = @transform_10, window_bounds = array<i64: 32, 1>}, {pipeline_mode = #tpu.pipeline_mode<synchronous>, transform_indices = @transform_11, window_bounds = array<i64: 32, 32>}, {pipeline_mode = #tpu.pipeline_mode<synchronous>, transform_indices = @transform_12, window_bounds = array<i64: 32, 32>}, {pipeline_mode = #tpu.pipeline_mode<synchronous>, transform_indices = @transform_13, window_bounds = array<i64: 32, 1>}, {pipeline_mode = #tpu.pipeline_mode<synchronous>, transform_indices = @transform_14, window_bounds = array<i64: 32, 32>}, {pipeline_mode = #tpu.pipeline_mode<synchronous>, transform_indices = @transform_15, window_bounds = array<i64: 32, 32>}, {pipeline_mode = #tpu.pipeline_mode<synchronous>, transform_indices = @transform_16, window_bounds = array<i64: 32, 1>}, {pipeline_mode = #tpu.pipeline_mode<synchronous>, transform_indices = @transform_17, window_bounds = array<i64: 36, 32>}, {pipeline_mode = #tpu.pipeline_mode<synchronous>, transform_indices = @transform_18, window_bounds = array<i64: 36, 1>}, {pipeline_mode = #tpu.pipeline_mode<synchronous>, transform_indices = @transform_19, window_bounds = array<i64: 36, 1>}, {pipeline_mode = #tpu.pipeline_mode<synchronous>, transform_indices = @transform_20, window_bounds = array<i64: 36, 36>}, {pipeline_mode = #tpu.pipeline_mode<synchronous>, transform_indices = @transform_21, window_bounds = array<i64: 36, 1>}, {pipeline_mode = #tpu.pipeline_mode<synchronous>, transform_indices = @transform_22, window_bounds = array<i64: 1, 36>}, {pipeline_mode = #tpu.pipeline_mode<synchronous>, transform_indices = @transform_23, window_bounds = array<i64: 1, 1>}, {transform_indices = @transform_24, window_bounds = array<i64: 1, 512>}, {transform_indices = @transform_25, window_bounds = array<i64: 1, 1, 1>}]} {
    %0 = tpu.iota {dimensions = array<i32: 1>} : vector<1x512xi32>
    %c64_i32 = arith.constant 64 : i32
    %c0_i32 = arith.constant 0 : i32
    %1 = arith.cmpi eq, %c64_i32, %c0_i32 : i32
    %c1_i32 = arith.constant 1 : i32
    %2 = arith.select %1, %c1_i32, %c64_i32 : i32
    %3 = vector.broadcast %2 : i32 to vector<1x512xi32>
    %4 = arith.remsi %0, %3 : vector<1x512xi32>
    %c0_i32_0 = arith.constant 0 : i32
    %5 = vector.broadcast %c0_i32_0 : i32 to vector<1x512xi32>
    %6 = arith.cmpi ne, %4, %5 : vector<1x512xi32>
    %c0_i32_1 = arith.constant 0 : i32
    %7 = vector.broadcast %c0_i32_1 : i32 to vector<1x512xi32>
    %8 = arith.cmpi slt, %4, %7 : vector<1x512xi32>
    %c0_i32_2 = arith.constant 0 : i32
    %9 = arith.cmpi slt, %2, %c0_i32_2 : i32
    %10 = vector.broadcast %9 : i1 to vector<1x512xi1>
    %11 = vector.broadcast %10 : vector<1x512xi1> to vector<1x512xi1>
    %12 = arith.xori %8, %11 : vector<1x512xi1>
    %13 = arith.andi %12, %6 : vector<1x512xi1>
    %14 = vector.broadcast %2 : i32 to vector<1x512xi32>
    %15 = arith.addi %4, %14 : vector<1x512xi32>
    %16 = arith.select %13, %15, %4 : vector<1x512xi1>, vector<1x512xi32>
    %c1_i32_3 = arith.constant 1 : i32
    %17 = vector.broadcast %c1_i32_3 : i32 to vector<1x512xi32>
    %18 = arith.cmpi sge, %16, %17 : vector<1x512xi32>
    %19 = arith.extui %18 : vector<1x512xi1> to vector<1x512xi32>
    %20 = arith.sitofp %19 : vector<1x512xi32> to vector<1x512xf32>
    %21 = vector.shape_cast %20 : vector<1x512xf32> to vector<1x512xf32>
    %22 = vector.broadcast %21 : vector<1x512xf32> to vector<4x512xf32>
    %c1_i32_4 = arith.constant 1 : i32
    %23 = vector.broadcast %c1_i32_4 : i32 to vector<1x512xi32>
    %24 = arith.cmpi sge, %16, %23 : vector<1x512xi32>
    %25 = arith.extui %24 : vector<1x512xi1> to vector<1x512xi32>
    %26 = arith.sitofp %25 : vector<1x512xi32> to vector<1x512xf32>
    %27 = vector.shape_cast %26 : vector<1x512xf32> to vector<1x512xf32>
    %28 = vector.broadcast %27 : vector<1x512xf32> to vector<32x512xf32>
    %c2_i32 = arith.constant 2 : i32
    %29 = vector.broadcast %c2_i32 : i32 to vector<1x512xi32>
    %30 = arith.cmpi sge, %16, %29 : vector<1x512xi32>
    %31 = arith.extui %30 : vector<1x512xi1> to vector<1x512xi32>
    %32 = arith.sitofp %31 : vector<1x512xi32> to vector<1x512xf32>
    %33 = vector.shape_cast %32 : vector<1x512xf32> to vector<1x512xf32>
    %34 = vector.broadcast %33 : vector<1x512xf32> to vector<32x512xf32>
    %c0 = arith.constant 0 : index
    %c0_5 = arith.constant 0 : index
    %35 = vector.load %arg1[%c0, %c0_5] : memref<4x512xf32, #tpu.memory_space<vmem>>, vector<4x512xf32>
    %c0_6 = arith.constant 0 : index
    %c0_7 = arith.constant 0 : index
    %36 = vector.load %arg2[%c0_6, %c0_7] : memref<1x512xf32, #tpu.memory_space<vmem>>, vector<1x512xf32>
    %c0_8 = arith.constant 0 : index
    %c0_9 = arith.constant 0 : index
    %37 = vector.load %arg4[%c0_8, %c0_9] : memref<32x4xf32, #tpu.memory_space<vmem>>, vector<32x4xf32>
    %c1_i32_10 = arith.constant 1 : i32
    %38 = tpu.dynamic_rotate %35 by %c1_i32_10 dim 1 : vector<4x512xf32>, i32 -> vector<4x512xf32>
    %39 = arith.mulf %38, %22 : vector<4x512xf32>
    %cst = arith.constant dense<0.000000e+00> : vector<32x512xf32>
    %40 = tpu.matmul %37, %39, %cst {dimension_numbers = #tpu.dot_dimension_numbers<[1], [0], [0], [1], [0, 0, 1, 1], [], []>} : vector<32x4xf32>, vector<4x512xf32>, vector<32x512xf32> -> vector<32x512xf32>
    %c0_11 = arith.constant 0 : index
    %c0_12 = arith.constant 0 : index
    %41 = vector.load %arg5[%c0_11, %c0_12] : memref<32x4xf32, #tpu.memory_space<vmem>>, vector<32x4xf32>
    %cst_13 = arith.constant dense<0.000000e+00> : vector<32x512xf32>
    %42 = tpu.matmul %41, %35, %cst_13 {dimension_numbers = #tpu.dot_dimension_numbers<[1], [0], [0], [1], [0, 0, 1, 1], [], []>} : vector<32x4xf32>, vector<4x512xf32>, vector<32x512xf32> -> vector<32x512xf32>
    %43 = arith.addf %40, %42 : vector<32x512xf32>
    %c0_14 = arith.constant 0 : index
    %c0_15 = arith.constant 0 : index
    %44 = vector.load %arg6[%c0_14, %c0_15] : memref<32x1xf32, #tpu.memory_space<vmem>>, vector<32x1xf32>
    %45 = vector.broadcast %44 : vector<32x1xf32> to vector<32x512xf32>
    %46 = arith.addf %43, %45 : vector<32x512xf32>
    %cst_16 = arith.constant 0.000000e+00 : f32
    %47 = vector.broadcast %cst_16 : f32 to vector<32x512xf32>
    %48 = arith.maximumf %46, %47 : vector<32x512xf32>
    %c0_17 = arith.constant 0 : index
    %c0_18 = arith.constant 0 : index
    %49 = vector.load %arg7[%c0_17, %c0_18] : memref<32x32xf32, #tpu.memory_space<vmem>>, vector<32x32xf32>
    %c1_i32_19 = arith.constant 1 : i32
    %50 = tpu.dynamic_rotate %48 by %c1_i32_19 dim 1 : vector<32x512xf32>, i32 -> vector<32x512xf32>
    %51 = arith.mulf %50, %28 : vector<32x512xf32>
    %cst_20 = arith.constant dense<0.000000e+00> : vector<32x512xf32>
    %52 = tpu.matmul %49, %51, %cst_20 {dimension_numbers = #tpu.dot_dimension_numbers<[1], [0], [0], [1], [0, 0, 1, 1], [], []>} : vector<32x32xf32>, vector<32x512xf32>, vector<32x512xf32> -> vector<32x512xf32>
    %c0_21 = arith.constant 0 : index
    %c0_22 = arith.constant 0 : index
    %53 = vector.load %arg8[%c0_21, %c0_22] : memref<32x32xf32, #tpu.memory_space<vmem>>, vector<32x32xf32>
    %cst_23 = arith.constant dense<0.000000e+00> : vector<32x512xf32>
    %54 = tpu.matmul %53, %48, %cst_23 {dimension_numbers = #tpu.dot_dimension_numbers<[1], [0], [0], [1], [0, 0, 1, 1], [], []>} : vector<32x32xf32>, vector<32x512xf32>, vector<32x512xf32> -> vector<32x512xf32>
    %55 = arith.addf %52, %54 : vector<32x512xf32>
    %c0_24 = arith.constant 0 : index
    %c0_25 = arith.constant 0 : index
    %56 = vector.load %arg9[%c0_24, %c0_25] : memref<32x1xf32, #tpu.memory_space<vmem>>, vector<32x1xf32>
    %57 = vector.broadcast %56 : vector<32x1xf32> to vector<32x512xf32>
    %58 = arith.addf %55, %57 : vector<32x512xf32>
    %cst_26 = arith.constant 0.000000e+00 : f32
    %59 = vector.broadcast %cst_26 : f32 to vector<32x512xf32>
    %60 = arith.maximumf %58, %59 : vector<32x512xf32>
    %c0_27 = arith.constant 0 : index
    %c0_28 = arith.constant 0 : index
    %61 = vector.load %arg10[%c0_27, %c0_28] : memref<32x4xf32, #tpu.memory_space<vmem>>, vector<32x4xf32>
    %cst_29 = arith.constant dense<0.000000e+00> : vector<32x512xf32>
    %62 = tpu.matmul %61, %35, %cst_29 {dimension_numbers = #tpu.dot_dimension_numbers<[1], [0], [0], [1], [0, 0, 1, 1], [], []>} : vector<32x4xf32>, vector<4x512xf32>, vector<32x512xf32> -> vector<32x512xf32>
    %c0_30 = arith.constant 0 : index
    %c0_31 = arith.constant 0 : index
    %63 = vector.load %arg11[%c0_30, %c0_31] : memref<32x1xf32, #tpu.memory_space<vmem>>, vector<32x1xf32>
    %64 = vector.broadcast %63 : vector<32x1xf32> to vector<32x512xf32>
    %65 = arith.addf %62, %64 : vector<32x512xf32>
    %66 = arith.addf %60, %65 : vector<32x512xf32>
    %cst_32 = arith.constant 0.000000e+00 : f32
    %67 = vector.broadcast %cst_32 : f32 to vector<32x512xf32>
    %68 = arith.maximumf %66, %67 : vector<32x512xf32>
    %c0_33 = arith.constant 0 : index
    %c0_34 = arith.constant 0 : index
    %69 = vector.load %arg12[%c0_33, %c0_34] : memref<32x32xf32, #tpu.memory_space<vmem>>, vector<32x32xf32>
    %c2_i32_35 = arith.constant 2 : i32
    %70 = tpu.dynamic_rotate %68 by %c2_i32_35 dim 1 : vector<32x512xf32>, i32 -> vector<32x512xf32>
    %71 = arith.mulf %70, %34 : vector<32x512xf32>
    %cst_36 = arith.constant dense<0.000000e+00> : vector<32x512xf32>
    %72 = tpu.matmul %69, %71, %cst_36 {dimension_numbers = #tpu.dot_dimension_numbers<[1], [0], [0], [1], [0, 0, 1, 1], [], []>} : vector<32x32xf32>, vector<32x512xf32>, vector<32x512xf32> -> vector<32x512xf32>
    %c0_37 = arith.constant 0 : index
    %c0_38 = arith.constant 0 : index
    %73 = vector.load %arg13[%c0_37, %c0_38] : memref<32x32xf32, #tpu.memory_space<vmem>>, vector<32x32xf32>
    %cst_39 = arith.constant dense<0.000000e+00> : vector<32x512xf32>
    %74 = tpu.matmul %73, %68, %cst_39 {dimension_numbers = #tpu.dot_dimension_numbers<[1], [0], [0], [1], [0, 0, 1, 1], [], []>} : vector<32x32xf32>, vector<32x512xf32>, vector<32x512xf32> -> vector<32x512xf32>
    %75 = arith.addf %72, %74 : vector<32x512xf32>
    %c0_40 = arith.constant 0 : index
    %c0_41 = arith.constant 0 : index
    %76 = vector.load %arg14[%c0_40, %c0_41] : memref<32x1xf32, #tpu.memory_space<vmem>>, vector<32x1xf32>
    %77 = vector.broadcast %76 : vector<32x1xf32> to vector<32x512xf32>
    %78 = arith.addf %75, %77 : vector<32x512xf32>
    %cst_42 = arith.constant 0.000000e+00 : f32
    %79 = vector.broadcast %cst_42 : f32 to vector<32x512xf32>
    %80 = arith.maximumf %78, %79 : vector<32x512xf32>
    %c0_43 = arith.constant 0 : index
    %c0_44 = arith.constant 0 : index
    %81 = vector.load %arg15[%c0_43, %c0_44] : memref<32x32xf32, #tpu.memory_space<vmem>>, vector<32x32xf32>
    %c2_i32_45 = arith.constant 2 : i32
    %82 = tpu.dynamic_rotate %80 by %c2_i32_45 dim 1 : vector<32x512xf32>, i32 -> vector<32x512xf32>
    %83 = arith.mulf %82, %34 : vector<32x512xf32>
    %cst_46 = arith.constant dense<0.000000e+00> : vector<32x512xf32>
    %84 = tpu.matmul %81, %83, %cst_46 {dimension_numbers = #tpu.dot_dimension_numbers<[1], [0], [0], [1], [0, 0, 1, 1], [], []>} : vector<32x32xf32>, vector<32x512xf32>, vector<32x512xf32> -> vector<32x512xf32>
    %c0_47 = arith.constant 0 : index
    %c0_48 = arith.constant 0 : index
    %85 = vector.load %arg16[%c0_47, %c0_48] : memref<32x32xf32, #tpu.memory_space<vmem>>, vector<32x32xf32>
    %cst_49 = arith.constant dense<0.000000e+00> : vector<32x512xf32>
    %86 = tpu.matmul %85, %80, %cst_49 {dimension_numbers = #tpu.dot_dimension_numbers<[1], [0], [0], [1], [0, 0, 1, 1], [], []>} : vector<32x32xf32>, vector<32x512xf32>, vector<32x512xf32> -> vector<32x512xf32>
    %87 = arith.addf %84, %86 : vector<32x512xf32>
    %c0_50 = arith.constant 0 : index
    %c0_51 = arith.constant 0 : index
    %88 = vector.load %arg17[%c0_50, %c0_51] : memref<32x1xf32, #tpu.memory_space<vmem>>, vector<32x1xf32>
    %89 = vector.broadcast %88 : vector<32x1xf32> to vector<32x512xf32>
    %90 = arith.addf %87, %89 : vector<32x512xf32>
    %cst_52 = arith.constant 0.000000e+00 : f32
    %91 = vector.broadcast %cst_52 : f32 to vector<32x512xf32>
    %92 = arith.maximumf %90, %91 : vector<32x512xf32>
    %93 = arith.addf %92, %68 : vector<32x512xf32>
    %cst_53 = arith.constant 0.000000e+00 : f32
    %94 = vector.broadcast %cst_53 : f32 to vector<32x512xf32>
    %95 = arith.maximumf %93, %94 : vector<32x512xf32>
    %c0_54 = arith.constant 0 : index
    %c0_55 = arith.constant 0 : index
    %96 = vector.load %arg18[%c0_54, %c0_55] : memref<36x32xf32, #tpu.memory_space<vmem>>, vector<36x32xf32>
    %cst_56 = arith.constant dense<0.000000e+00> : vector<36x512xf32>
    %97 = tpu.matmul %96, %95, %cst_56 {dimension_numbers = #tpu.dot_dimension_numbers<[1], [0], [0], [1], [0, 0, 1, 1], [], []>} : vector<36x32xf32>, vector<32x512xf32>, vector<36x512xf32> -> vector<36x512xf32>
    %c0_57 = arith.constant 0 : index
    %c0_58 = arith.constant 0 : index
    %98 = vector.load %arg19[%c0_57, %c0_58] : memref<36x1xf32, #tpu.memory_space<vmem>>, vector<36x1xf32>
    %99 = vector.broadcast %98 : vector<36x1xf32> to vector<36x512xf32>
    %100 = vector.broadcast %36 : vector<1x512xf32> to vector<36x512xf32>
    %101 = arith.mulf %99, %100 : vector<36x512xf32>
    %102 = arith.addf %97, %101 : vector<36x512xf32>
    %c0_59 = arith.constant 0 : index
    %c0_60 = arith.constant 0 : index
    %103 = vector.load %arg20[%c0_59, %c0_60] : memref<36x1xf32, #tpu.memory_space<vmem>>, vector<36x1xf32>
    %104 = vector.broadcast %103 : vector<36x1xf32> to vector<36x512xf32>
    %105 = arith.addf %102, %104 : vector<36x512xf32>
    %cst_61 = arith.constant 0.000000e+00 : f32
    %106 = vector.broadcast %cst_61 : f32 to vector<36x512xf32>
    %107 = arith.maximumf %105, %106 : vector<36x512xf32>
    %c0_62 = arith.constant 0 : index
    %c0_63 = arith.constant 0 : index
    %108 = vector.load %arg21[%c0_62, %c0_63] : memref<36x36xf32, #tpu.memory_space<vmem>>, vector<36x36xf32>
    %cst_64 = arith.constant dense<0.000000e+00> : vector<36x512xf32>
    %109 = tpu.matmul %108, %107, %cst_64 {dimension_numbers = #tpu.dot_dimension_numbers<[1], [0], [0], [1], [0, 0, 1, 1], [], []>} : vector<36x36xf32>, vector<36x512xf32>, vector<36x512xf32> -> vector<36x512xf32>
    %c0_65 = arith.constant 0 : index
    %c0_66 = arith.constant 0 : index
    %110 = vector.load %arg22[%c0_65, %c0_66] : memref<36x1xf32, #tpu.memory_space<vmem>>, vector<36x1xf32>
    %111 = vector.broadcast %110 : vector<36x1xf32> to vector<36x512xf32>
    %112 = arith.addf %109, %111 : vector<36x512xf32>
    %cst_67 = arith.constant 0.000000e+00 : f32
    %113 = vector.broadcast %cst_67 : f32 to vector<36x512xf32>
    %114 = arith.maximumf %112, %113 : vector<36x512xf32>
    %c0_68 = arith.constant 0 : index
    %c0_69 = arith.constant 0 : index
    %115 = vector.load %arg23[%c0_68, %c0_69] : memref<1x36xf32, #tpu.memory_space<vmem>>, vector<1x36xf32>
    %cst_70 = arith.constant dense<0.000000e+00> : vector<1x512xf32>
    %116 = tpu.matmul %115, %114, %cst_70 {dimension_numbers = #tpu.dot_dimension_numbers<[1], [0], [0], [1], [0, 0, 1, 1], [], []>} : vector<1x36xf32>, vector<36x512xf32>, vector<1x512xf32> -> vector<1x512xf32>
    %c0_71 = arith.constant 0 : index
    %c0_72 = arith.constant 0 : index
    %117 = vector.load %arg24[%c0_71, %c0_72] : memref<1x1xf32, #tpu.memory_space<vmem>>, vector<1x1xf32>
    %118 = vector.broadcast %117 : vector<1x1xf32> to vector<1x512xf32>
    %119 = arith.addf %116, %118 : vector<1x512xf32>
    %120 = arith.addf %119, %36 : vector<1x512xf32>
    %c0_73 = arith.constant 0 : index
    %c0_74 = arith.constant 0 : index
    %121 = vector.load %arg25[%c0_73, %c0_74] : memref<1x512xf32, #tpu.memory_space<vmem>>, vector<1x512xf32>
    tpu.vector_store %arg25[%c0_73, %c0_74], %120 {strides = array<i32>} : memref<1x512xf32, #tpu.memory_space<vmem>>, vector<1x512xf32>,
    %c0_75 = arith.constant 0 : index
    %c0_76 = arith.constant 0 : index
    %122 = vector.load %arg3[%c0_75, %c0_76] : memref<1x512xf32, #tpu.memory_space<vmem>>, vector<1x512xf32>
    %123 = arith.subf %120, %122 : vector<1x512xf32>
    %124 = arith.mulf %123, %123 : vector<1x512xf32>
    %cst_77 = arith.constant dense<0.000000e+00> : vector<1xf32>
    %125 = vector.multi_reduction <add>, %124, %cst_77 [1] : vector<1x512xf32> to vector<1xf32>
    %126 = vector.shape_cast %125 : vector<1xf32> to vector<1x1xf32>
    %c0_78 = arith.constant 0 : index
    %c0_79 = arith.constant 0 : index
    %c0_80 = arith.constant 0 : index
    %127 = vector.load %arg26[%c0_78, %c0_79, %c0_80] : memref<1x1x1xf32, #tpu.memory_space<vmem>>, vector<1x1x1xf32>
    %128 = vector.shape_cast %127 : vector<1x1x1xf32> to vector<1x1xf32>
    %129 = vector.shape_cast %126 : vector<1x1xf32> to vector<1x1x1xf32>
    tpu.vector_store %arg26[%c0_78, %c0_79, %c0_80], %129 {strides = array<i32>} : memref<1x1x1xf32, #tpu.memory_space<vmem>>, vector<1x1x1xf32>,
    return
  }
  func.func @transform_0(%arg0: i32) -> (i32, i32) {
    %c0_i32 = arith.constant 0 : i32
    %c0_i32_0 = arith.constant 0 : i32
    return %c0_i32, %arg0 : i32, i32
  }
  func.func @transform_1(%arg0: i32) -> (i32, i32) {
    %c0_i32 = arith.constant 0 : i32
    %c0_i32_0 = arith.constant 0 : i32
    return %c0_i32, %arg0 : i32, i32
  }
  func.func @transform_2(%arg0: i32) -> (i32, i32) {
    %c0_i32 = arith.constant 0 : i32
    %c0_i32_0 = arith.constant 0 : i32
    return %c0_i32, %arg0 : i32, i32
  }
  func.func @transform_3(%arg0: i32) -> (i32, i32) {
    %c0_i32 = arith.constant 0 : i32
    %c0_i32_0 = arith.constant 0 : i32
    %c0_i32_1 = arith.constant 0 : i32
    return %c0_i32, %c0_i32_0 : i32, i32
  }
  func.func @transform_4(%arg0: i32) -> (i32, i32) {
    %c0_i32 = arith.constant 0 : i32
    %c0_i32_0 = arith.constant 0 : i32
    %c0_i32_1 = arith.constant 0 : i32
    return %c0_i32, %c0_i32_0 : i32, i32
  }
  func.func @transform_5(%arg0: i32) -> (i32, i32) {
    %c0_i32 = arith.constant 0 : i32
    %c0_i32_0 = arith.constant 0 : i32
    %c0_i32_1 = arith.constant 0 : i32
    return %c0_i32, %c0_i32_0 : i32, i32
  }
  func.func @transform_6(%arg0: i32) -> (i32, i32) {
    %c0_i32 = arith.constant 0 : i32
    %c0_i32_0 = arith.constant 0 : i32
    %c0_i32_1 = arith.constant 0 : i32
    return %c0_i32, %c0_i32_0 : i32, i32
  }
  func.func @transform_7(%arg0: i32) -> (i32, i32) {
    %c0_i32 = arith.constant 0 : i32
    %c0_i32_0 = arith.constant 0 : i32
    %c0_i32_1 = arith.constant 0 : i32
    return %c0_i32, %c0_i32_0 : i32, i32
  }
  func.func @transform_8(%arg0: i32) -> (i32, i32) {
    %c0_i32 = arith.constant 0 : i32
    %c0_i32_0 = arith.constant 0 : i32
    %c0_i32_1 = arith.constant 0 : i32
    return %c0_i32, %c0_i32_0 : i32, i32
  }
  func.func @transform_9(%arg0: i32) -> (i32, i32) {
    %c0_i32 = arith.constant 0 : i32
    %c0_i32_0 = arith.constant 0 : i32
    %c0_i32_1 = arith.constant 0 : i32
    return %c0_i32, %c0_i32_0 : i32, i32
  }
  func.func @transform_10(%arg0: i32) -> (i32, i32) {
    %c0_i32 = arith.constant 0 : i32
    %c0_i32_0 = arith.constant 0 : i32
    %c0_i32_1 = arith.constant 0 : i32
    return %c0_i32, %c0_i32_0 : i32, i32
  }
  func.func @transform_11(%arg0: i32) -> (i32, i32) {
    %c0_i32 = arith.constant 0 : i32
    %c0_i32_0 = arith.constant 0 : i32
    %c0_i32_1 = arith.constant 0 : i32
    return %c0_i32, %c0_i32_0 : i32, i32
  }
  func.func @transform_12(%arg0: i32) -> (i32, i32) {
    %c0_i32 = arith.constant 0 : i32
    %c0_i32_0 = arith.constant 0 : i32
    %c0_i32_1 = arith.constant 0 : i32
    return %c0_i32, %c0_i32_0 : i32, i32
  }
  func.func @transform_13(%arg0: i32) -> (i32, i32) {
    %c0_i32 = arith.constant 0 : i32
    %c0_i32_0 = arith.constant 0 : i32
    %c0_i32_1 = arith.constant 0 : i32
    return %c0_i32, %c0_i32_0 : i32, i32
  }
  func.func @transform_14(%arg0: i32) -> (i32, i32) {
    %c0_i32 = arith.constant 0 : i32
    %c0_i32_0 = arith.constant 0 : i32
    %c0_i32_1 = arith.constant 0 : i32
    return %c0_i32, %c0_i32_0 : i32, i32
  }
  func.func @transform_15(%arg0: i32) -> (i32, i32) {
    %c0_i32 = arith.constant 0 : i32
    %c0_i32_0 = arith.constant 0 : i32
    %c0_i32_1 = arith.constant 0 : i32
    return %c0_i32, %c0_i32_0 : i32, i32
  }
  func.func @transform_16(%arg0: i32) -> (i32, i32) {
    %c0_i32 = arith.constant 0 : i32
    %c0_i32_0 = arith.constant 0 : i32
    %c0_i32_1 = arith.constant 0 : i32
    return %c0_i32, %c0_i32_0 : i32, i32
  }
  func.func @transform_17(%arg0: i32) -> (i32, i32) {
    %c0_i32 = arith.constant 0 : i32
    %c0_i32_0 = arith.constant 0 : i32
    %c0_i32_1 = arith.constant 0 : i32
    return %c0_i32, %c0_i32_0 : i32, i32
  }
  func.func @transform_18(%arg0: i32) -> (i32, i32) {
    %c0_i32 = arith.constant 0 : i32
    %c0_i32_0 = arith.constant 0 : i32
    %c0_i32_1 = arith.constant 0 : i32
    return %c0_i32, %c0_i32_0 : i32, i32
  }
  func.func @transform_19(%arg0: i32) -> (i32, i32) {
    %c0_i32 = arith.constant 0 : i32
    %c0_i32_0 = arith.constant 0 : i32
    %c0_i32_1 = arith.constant 0 : i32
    return %c0_i32, %c0_i32_0 : i32, i32
  }
  func.func @transform_20(%arg0: i32) -> (i32, i32) {
    %c0_i32 = arith.constant 0 : i32
    %c0_i32_0 = arith.constant 0 : i32
    %c0_i32_1 = arith.constant 0 : i32
    return %c0_i32, %c0_i32_0 : i32, i32
  }
  func.func @transform_21(%arg0: i32) -> (i32, i32) {
    %c0_i32 = arith.constant 0 : i32
    %c0_i32_0 = arith.constant 0 : i32
    %c0_i32_1 = arith.constant 0 : i32
    return %c0_i32, %c0_i32_0 : i32, i32
  }
  func.func @transform_22(%arg0: i32) -> (i32, i32) {
    %c0_i32 = arith.constant 0 : i32
    %c0_i32_0 = arith.constant 0 : i32
    %c0_i32_1 = arith.constant 0 : i32
    return %c0_i32, %c0_i32_0 : i32, i32
  }
  func.func @transform_23(%arg0: i32) -> (i32, i32) {
    %c0_i32 = arith.constant 0 : i32
    %c0_i32_0 = arith.constant 0 : i32
    %c0_i32_1 = arith.constant 0 : i32
    return %c0_i32, %c0_i32_0 : i32, i32
  }
  func.func @transform_24(%arg0: i32) -> (i32, i32) {
    %c0_i32 = arith.constant 0 : i32
    %c0_i32_0 = arith.constant 0 : i32
    return %c0_i32, %arg0 : i32, i32
  }
  func.func @transform_25(%arg0: i32) -> (i32, i32, i32) {
    %c0_i32 = arith.constant 0 : i32
    %c0_i32_0 = arith.constant 0 : i32
    %c0_i32_1 = arith.constant 0 : i32
    return %arg0, %c0_i32, %c0_i32_0 : i32, i32, i32
  }
}

</mosaic_0001>

<llo_original>
// kernel: tpu_custom_call.1
$region0: #{tpu_custom_call.1}
  #allocation0 [shape = 'u32[]', space=smem, size = 0x4, offset = 0x4, fixed_abs, tag = 'smem constant byte address 0x4 - core index']
  #allocation1 [shape = 'u32[72,128]{1,0:T(1,128)}', space=vmem, size = 0x9000, scoped, tag = 'internal scratch']
  #allocation2 [shape = 'f32[1,1]{1,0:T(1,128)S(1)}', space=vmem, size = 0x200, scoped, tag = 'scoped memory for tpu_custom_call.1']
  %s0 = inlined_call_operand.vmem [shape: f32[4,1024], index: 0, kind: input, shape index: {}]
  %s1 = inlined_call_operand.vmem [shape: f32[1,1024], index: 1, kind: input, shape index: {}]
  %s2 = inlined_call_operand.vmem [shape: f32[1,1024], index: 2, kind: input, shape index: {}]
  %s3 = inlined_call_operand.vmem [shape: f32[32,4], index: 3, kind: input, shape index: {}]
  %s4 = inlined_call_operand.vmem [shape: f32[32,4], index: 4, kind: input, shape index: {}]
  %s5 = inlined_call_operand.vmem [shape: f32[32,1], index: 5, kind: input, shape index: {}]
  %s6 = inlined_call_operand.vmem [shape: f32[32,32], index: 6, kind: input, shape index: {}]
  %s7 = inlined_call_operand.vmem [shape: f32[32,32], index: 7, kind: input, shape index: {}]
  %s8 = inlined_call_operand.vmem [shape: f32[32,1], index: 8, kind: input, shape index: {}]
  %s9 = inlined_call_operand.vmem [shape: f32[32,4], index: 9, kind: input, shape index: {}]
  %s10 = inlined_call_operand.vmem [shape: f32[32,1], index: 10, kind: input, shape index: {}]
  %s11 = inlined_call_operand.vmem [shape: f32[32,32], index: 11, kind: input, shape index: {}]
  %s12 = inlined_call_operand.vmem [shape: f32[32,32], index: 12, kind: input, shape index: {}]
  %s13 = inlined_call_operand.vmem [shape: f32[32,1], index: 13, kind: input, shape index: {}]
  %s14 = inlined_call_operand.vmem [shape: f32[32,32], index: 14, kind: input, shape index: {}]
  %s15 = inlined_call_operand.vmem [shape: f32[32,32], index: 15, kind: input, shape index: {}]
  %s16 = inlined_call_operand.vmem [shape: f32[32,1], index: 16, kind: input, shape index: {}]
  %s17 = inlined_call_operand.vmem [shape: f32[36,32], index: 17, kind: input, shape index: {}]
  %s18 = inlined_call_operand.vmem [shape: f32[36,1], index: 18, kind: input, shape index: {}]
  %s19 = inlined_call_operand.vmem [shape: f32[36,1], index: 19, kind: input, shape index: {}]
  %s20 = inlined_call_operand.vmem [shape: f32[36,36], index: 20, kind: input, shape index: {}]
  %s21 = inlined_call_operand.vmem [shape: f32[36,1], index: 21, kind: input, shape index: {}]
  %s22 = inlined_call_operand.vmem [shape: f32[1,36], index: 22, kind: input, shape index: {}]
  %s23 = inlined_call_operand.<no memory space> [shape: f32[1,1], index: 23, kind: input, shape index: {}]
  %s24 = inlined_call_operand.hbm [shape: f32[1,1024], index: 24, kind: output, shape index: {0}]
  %s25 = inlined_call_operand.vmem [shape: f32[2,1,1], index: 25, kind: output, shape index: {1}]
  %26 = xla_tuple %s24, %s25
  %s27 = sld [smem:[#allocation0]]
  $region137: #{tpu_custom_call.1} parent=0
    _
  %s29 = ssub.s32 1, %s27
  %s30 = scalar_select 0, %s29, %s27
  %v31 = vstv %s23
  %32 = vst [vmem:[#allocation2] sm:$0x1] %v31
  $region1: #{tpu_custom_call.1} parent=0
    #allocation3 [shape = 'u8[4096]{0}', space=vmem, size = 0x1000, scoped, tag = 'output window, operand 0']
    #allocation4 [shape = 's32[2]{0}', space=sflag, size = 0x8, scoped, tag = 'scoped memory for tpu_custom_call.1']
    %33 = vsyncpa [#allocation4], 0
    %s34 = scalar_lea.sflag [#allocation4], 1
    %35 = vsyncpa %s34, 0
    loop: start=0, step=1, limit=4
    $region2: #{tpu_custom_call.1} parent=1 // loop_pre_header
      _
    $region3: #{tpu_custom_call.1} parent=1 // loop_header
      %s37 = sphi 0, %s41
      %p38 = scmp.ge.s32.totalorder %s37, 4
      %s47 = sphi 0, %s49
      %s50 = sphi 0, %s47
      %s51 = sphi 0, %s50
      %s67 = sphi 0, %s51
      %s73 = sphi 0, %s75
      %s76 = sphi 0, %s73
      %s77 = sphi 0, %s76
      %s93 = sphi 0, %s77
      %s99 = sphi 0, %s101
      %s102 = sphi 0, %s99
      %s103 = sphi 0, %s102
      %s119 = sphi 0, %s103
      %s123 = sphi 0, %s123
      %s125 = sphi 0, %s123
      %s126 = sphi 0, %s125
      %s140 = sphi 0, %s126
      %s144 = sphi 0, %s144
      %s146 = sphi 0, %s144
      %s147 = sphi 0, %s146
      %s161 = sphi 0, %s147
      %s165 = sphi 0, %s165
      %s167 = sphi 0, %s165
      %s168 = sphi 0, %s167
      %s182 = sphi 0, %s168
      %s186 = sphi 0, %s186
      %s188 = sphi 0, %s186
      %s189 = sphi 0, %s188
      %s203 = sphi 0, %s189
      %s207 = sphi 0, %s207
      %s209 = sphi 0, %s207
      %s210 = sphi 0, %s209
      %s224 = sphi 0, %s210
      %s228 = sphi 0, %s228
      %s230 = sphi 0, %s228
      %s231 = sphi 0, %s230
      %s245 = sphi 0, %s231
      %s249 = sphi 0, %s249
      %s251 = sphi 0, %s249
      %s252 = sphi 0, %s251
      %s266 = sphi 0, %s252
      %s270 = sphi 0, %s270
      %s272 = sphi 0, %s270
      %s273 = sphi 0, %s272
      %s287 = sphi 0, %s273
      %s291 = sphi 0, %s291
      %s293 = sphi 0, %s291
      %s294 = sphi 0, %s293
      %s308 = sphi 0, %s294
      %s312 = sphi 0, %s312
      %s314 = sphi 0, %s312
      %s315 = sphi 0, %s314
      %s329 = sphi 0, %s315
      %s333 = sphi 0, %s333
      %s335 = sphi 0, %s333
      %s336 = sphi 0, %s335
      %s350 = sphi 0, %s336
      %s354 = sphi 0, %s354
      %s356 = sphi 0, %s354
      %s357 = sphi 0, %s356
      %s371 = sphi 0, %s357
      %s375 = sphi 0, %s375
      %s377 = sphi 0, %s375
      %s378 = sphi 0, %s377
      %s392 = sphi 0, %s378
      %s396 = sphi 0, %s396
      %s398 = sphi 0, %s396
      %s399 = sphi 0, %s398
      %s413 = sphi 0, %s399
      %s417 = sphi 0, %s417
      %s419 = sphi 0, %s417
      %s420 = sphi 0, %s419
      %s434 = sphi 0, %s420
      %s438 = sphi 0, %s438
      %s440 = sphi 0, %s438
      %s441 = sphi 0, %s440
      %s455 = sphi 0, %s441
      %s459 = sphi 0, %s459
      %s461 = sphi 0, %s459
      %s462 = sphi 0, %s461
      %s476 = sphi 0, %s462
      %s480 = sphi 0, %s480
      %s482 = sphi 0, %s480
      %s483 = sphi 0, %s482
      %s497 = sphi 0, %s483
      %s501 = sphi 0, %s501
      %s503 = sphi 0, %s501
      %s504 = sphi 0, %s503
      %s518 = sphi 0, %s504
      %s522 = sphi 0, %s522
      %s524 = sphi 0, %s522
      %s525 = sphi 0, %s524
      %s539 = sphi 0, %s525
      %s543 = sphi 0, %s543
      %s545 = sphi 0, %s543
      %s546 = sphi 0, %s545
      %s560 = sphi 0, %s546
      %s566 = sphi 0, %s568
      %s569 = sphi 0, %s566
      %s570 = sphi 0, %s569
      %s586 = sphi 0, %s570
      %s592 = sphi 0, %s594
      %s595 = sphi 0, %s592
      %s596 = sphi 0, %s595
      %s612 = sphi 0, %s596
    $region4: #{tpu_custom_call.1} parent=1 // loop_header_branch
      %40 = sbr.rel (%p38) target = $region8
    $region5: #{tpu_custom_call.1} parent=1 // loop_body
      %s42 = ssub.s32 %s37, 1
      %s43 = ssub.s32 %s37, 2
      %s44 = sadd.s32 %s37, 1
      %s45 = ssub.s32 %s37, %s44
      %p46 = scmp.eq.s32.totalorder %s45, 0
      %s48 = sadd.s32 %s47, 1
      %s49 = scalar_select %p46, %s47, %s48
      %p52 = pneg %p46
      %p53 = scmp.eq.s32.totalorder %s37, 1
      %p54 = por %p52, %p53
      %p55 = scmp.ne.s32.totalorder %s47, %s50
      %p56 = scmp.eq.s32.totalorder %s37, 0
      %p57 = por %p55, %p56
      %p58 = scmp.ne.s32.totalorder %s47, %s50
      %p59 = scmp.eq.s32.totalorder %s42, 1
      %p60 = por %p58, %p59
      %p61 = scmp.ne.s32.totalorder %s50, %s51
      %p62 = scmp.eq.s32.totalorder %s42, 0
      %p63 = por %p61, %p62
      %p64 = scmp.ne.s32.totalorder %s50, %s51
      %p65 = scmp.eq.s32.totalorder %s43, 1
      %p66 = por %p64, %p65
      %p68 = scmp.ne.s32.totalorder %s51, %s67
      %p69 = scmp.eq.s32.totalorder %s43, 0
      %p70 = por %p68, %p69
      %s71 = ssub.s32 %s37, %s44
      %p72 = scmp.eq.s32.totalorder %s71, 0
      %s74 = sadd.s32 %s73, 1
      %s75 = scalar_select %p72, %s73, %s74
      %p78 = pneg %p72
      %p79 = scmp.eq.s32.totalorder %s37, 1
      %p80 = por %p78, %p79
      %p81 = scmp.ne.s32.totalorder %s73, %s76
      %p82 = scmp.eq.s32.totalorder %s37, 0
      %p83 = por %p81, %p82
      %p84 = scmp.ne.s32.totalorder %s73, %s76
      %p85 = scmp.eq.s32.totalorder %s42, 1
      %p86 = por %p84, %p85
      %p87 = scmp.ne.s32.totalorder %s76, %s77
      %p88 = scmp.eq.s32.totalorder %s42, 0
      %p89 = por %p87, %p88
      %p90 = scmp.ne.s32.totalorder %s76, %s77
      %p91 = scmp.eq.s32.totalorder %s43, 1
      %p92 = por %p90, %p91
      %p94 = scmp.ne.s32.totalorder %s77, %s93
      %p95 = scmp.eq.s32.totalorder %s43, 0
      %p96 = por %p94, %p95
      %s97 = ssub.s32 %s37, %s44
      %p98 = scmp.eq.s32.totalorder %s97, 0
      %s100 = sadd.s32 %s99, 1
      %s101 = scalar_select %p98, %s99, %s100
      %p104 = pneg %p98
      %p105 = scmp.eq.s32.totalorder %s37, 1
      %p106 = por %p104, %p105
      %p107 = scmp.ne.s32.totalorder %s99, %s102
      %p108 = scmp.eq.s32.totalorder %s37, 0
      %p109 = por %p107, %p108
      %p110 = scmp.ne.s32.totalorder %s99, %s102
      %p111 = scmp.eq.s32.totalorder %s42, 1
      %p112 = por %p110, %p111
      %p113 = scmp.ne.s32.totalorder %s102, %s103
      %p114 = scmp.eq.s32.totalorder %s42, 0
      %p115 = por %p113, %p114
      %p116 = scmp.ne.s32.totalorder %s102, %s103
      %p117 = scmp.eq.s32.totalorder %s43, 1
      %p118 = por %p116, %p117
      %p120 = scmp.ne.s32.totalorder %s103, %s119
      %p121 = scmp.eq.s32.totalorder %s43, 0
      %p122 = por %p120, %p121
      %s124 = sadd.s32 %s123, 1
      %p127 = scmp.eq.s32.totalorder %s37, 1
      %p128 = scmp.ne.s32.totalorder %s123, %s125
      %p129 = scmp.eq.s32.totalorder %s37, 0
      %p130 = por %p128, %p129
      %p131 = scmp.ne.s32.totalorder %s123, %s125
      %p132 = scmp.eq.s32.totalorder %s42, 1
      %p133 = por %p131, %p132
      %p134 = scmp.ne.s32.totalorder %s125, %s126
      %p135 = scmp.eq.s32.totalorder %s42, 0
      %p136 = por %p134, %p135
      %p137 = scmp.ne.s32.totalorder %s125, %s126
      %p138 = scmp.eq.s32.totalorder %s43, 1
      %p139 = por %p137, %p138
      %p141 = scmp.ne.s32.totalorder %s126, %s140
      %p142 = scmp.eq.s32.totalorder %s43, 0
      %p143 = por %p141, %p142
      %s145 = sadd.s32 %s144, 1
      %p148 = scmp.eq.s32.totalorder %s37, 1
      %p149 = scmp.ne.s32.totalorder %s144, %s146
      %p150 = scmp.eq.s32.totalorder %s37, 0
      %p151 = por %p149, %p150
      %p152 = scmp.ne.s32.totalorder %s144, %s146
      %p153 = scmp.eq.s32.totalorder %s42, 1
      %p154 = por %p152, %p153
      %p155 = scmp.ne.s32.totalorder %s146, %s147
      %p156 = scmp.eq.s32.totalorder %s42, 0
      %p157 = por %p155, %p156
      %p158 = scmp.ne.s32.totalorder %s146, %s147
      %p159 = scmp.eq.s32.totalorder %s43, 1
      %p160 = por %p158, %p159
      %p162 = scmp.ne.s32.totalorder %s147, %s161
      %p163 = scmp.eq.s32.totalorder %s43, 0
      %p164 = por %p162, %p163
      %s166 = sadd.s32 %s165, 1
      %p169 = scmp.eq.s32.totalorder %s37, 1
      %p170 = scmp.ne.s32.totalorder %s165, %s167
      %p171 = scmp.eq.s32.totalorder %s37, 0
      %p172 = por %p170, %p171
      %p173 = scmp.ne.s32.totalorder %s165, %s167
      %p174 = scmp.eq.s32.totalorder %s42, 1
      %p175 = por %p173, %p174
      %p176 = scmp.ne.s32.totalorder %s167, %s168
      %p177 = scmp.eq.s32.totalorder %s42, 0
      %p178 = por %p176, %p177
      %p179 = scmp.ne.s32.totalorder %s167, %s168
      %p180 = scmp.eq.s32.totalorder %s43, 1
      %p181 = por %p179, %p180
      %p183 = scmp.ne.s32.totalorder %s168, %s182
      %p184 = scmp.eq.s32.totalorder %s43, 0
      %p185 = por %p183, %p184
      %s187 = sadd.s32 %s186, 1
      %p190 = scmp.eq.s32.totalorder %s37, 1
      %p191 = scmp.ne.s32.totalorder %s186, %s188
      %p192 = scmp.eq.s32.totalorder %s37, 0
      %p193 = por %p191, %p192
      %p194 = scmp.ne.s32.totalorder %s186, %s188
      %p195 = scmp.eq.s32.totalorder %s42, 1
      %p196 = por %p194, %p195
      %p197 = scmp.ne.s32.totalorder %s188, %s189
      %p198 = scmp.eq.s32.totalorder %s42, 0
      %p199 = por %p197, %p198
      %p200 = scmp.ne.s32.totalorder %s188, %s189
      %p201 = scmp.eq.s32.totalorder %s43, 1
      %p202 = por %p200, %p201
      %p204 = scmp.ne.s32.totalorder %s189, %s203
      %p205 = scmp.eq.s32.totalorder %s43, 0
      %p206 = por %p204, %p205
      %s208 = sadd.s32 %s207, 1
      %p211 = scmp.eq.s32.totalorder %s37, 1
      %p212 = scmp.ne.s32.totalorder %s207, %s209
      %p213 = scmp.eq.s32.totalorder %s37, 0
      %p214 = por %p212, %p213
      %p215 = scmp.ne.s32.totalorder %s207, %s209
      %p216 = scmp.eq.s32.totalorder %s42, 1
      %p217 = por %p215, %p216
      %p218 = scmp.ne.s32.totalorder %s209, %s210
      %p219 = scmp.eq.s32.totalorder %s42, 0
      %p220 = por %p218, %p219
      %p221 = scmp.ne.s32.totalorder %s209, %s210
      %p222 = scmp.eq.s32.totalorder %s43, 1
      %p223 = por %p221, %p222
      %p225 = scmp.ne.s32.totalorder %s210, %s224
      %p226 = scmp.eq.s32.totalorder %s43, 0
      %p227 = por %p225, %p226
      %s229 = sadd.s32 %s228, 1
      %p232 = scmp.eq.s32.totalorder %s37, 1
      %p233 = scmp.ne.s32.totalorder %s228, %s230
      %p234 = scmp.eq.s32.totalorder %s37, 0
      %p235 = por %p233, %p234
      %p236 = scmp.ne.s32.totalorder %s228, %s230
      %p237 = scmp.eq.s32.totalorder %s42, 1
      %p238 = por %p236, %p237
      %p239 = scmp.ne.s32.totalorder %s230, %s231
      %p240 = scmp.eq.s32.totalorder %s42, 0
      %p241 = por %p239, %p240
      %p242 = scmp.ne.s32.totalorder %s230, %s231
      %p243 = scmp.eq.s32.totalorder %s43, 1
      %p244 = por %p242, %p243
      %p246 = scmp.ne.s32.totalorder %s231, %s245
      %p247 = scmp.eq.s32.totalorder %s43, 0
      %p248 = por %p246, %p247
      %s250 = sadd.s32 %s249, 1
      %p253 = scmp.eq.s32.totalorder %s37, 1
      %p254 = scmp.ne.s32.totalorder %s249, %s251
      %p255 = scmp.eq.s32.totalorder %s37, 0
      %p256 = por %p254, %p255
      %p257 = scmp.ne.s32.totalorder %s249, %s251
      %p258 = scmp.eq.s32.totalorder %s42, 1
      %p259 = por %p257, %p258
      %p260 = scmp.ne.s32.totalorder %s251, %s252
      %p261 = scmp.eq.s32.totalorder %s42, 0
      %p262 = por %p260, %p261
      %p263 = scmp.ne.s32.totalorder %s251, %s252
      %p264 = scmp.eq.s32.totalorder %s43, 1
      %p265 = por %p263, %p264
      %p267 = scmp.ne.s32.totalorder %s252, %s266
      %p268 = scmp.eq.s32.totalorder %s43, 0
      %p269 = por %p267, %p268
      %s271 = sadd.s32 %s270, 1
      %p274 = scmp.eq.s32.totalorder %s37, 1
      %p275 = scmp.ne.s32.totalorder %s270, %s272
      %p276 = scmp.eq.s32.totalorder %s37, 0
      %p277 = por %p275, %p276
      %p278 = scmp.ne.s32.totalorder %s270, %s272
      %p279 = scmp.eq.s32.totalorder %s42, 1
      %p280 = por %p278, %p279
      %p281 = scmp.ne.s32.totalorder %s272, %s273
      %p282 = scmp.eq.s32.totalorder %s42, 0
      %p283 = por %p281, %p282
      %p284 = scmp.ne.s32.totalorder %s272, %s273
      %p285 = scmp.eq.s32.totalorder %s43, 1
      %p286 = por %p284, %p285
      %p288 = scmp.ne.s32.totalorder %s273, %s287
      %p289 = scmp.eq.s32.totalorder %s43, 0
      %p290 = por %p288, %p289
      %s292 = sadd.s32 %s291, 1
      %p295 = scmp.eq.s32.totalorder %s37, 1
      %p296 = scmp.ne.s32.totalorder %s291, %s293
      %p297 = scmp.eq.s32.totalorder %s37, 0
      %p298 = por %p296, %p297
      %p299 = scmp.ne.s32.totalorder %s291, %s293
      %p300 = scmp.eq.s32.totalorder %s42, 1
      %p301 = por %p299, %p300
      %p302 = scmp.ne.s32.totalorder %s293, %s294
      %p303 = scmp.eq.s32.totalorder %s42, 0
      %p304 = por %p302, %p303
      %p305 = scmp.ne.s32.totalorder %s293, %s294
      %p306 = scmp.eq.s32.totalorder %s43, 1
      %p307 = por %p305, %p306
      %p309 = scmp.ne.s32.totalorder %s294, %s308
      %p310 = scmp.eq.s32.totalorder %s43, 0
      %p311 = por %p309, %p310
      %s313 = sadd.s32 %s312, 1
      %p316 = scmp.eq.s32.totalorder %s37, 1
      %p317 = scmp.ne.s32.totalorder %s312, %s314
      %p318 = scmp.eq.s32.totalorder %s37, 0
      %p319 = por %p317, %p318
      %p320 = scmp.ne.s32.totalorder %s312, %s314
      %p321 = scmp.eq.s32.totalorder %s42, 1
      %p322 = por %p320, %p321
      %p323 = scmp.ne.s32.totalorder %s314, %s315
      %p324 = scmp.eq.s32.totalorder %s42, 0
      %p325 = por %p323, %p324
      %p326 = scmp.ne.s32.totalorder %s314, %s315
      %p327 = scmp.eq.s32.totalorder %s43, 1
      %p328 = por %p326, %p327
      %p330 = scmp.ne.s32.totalorder %s315, %s329
      %p331 = scmp.eq.s32.totalorder %s43, 0
      %p332 = por %p330, %p331
      %s334 = sadd.s32 %s333, 1
      %p337 = scmp.eq.s32.totalorder %s37, 1
      %p338 = scmp.ne.s32.totalorder %s333, %s335
      %p339 = scmp.eq.s32.totalorder %s37, 0
      %p340 = por %p338, %p339
      %p341 = scmp.ne.s32.totalorder %s333, %s335
      %p342 = scmp.eq.s32.totalorder %s42, 1
      %p343 = por %p341, %p342
      %p344 = scmp.ne.s32.totalorder %s335, %s336
      %p345 = scmp.eq.s32.totalorder %s42, 0
      %p346 = por %p344, %p345
      %p347 = scmp.ne.s32.totalorder %s335, %s336
      %p348 = scmp.eq.s32.totalorder %s43, 1
      %p349 = por %p347, %p348
      %p351 = scmp.ne.s32.totalorder %s336, %s350
      %p352 = scmp.eq.s32.totalorder %s43, 0
      %p353 = por %p351, %p352
      %s355 = sadd.s32 %s354, 1
      %p358 = scmp.eq.s32.totalorder %s37, 1
      %p359 = scmp.ne.s32.totalorder %s354, %s356
      %p360 = scmp.eq.s32.totalorder %s37, 0
      %p361 = por %p359, %p360
      %p362 = scmp.ne.s32.totalorder %s354, %s356
      %p363 = scmp.eq.s32.totalorder %s42, 1
      %p364 = por %p362, %p363
      %p365 = scmp.ne.s32.totalorder %s356, %s357
      %p366 = scmp.eq.s32.totalorder %s42, 0
      %p367 = por %p365, %p366
      %p368 = scmp.ne.s32.totalorder %s356, %s357
      %p369 = scmp.eq.s32.totalorder %s43, 1
      %p370 = por %p368, %p369
      %p372 = scmp.ne.s32.totalorder %s357, %s371
      %p373 = scmp.eq.s32.totalorder %s43, 0
      %p374 = por %p372, %p373
      %s376 = sadd.s32 %s375, 1
      %p379 = scmp.eq.s32.totalorder %s37, 1
      %p380 = scmp.ne.s32.totalorder %s375, %s377
      %p381 = scmp.eq.s32.totalorder %s37, 0
      %p382 = por %p380, %p381
      %p383 = scmp.ne.s32.totalorder %s375, %s377
      %p384 = scmp.eq.s32.totalorder %s42, 1
      %p385 = por %p383, %p384
      %p386 = scmp.ne.s32.totalorder %s377, %s378
      %p387 = scmp.eq.s32.totalorder %s42, 0
      %p388 = por %p386, %p387
      %p389 = scmp.ne.s32.totalorder %s377, %s378
      %p390 = scmp.eq.s32.totalorder %s43, 1
      %p391 = por %p389, %p390
      %p393 = scmp.ne.s32.totalorder %s378, %s392
      %p394 = scmp.eq.s32.totalorder %s43, 0
      %p395 = por %p393, %p394
      %s397 = sadd.s32 %s396, 1
      %p400 = scmp.eq.s32.totalorder %s37, 1
      %p401 = scmp.ne.s32.totalorder %s396, %s398
      %p402 = scmp.eq.s32.totalorder %s37, 0
      %p403 = por %p401, %p402
      %p404 = scmp.ne.s32.totalorder %s396, %s398
      %p405 = scmp.eq.s32.totalorder %s42, 1
      %p406 = por %p404, %p405
      %p407 = scmp.ne.s32.totalorder %s398, %s399
      %p408 = scmp.eq.s32.totalorder %s42, 0
      %p409 = por %p407, %p408
      %p410 = scmp.ne.s32.totalorder %s398, %s399
      %p411 = scmp.eq.s32.totalorder %s43, 1
      %p412 = por %p410, %p411
      %p414 = scmp.ne.s32.totalorder %s399, %s413
      %p415 = scmp.eq.s32.totalorder %s43, 0
      %p416 = por %p414, %p415
      %s418 = sadd.s32 %s417, 1
      %p421 = scmp.eq.s32.totalorder %s37, 1
      %p422 = scmp.ne.s32.totalorder %s417, %s419
      %p423 = scmp.eq.s32.totalorder %s37, 0
      %p424 = por %p422, %p423
      %p425 = scmp.ne.s32.totalorder %s417, %s419
      %p426 = scmp.eq.s32.totalorder %s42, 1
      %p427 = por %p425, %p426
      %p428 = scmp.ne.s32.totalorder %s419, %s420
      %p429 = scmp.eq.s32.totalorder %s42, 0
      %p430 = por %p428, %p429
      %p431 = scmp.ne.s32.totalorder %s419, %s420
      %p432 = scmp.eq.s32.totalorder %s43, 1
      %p433 = por %p431, %p432
      %p435 = scmp.ne.s32.totalorder %s420, %s434
      %p436 = scmp.eq.s32.totalorder %s43, 0
      %p437 = por %p435, %p436
      %s439 = sadd.s32 %s438, 1
      %p442 = scmp.eq.s32.totalorder %s37, 1
      %p443 = scmp.ne.s32.totalorder %s438, %s440
      %p444 = scmp.eq.s32.totalorder %s37, 0
      %p445 = por %p443, %p444
      %p446 = scmp.ne.s32.totalorder %s438, %s440
      %p447 = scmp.eq.s32.totalorder %s42, 1
      %p448 = por %p446, %p447
      %p449 = scmp.ne.s32.totalorder %s440, %s441
      %p450 = scmp.eq.s32.totalorder %s42, 0
      %p451 = por %p449, %p450
      %p452 = scmp.ne.s32.totalorder %s440, %s441
      %p453 = scmp.eq.s32.totalorder %s43, 1
      %p454 = por %p452, %p453
      %p456 = scmp.ne.s32.totalorder %s441, %s455
      %p457 = scmp.eq.s32.totalorder %s43, 0
      %p458 = por %p456, %p457
      %s460 = sadd.s32 %s459, 1
      %p463 = scmp.eq.s32.totalorder %s37, 1
      %p464 = scmp.ne.s32.totalorder %s459, %s461
      %p465 = scmp.eq.s32.totalorder %s37, 0
      %p466 = por %p464, %p465
      %p467 = scmp.ne.s32.totalorder %s459, %s461
      %p468 = scmp.eq.s32.totalorder %s42, 1
      %p469 = por %p467, %p468
      %p470 = scmp.ne.s32.totalorder %s461, %s462
      %p471 = scmp.eq.s32.totalorder %s42, 0
      %p472 = por %p470, %p471
      %p473 = scmp.ne.s32.totalorder %s461, %s462
      %p474 = scmp.eq.s32.totalorder %s43, 1
      %p475 = por %p473, %p474
      %p477 = scmp.ne.s32.totalorder %s462, %s476
      %p478 = scmp.eq.s32.totalorder %s43, 0
      %p479 = por %p477, %p478
      %s481 = sadd.s32 %s480, 1
      %p484 = scmp.eq.s32.totalorder %s37, 1
      %p485 = scmp.ne.s32.totalorder %s480, %s482
      %p486 = scmp.eq.s32.totalorder %s37, 0
      %p487 = por %p485, %p486
      %p488 = scmp.ne.s32.totalorder %s480, %s482
      %p489 = scmp.eq.s32.totalorder %s42, 1
      %p490 = por %p488, %p489
      %p491 = scmp.ne.s32.totalorder %s482, %s483
      %p492 = scmp.eq.s32.totalorder %s42, 0
      %p493 = por %p491, %p492
      %p494 = scmp.ne.s32.totalorder %s482, %s483
      %p495 = scmp.eq.s32.totalorder %s43, 1
      %p496 = por %p494, %p495
      %p498 = scmp.ne.s32.totalorder %s483, %s497
      %p499 = scmp.eq.s32.totalorder %s43, 0
      %p500 = por %p498, %p499
      %s502 = sadd.s32 %s501, 1
      %p505 = scmp.eq.s32.totalorder %s37, 1
      %p506 = scmp.ne.s32.totalorder %s501, %s503
      %p507 = scmp.eq.s32.totalorder %s37, 0
      %p508 = por %p506, %p507
      %p509 = scmp.ne.s32.totalorder %s501, %s503
      %p510 = scmp.eq.s32.totalorder %s42, 1
      %p511 = por %p509, %p510
      %p512 = scmp.ne.s32.totalorder %s503, %s504
      %p513 = scmp.eq.s32.totalorder %s42, 0
      %p514 = por %p512, %p513
      %p515 = scmp.ne.s32.totalorder %s503, %s504
      %p516 = scmp.eq.s32.totalorder %s43, 1
      %p517 = por %p515, %p516
      %p519 = scmp.ne.s32.totalorder %s504, %s518
      %p520 = scmp.eq.s32.totalorder %s43, 0
      %p521 = por %p519, %p520
      %s523 = sadd.s32 %s522, 1
      %p526 = scmp.eq.s32.totalorder %s37, 1
      %p527 = scmp.ne.s32.totalorder %s522, %s524
      %p528 = scmp.eq.s32.totalorder %s37, 0
      %p529 = por %p527, %p528
      %p530 = scmp.ne.s32.totalorder %s522, %s524
      %p531 = scmp.eq.s32.totalorder %s42, 1
      %p532 = por %p530, %p531
      %p533 = scmp.ne.s32.totalorder %s524, %s525
      %p534 = scmp.eq.s32.totalorder %s42, 0
      %p535 = por %p533, %p534
      %p536 = scmp.ne.s32.totalorder %s524, %s525
      %p537 = scmp.eq.s32.totalorder %s43, 1
      %p538 = por %p536, %p537
      %p540 = scmp.ne.s32.totalorder %s525, %s539
      %p541 = scmp.eq.s32.totalorder %s43, 0
      %p542 = por %p540, %p541
      %s544 = sadd.s32 %s543, 1
      %p547 = scmp.eq.s32.totalorder %s37, 1
      %p548 = scmp.ne.s32.totalorder %s543, %s545
      %p549 = scmp.eq.s32.totalorder %s37, 0
      %p550 = por %p548, %p549
      %p551 = scmp.ne.s32.totalorder %s543, %s545
      %p552 = scmp.eq.s32.totalorder %s42, 1
      %p553 = por %p551, %p552
      %p554 = scmp.ne.s32.totalorder %s545, %s546
      %p555 = scmp.eq.s32.totalorder %s42, 0
      %p556 = por %p554, %p555
      %p557 = scmp.ne.s32.totalorder %s545, %s546
      %p558 = scmp.eq.s32.totalorder %s43, 1
      %p559 = por %p557, %p558
      %p561 = scmp.ne.s32.totalorder %s546, %s560
      %p562 = scmp.eq.s32.totalorder %s43, 0
      %p563 = por %p561, %p562
      %s564 = ssub.s32 %s37, %s44
      %p565 = scmp.eq.s32.totalorder %s564, 0
      %s567 = sadd.s32 %s566, 1
      %s568 = scalar_select %p565, %s566, %s567
      %p571 = pneg %p565
      %p572 = scmp.eq.s32.totalorder %s37, 1
      %p573 = por %p571, %p572
      %p574 = scmp.ne.s32.totalorder %s566, %s569
      %p575 = scmp.eq.s32.totalorder %s37, 0
      %p576 = por %p574, %p575
      %p577 = scmp.ne.s32.totalorder %s566, %s569
      %p578 = scmp.eq.s32.totalorder %s42, 1
      %p579 = por %p577, %p578
      %p580 = scmp.ne.s32.totalorder %s569, %s570
      %p581 = scmp.eq.s32.totalorder %s42, 0
      %p582 = por %p580, %p581
      %p583 = scmp.ne.s32.totalorder %s569, %s570
      %p584 = scmp.eq.s32.totalorder %s43, 1
      %p585 = por %p583, %p584
      %p587 = scmp.ne.s32.totalorder %s570, %s586
      %p588 = scmp.eq.s32.totalorder %s43, 0
      %p589 = por %p587, %p588
      %s590 = ssub.s32 %s37, %s44
      %p591 = scmp.eq.s32.totalorder %s590, 0
      %s593 = sadd.s32 %s592, 1
      %s594 = scalar_select %p591, %s592, %s593
      %p597 = pneg %p591
      %p598 = scmp.eq.s32.totalorder %s37, 1
      %p599 = por %p597, %p598
      %p600 = scmp.ne.s32.totalorder %s592, %s595
      %p601 = scmp.eq.s32.totalorder %s37, 0
      %p602 = por %p600, %p601
      %p603 = scmp.ne.s32.totalorder %s592, %s595
      %p604 = scmp.eq.s32.totalorder %s42, 1
      %p605 = por %p603, %p604
      %p606 = scmp.ne.s32.totalorder %s595, %s596
      %p607 = scmp.eq.s32.totalorder %s42, 0
      %p608 = por %p606, %p607
      %p609 = scmp.ne.s32.totalorder %s595, %s596
      %p610 = scmp.eq.s32.totalorder %s43, 1
      %p611 = por %p609, %p610
      %p613 = scmp.ne.s32.totalorder %s596, %s612
      %p614 = scmp.eq.s32.totalorder %s43, 0
      %p615 = por %p613, %p614
      %p616 = scmp.le.s32.totalorder 1, %s37
      %p617 = scmp.lt.s32.totalorder %s37, 3
      %p618 = pnand %p616, %p617
      %p619 = pneg %p618
      // Predicated region
      $region9: #{tpu_custom_call.1} parent=5 // pred_check
        _
      $region10: #{tpu_custom_call.1} parent=5 // pred_check_branch
        %621 = sbr.rel (%p618) target = $region12
      $region11: #{tpu_custom_call.1} parent=5 // pred_region
        %s622 = ssub.s32 %s37, 1
        // Predicated region
        $region13: #{tpu_custom_call.1} parent=11 // pred_check
          %p623 = pneg %p136
        $region14: #{tpu_custom_call.1} parent=11 // pred_check_branch
          %625 = sbr.rel (%p623) target = $region16
        $region15: #{tpu_custom_call.1} parent=11 // pred_region
          _
        $region16: #{tpu_custom_call.1} parent=11 // pred_fallthru
          _
        // Predicated region
        $region17: #{tpu_custom_call.1} parent=11 // pred_check
          %p626 = pneg %p157
        $region18: #{tpu_custom_call.1} parent=11 // pred_check_branch
          %628 = sbr.rel (%p626) target = $region20
        $region19: #{tpu_custom_call.1} parent=11 // pred_region
          _
        $region20: #{tpu_custom_call.1} parent=11 // pred_fallthru
          _
        // Predicated region
        $region21: #{tpu_custom_call.1} parent=11 // pred_check
          %p629 = pneg %p178
        $region22: #{tpu_custom_call.1} parent=11 // pred_check_branch
          %631 = sbr.rel (%p629) target = $region24
        $region23: #{tpu_custom_call.1} parent=11 // pred_region
          _
        $region24: #{tpu_custom_call.1} parent=11 // pred_fallthru
          _
        // Predicated region
        $region25: #{tpu_custom_call.1} parent=11 // pred_check
          %p632 = pneg %p199
        $region26: #{tpu_custom_call.1} parent=11 // pred_check_branch
          %634 = sbr.rel (%p632) target = $region28
        $region27: #{tpu_custom_call.1} parent=11 // pred_region
          _
        $region28: #{tpu_custom_call.1} parent=11 // pred_fallthru
          _
        // Predicated region
        $region29: #{tpu_custom_call.1} parent=11 // pred_check
          %p635 = pneg %p220
        $region30: #{tpu_custom_call.1} parent=11 // pred_check_branch
          %637 = sbr.rel (%p635) target = $region32
        $region31: #{tpu_custom_call.1} parent=11 // pred_region
          _
        $region32: #{tpu_custom_call.1} parent=11 // pred_fallthru
          _
        // Predicated region
        $region33: #{tpu_custom_call.1} parent=11 // pred_check
          %p638 = pneg %p241
        $region34: #{tpu_custom_call.1} parent=11 // pred_check_branch
          %640 = sbr.rel (%p638) target = $region36
        $region35: #{tpu_custom_call.1} parent=11 // pred_region
          _
        $region36: #{tpu_custom_call.1} parent=11 // pred_fallthru
          _
        // Predicated region
        $region37: #{tpu_custom_call.1} parent=11 // pred_check
          %p641 = pneg %p262
        $region38: #{tpu_custom_call.1} parent=11 // pred_check_branch
          %643 = sbr.rel (%p641) target = $region40
        $region39: #{tpu_custom_call.1} parent=11 // pred_region
          _
        $region40: #{tpu_custom_call.1} parent=11 // pred_fallthru
          _
        // Predicated region
        $region41: #{tpu_custom_call.1} parent=11 // pred_check
          %p644 = pneg %p283
        $region42: #{tpu_custom_call.1} parent=11 // pred_check_branch
          %646 = sbr.rel (%p644) target = $region44
        $region43: #{tpu_custom_call.1} parent=11 // pred_region
          _
        $region44: #{tpu_custom_call.1} parent=11 // pred_fallthru
          _
        // Predicated region
        $region45: #{tpu_custom_call.1} parent=11 // pred_check
          %p647 = pneg %p304
        $region46: #{tpu_custom_call.1} parent=11 // pred_check_branch
          %649 = sbr.rel (%p647) target = $region48
        $region47: #{tpu_custom_call.1} parent=11 // pred_region
          _
        $region48: #{tpu_custom_call.1} parent=11 // pred_fallthru
          _
        // Predicated region
        $region49: #{tpu_custom_call.1} parent=11 // pred_check
          %p650 = pneg %p325
        $region50: #{tpu_custom_call.1} parent=11 // pred_check_branch
          %652 = sbr.rel (%p650) target = $region52
        $region51: #{tpu_custom_call.1} parent=11 // pred_region
          _
        $region52: #{tpu_custom_call.1} parent=11 // pred_fallthru
          _
        // Predicated region
        $region53: #{tpu_custom_call.1} parent=11 // pred_check
          %p653 = pneg %p346
        $region54: #{tpu_custom_call.1} parent=11 // pred_check_branch
          %655 = sbr.rel (%p653) target = $region56
        $region55: #{tpu_custom_call.1} parent=11 // pred_region
          _
        $region56: #{tpu_custom_call.1} parent=11 // pred_fallthru
          _
        // Predicated region
        $region57: #{tpu_custom_call.1} parent=11 // pred_check
          %p656 = pneg %p367
        $region58: #{tpu_custom_call.1} parent=11 // pred_check_branch
          %658 = sbr.rel (%p656) target = $region60
        $region59: #{tpu_custom_call.1} parent=11 // pred_region
          _
        $region60: #{tpu_custom_call.1} parent=11 // pred_fallthru
          _
        // Predicated region
        $region61: #{tpu_custom_call.1} parent=11 // pred_check
          %p659 = pneg %p388
        $region62: #{tpu_custom_call.1} parent=11 // pred_check_branch
          %661 = sbr.rel (%p659) target = $region64
        $region63: #{tpu_custom_call.1} parent=11 // pred_region
          _
        $region64: #{tpu_custom_call.1} parent=11 // pred_fallthru
          _
        // Predicated region
        $region65: #{tpu_custom_call.1} parent=11 // pred_check
          %p662 = pneg %p409
        $region66: #{tpu_custom_call.1} parent=11 // pred_check_branch
          %664 = sbr.rel (%p662) target = $region68
        $region67: #{tpu_custom_call.1} parent=11 // pred_region
          _
        $region68: #{tpu_custom_call.1} parent=11 // pred_fallthru
          _
        // Predicated region
        $region69: #{tpu_custom_call.1} parent=11 // pred_check
          %p665 = pneg %p430
        $region70: #{tpu_custom_call.1} parent=11 // pred_check_branch
          %667 = sbr.rel (%p665) target = $region72
        $region71: #{tpu_custom_call.1} parent=11 // pred_region
          _
        $region72: #{tpu_custom_call.1} parent=11 // pred_fallthru
          _
        // Predicated region
        $region73: #{tpu_custom_call.1} parent=11 // pred_check
          %p668 = pneg %p451
        $region74: #{tpu_custom_call.1} parent=11 // pred_check_branch
          %670 = sbr.rel (%p668) target = $region76
        $region75: #{tpu_custom_call.1} parent=11 // pred_region
          _
        $region76: #{tpu_custom_call.1} parent=11 // pred_fallthru
          _
        // Predicated region
        $region77: #{tpu_custom_call.1} parent=11 // pred_check
          %p671 = pneg %p472
        $region78: #{tpu_custom_call.1} parent=11 // pred_check_branch
          %673 = sbr.rel (%p671) target = $region80
        $region79: #{tpu_custom_call.1} parent=11 // pred_region
          _
        $region80: #{tpu_custom_call.1} parent=11 // pred_fallthru
          _
        // Predicated region
        $region81: #{tpu_custom_call.1} parent=11 // pred_check
          %p674 = pneg %p493
        $region82: #{tpu_custom_call.1} parent=11 // pred_check_branch
          %676 = sbr.rel (%p674) target = $region84
        $region83: #{tpu_custom_call.1} parent=11 // pred_region
          _
        $region84: #{tpu_custom_call.1} parent=11 // pred_fallthru
          _
        // Predicated region
        $region85: #{tpu_custom_call.1} parent=11 // pred_check
          %p677 = pneg %p514
        $region86: #{tpu_custom_call.1} parent=11 // pred_check_branch
          %679 = sbr.rel (%p677) target = $region88
        $region87: #{tpu_custom_call.1} parent=11 // pred_region
          _
        $region88: #{tpu_custom_call.1} parent=11 // pred_fallthru
          _
        // Predicated region
        $region89: #{tpu_custom_call.1} parent=11 // pred_check
          %p680 = pneg %p535
        $region90: #{tpu_custom_call.1} parent=11 // pred_check_branch
          %682 = sbr.rel (%p680) target = $region92
        $region91: #{tpu_custom_call.1} parent=11 // pred_region
          _
        $region92: #{tpu_custom_call.1} parent=11 // pred_fallthru
          _
        // Predicated region
        $region93: #{tpu_custom_call.1} parent=11 // pred_check
          %p683 = pneg %p556
        $region94: #{tpu_custom_call.1} parent=11 // pred_check_branch
          %685 = sbr.rel (%p683) target = $region96
        $region95: #{tpu_custom_call.1} parent=11 // pred_region
          _
        $region96: #{tpu_custom_call.1} parent=11 // pred_fallthru
          _
      $region12: #{tpu_custom_call.1} parent=5 // pred_fallthru
        _
      %p686 = scmp.lt.s32.totalorder %s37, 2
      // Predicated region
      $region97: #{tpu_custom_call.1} parent=5 // pred_check
        %p687 = pneg %p686
      $region98: #{tpu_custom_call.1} parent=5 // pred_check_branch
        %689 = sbr.rel (%p687) target = $region100
      $region99: #{tpu_custom_call.1} parent=5 // pred_region
        // Predicated region
        $region101: #{tpu_custom_call.1} parent=99 // pred_check
          %p690 = pneg %p57
        $region102: #{tpu_custom_call.1} parent=99 // pred_check_branch
          %692 = sbr.rel (%p690) target = $region104
        $region103: #{tpu_custom_call.1} parent=99 // pred_region
          %s693 = smul.u32 4, %s37
          %p694 = scmp.lt.s32.totalorder %s693, 7
          %s695 = scalar_select %p694, %s693, 7
          %s696 = smul.addr %s695, 4
          %s697 = scalar_lea.vmem %s0, %s696
          %s698 = smul.u32 4, %s37
        $region104: #{tpu_custom_call.1} parent=99 // pred_fallthru
          _
        // Predicated region
        $region105: #{tpu_custom_call.1} parent=99 // pred_check
          %p699 = pneg %p83
        $region106: #{tpu_custom_call.1} parent=99 // pred_check_branch
          %701 = sbr.rel (%p699) target = $region108
        $region107: #{tpu_custom_call.1} parent=99 // pred_region
          %s702 = smul.u32 4, %s37
          %p703 = scmp.lt.s32.totalorder %s702, 7
          %s704 = scalar_select %p703, %s702, 7
          %s705 = scalar_lea.vmem %s1, %s704
          %s706 = smul.u32 4, %s37
        $region108: #{tpu_custom_call.1} parent=99 // pred_fallthru
          _
        // Predicated region
        $region109: #{tpu_custom_call.1} parent=99 // pred_check
          %p707 = pneg %p109
        $region110: #{tpu_custom_call.1} parent=99 // pred_check_branch
          %709 = sbr.rel (%p707) target = $region112
        $region111: #{tpu_custom_call.1} parent=99 // pred_region
          %s710 = smul.u32 4, %s37
          %p711 = scmp.lt.s32.totalorder %s710, 7
          %s712 = scalar_select %p711, %s710, 7
          %s713 = scalar_lea.vmem %s2, %s712
          %s714 = smul.u32 4, %s37
        $region112: #{tpu_custom_call.1} parent=99 // pred_fallthru
          _
      $region100: #{tpu_custom_call.1} parent=5 // pred_fallthru
        _
      %p715 = scmp.le.s32.totalorder 1, %s37
      %p716 = scmp.lt.s32.totalorder %s37, 3
      %p717 = pnand %p715, %p716
      %p718 = pneg %p717
      // Predicated region
      $region113: #{tpu_custom_call.1} parent=5 // pred_check
        _
      $region114: #{tpu_custom_call.1} parent=5 // pred_check_branch
        %720 = sbr.rel (%p717) target = $region116
      $region115: #{tpu_custom_call.1} parent=5 // pred_region
        %s721 = ssub.s32 %s37, 1
        %s722 = smul.u32 4, %s42
        %p723 = scmp.lt.s32.totalorder %s722, 7
        %s724 = scalar_select %p723, %s722, 7
        %s725 = smul.addr %s724, 4
        %s726 = scalar_lea.vmem %s0, %s725
        %p727 = pneg %p63
        %p728 = pneg %p60
        %s729 = smul.u32 4, %s42
        %p730 = scmp.lt.s32.totalorder %s729, 7
        %s731 = scalar_select %p730, %s729, 7
        %s732 = scalar_lea.vmem %s1, %s731
        %p733 = pneg %p89
        %p734 = pneg %p86
        %s735 = smul.u32 4, %s42
        %p736 = scmp.lt.s32.totalorder %s735, 7
        %s737 = scalar_select %p736, %s735, 7
        %s738 = scalar_lea.vmem %s2, %s737
        %p739 = pneg %p115
        %p740 = pneg %p112
        %p741 = pneg %p136
        %p742 = pneg %p133
        %p743 = pneg %p157
        %p744 = pneg %p154
        %p745 = pneg %p178
        %p746 = pneg %p175
        %p747 = pneg %p199
        %p748 = pneg %p196
        %p749 = pneg %p220
        %p750 = pneg %p217
        %p751 = pneg %p241
        %p752 = pneg %p238
        %p753 = pneg %p262
        %p754 = pneg %p259
        %p755 = pneg %p283
        %p756 = pneg %p280
        %p757 = pneg %p304
        %p758 = pneg %p301
        %p759 = pneg %p325
        %p760 = pneg %p322
        %p761 = pneg %p346
        %p762 = pneg %p343
        %p763 = pneg %p367
        %p764 = pneg %p364
        %p765 = pneg %p388
        %p766 = pneg %p385
        %p767 = pneg %p409
        %p768 = pneg %p406
        %p769 = pneg %p430
        %p770 = pneg %p427
        %p771 = pneg %p451
        %p772 = pneg %p448
        %p773 = pneg %p472
        %p774 = pneg %p469
        %p775 = pneg %p493
        %p776 = pneg %p490
        %p777 = pneg %p514
        %p778 = pneg %p511
        %p779 = pneg %p535
        %p780 = pneg %p532
        %p781 = pneg %p556
        %p782 = pneg %p553
        %p783 = pneg %p582
        %p784 = pneg %p579
        %s785 = sand.u32 %s569, 1
        %s786 = scalar_lea.sflag [#allocation4], %s785
        %s787 = sand.u32 %s569, 1
        %s788 = smul.addr %s787, 4
        %s789 = scalar_lea.vmem [#allocation3], %s788
        %p790 = pneg %p608
        %p791 = pneg %p605
        %p792 = scmp.lt.s32.totalorder %s42, 1
        %s793 = scalar_select %p792, %s42, 1
        %s794 = scalar_lea.vmem %s25, %s793
        %s795 = smul.u32 4, %s42
        %p796 = scmp.lt.s32.totalorder %s795, 7
        %s797 = scalar_select %p796, %s795, 7
        %s798 = smul.addr %s797, 4
        %s799 = scalar_lea.vmem %s0, %s798
        %s800 = smul.u32 4, %s42
        %s801 = smul.u32 4, %s42
        %p802 = scmp.lt.s32.totalorder %s801, 7
        %s803 = scalar_select %p802, %s801, 7
        %s804 = scalar_lea.vmem %s1, %s803
        %s805 = smul.u32 4, %s42
        %s806 = smul.u32 4, %s42
        %p807 = scmp.lt.s32.totalorder %s806, 7
        %s808 = scalar_select %p807, %s806, 7
        %s809 = scalar_lea.vmem %s2, %s808
        %s810 = smul.u32 4, %s42
        %s811 = smul.u32 4, %s42
        %p812 = scmp.lt.s32.totalorder %s42, 1
        %s813 = scalar_select %p812, %s42, 1
        %s814 = scalar_lea.vmem %s25, %s813
        %v815 = vlaneseq
        %v816 = vand.u32 %v815, 127
        %v817 = vadd.s32 %v816, 128
        %v818 = vadd.s32 %v816, 256
        %v819 = vadd.s32 %v816, 384
        %vm820 = vcmp.lt.s32.totalorder %v816, 0
        %v821 = vsub.s32 0, %v816
        %v822 = vsel %vm820, %v821, %v816
        %v823 = vshrl.u32 %v822, 6
        %v824 = vand.u32 %v822, 63
        %v825 = vsub.s32 0, %v824
        %v826 = vsel %vm820, %v825, %v824
        %vm827 = vcmp.lt.s32.totalorder %v817, 0
        %v828 = vsub.s32 0, %v817
        %v829 = vsel %vm827, %v828, %v817
        %v830 = vshrl.u32 %v829, 6
        %v831 = vand.u32 %v829, 63
        %v832 = vsub.s32 0, %v831
        %v833 = vsel %vm827, %v832, %v831
        %vm834 = vcmp.lt.s32.totalorder %v818, 0
        %v835 = vsub.s32 0, %v818
        %v836 = vsel %vm834, %v835, %v818
        %v837 = vshrl.u32 %v836, 6
        %v838 = vand.u32 %v836, 63
        %v839 = vsub.s32 0, %v838
        %v840 = vsel %vm834, %v839, %v838
        %vm841 = vcmp.lt.s32.totalorder %v819, 0
        %v842 = vsub.s32 0, %v819
        %v843 = vsel %vm841, %v842, %v819
        %v844 = vshrl.u32 %v843, 6
        %v845 = vand.u32 %v843, 63
        %v846 = vsub.s32 0, %v845
        %v847 = vsel %vm841, %v846, %v845
        %vm848 = vcmp.ne.s32.totalorder %v826, 0
        %vm849 = vcmp.ne.s32.totalorder %v833, 0
        %vm850 = vcmp.ne.s32.totalorder %v840, 0
        %vm851 = vcmp.ne.s32.totalorder %v847, 0
        %vm852 = vcmp.lt.s32.totalorder %v826, 0
        %vm853 = vcmp.lt.s32.totalorder %v833, 0
        %vm854 = vcmp.lt.s32.totalorder %v840, 0
        %vm855 = vcmp.lt.s32.totalorder %v847, 0
        %vm856 = vmand %vm852, %vm848
        %vm857 = vmand %vm853, %vm849
        %vm858 = vmand %vm854, %vm850
        %vm859 = vmand %vm855, %vm851
        %v860 = vadd.s32 %v826, 64
        %v861 = vadd.s32 %v833, 64
        %v862 = vadd.s32 %v840, 64
        %v863 = vadd.s32 %v847, 64
        %v864 = vsel %vm856, %v860, %v826
        %v865 = vsel %vm857, %v861, %v833
        %v866 = vsel %vm858, %v862, %v840
        %v867 = vsel %vm859, %v863, %v847
        %vm868 = vcmp.ge.s32.totalorder %v864, 1
        %vm869 = vcmp.ge.s32.totalorder %v865, 1
        %vm870 = vcmp.ge.s32.totalorder %v866, 1
        %vm871 = vcmp.ge.s32.totalorder %v867, 1
        %v872 = vsel %vm868, 1, 0
        %v873 = vsel %vm869, 1, 0
        %v874 = vsel %vm870, 1, 0
        %v875 = vsel %vm871, 1, 0
        %v876 = vcvt.s32.f32 %v872
        %v877 = vcvt.s32.f32 %v873
        %v878 = vcvt.s32.f32 %v874
        %v879 = vcvt.s32.f32 %v875
        %vm880 = vcmp.ge.s32.totalorder %v864, 2
        %vm881 = vcmp.ge.s32.totalorder %v865, 2
        %vm882 = vcmp.ge.s32.totalorder %v866, 2
        %vm883 = vcmp.ge.s32.totalorder %v867, 2
        %v884 = vsel %vm880, 1, 0
        %v885 = vsel %vm881, 1, 0
        %v886 = vsel %vm882, 1, 0
        %v887 = vsel %vm883, 1, 0
        %v888 = vcvt.s32.f32 %v884
        %v889 = vcvt.s32.f32 %v885
        %v890 = vcvt.s32.f32 %v886
        %v891 = vcvt.s32.f32 %v887
        %v892 = vld [vmem:[%s799] sm:$0xff]
        %v893 = vld [vmem:[%s799 + $0x8] sm:$0xff]
        %v894 = vld [vmem:[%s804] sm:$0xf]
        %v895 = vld [vmem:[%s3] sm:$0xff]
        %v896 = vld [vmem:[%s3 + $0x8] sm:$0xff]
        %v897 = vld [vmem:[%s3 + $0x10] sm:$0xff]
        %v898 = vld [vmem:[%s3 + $0x18] sm:$0xff]
        %901 = vst [vmem:[#allocation1] ss:$2 sm:$0xff] %v892
        %s902 = scalar_lea.vmem [#allocation1], 16
        %903 = vst [vmem:[%s902] ss:$2 sm:$0xff] %v893
        %v904 = vld.sshfl [vmem:[#allocation1] sm:$0xff pattern:$0x75316420]
        %v905 = vld.sshfl [vmem:[#allocation1 + $0x8] sm:$0xff pattern:$0x75316420]
        %v906 = vld.sshfl [vmem:[#allocation1 + $0x10] sm:$0xff pattern:$0x75316420]
        %v907 = vld.sshfl [vmem:[#allocation1 + $0x18] sm:$0xff pattern:$0x75316420]
        %912 = vrot.lane.b32.xlu0 %v904, 1
        %v913 = vpop.permute.xlu0 %912
        %914 = vrot.lane.b32.xlu0 %v905, 1
        %v915 = vpop.permute.xlu0 %914
        %916 = vrot.lane.b32.xlu0 %v906, 1
        %v917 = vpop.permute.xlu0 %916
        %918 = vrot.lane.b32.xlu0 %v907, 1
        %v919 = vpop.permute.xlu0 %918
        %vm920 = vcmp.lt.s32.totalorder %v816, 1
        %v921 = vsel %vm920, %v917, %v919
        %v922 = vsel %vm920, %v915, %v917
        %v923 = vsel %vm920, %v913, %v915
        %v924 = vsel %vm920, %v919, %v913
        %v925 = vmul.f32 %v924, %v876
        %v926 = vmul.f32 %v923, %v877
        %v927 = vmul.f32 %v922, %v878
        %v928 = vmul.f32 %v921, %v879
        %v929 = vld [vmem:[%s4] sm:$0xff]
        %v930 = vld [vmem:[%s4 + $0x8] sm:$0xff]
        %v931 = vld [vmem:[%s4 + $0x10] sm:$0xff]
        %v932 = vld [vmem:[%s4 + $0x18] sm:$0xff]
        %933 = vst [vmem:[#allocation1] ss:$2 sm:$0xff] %v892
        %s934 = scalar_lea.vmem [#allocation1], 16
        %935 = vst [vmem:[%s934] ss:$2 sm:$0xff] %v893
        %v936 = vld.sshfl [vmem:[#allocation1] sm:$0xff pattern:$0x75316420]
        %v937 = vld.sshfl [vmem:[#allocation1 + $0x8] sm:$0xff pattern:$0x75316420]
        %v938 = vld.sshfl [vmem:[#allocation1 + $0x10] sm:$0xff pattern:$0x75316420]
        %v939 = vld.sshfl [vmem:[#allocation1 + $0x18] sm:$0xff pattern:$0x75316420]
        %vm940 = vcmask 31744
        %v942 = vsel %vm940, %v929, 0
        %v945 = vsel %vm940, %v930, 0
        %v948 = vsel %vm940, %v931, 0
        %v951 = vsel %vm940, %v932, 0
        %vm953 = vcmask 1043456
        %v954 = vsel %vm953, %v936, 0
        %v956 = vsel %vm953, %v937, 0
        %v958 = vsel %vm953, %v938, 0
        %v960 = vsel %vm953, %v939, 0
        %962 = vmatpush.msra.mxu0 0.0
        %963 = vmatpush.msra.mxu0 0.0
        %964 = vmatpush.msra.mxu0 0.0
        %965 = vmatpush.msra.mxu0 0.0
        %966 = vmatpush.msra.mxu0 0.0
        %967 = vmatpush.msra.mxu0 0.0
        %968 = vmatpush.msra.mxu0 0.0
        %969 = vmatpush.msra.mxu0 0.0
        %970 = vmatpush.msra.mxu0 0.0
        %971 = vmatpush.msra.mxu0 0.0
        %972 = vmatpush.msra.mxu0 0.0
        %973 = vmatpush.msra.mxu0 0.0
        %974 = vmatpush.msra.mxu0 0.0
        %975 = vmatpush.msra.mxu0 0.0
        %976 = vmatpush.msra.mxu0 0.0
        %977 = vmatpush.msra.mxu0 %v954
        %978 = vmatmul.f32.gmra.mxu0 %v942
        %v979 = vpop.f32.mrf.mxu0
        %v980 = vadd.f32 0.0, %v979
        %981 = vmatmul.f32.gmra.mxu0 %v945
        %v982 = vpop.f32.mrf.mxu0
        %v983 = vadd.f32 0.0, %v982
        %984 = vmatmul.f32.gmra.mxu0 %v948
        %v985 = vpop.f32.mrf.mxu0
        %v986 = vadd.f32 0.0, %v985
        %987 = vmatmul.f32.gmra.mxu0 %v951
        %v988 = vpop.f32.mrf.mxu0
        %v989 = vadd.f32 0.0, %v988
        %990 = vdwg.mxu0
        %991 = vmatpush.msra.mxu0 0.0
        %992 = vmatpush.msra.mxu0 0.0
        %993 = vmatpush.msra.mxu0 0.0
        %994 = vmatpush.msra.mxu0 0.0
        %995 = vmatpush.msra.mxu0 0.0
        %996 = vmatpush.msra.mxu0 0.0
        %997 = vmatpush.msra.mxu0 0.0
        %998 = vmatpush.msra.mxu0 0.0
        %999 = vmatpush.msra.mxu0 0.0
        %1000 = vmatpush.msra.mxu0 0.0
        %1001 = vmatpush.msra.mxu0 0.0
        %1002 = vmatpush.msra.mxu0 0.0
        %1003 = vmatpush.msra.mxu0 0.0
        %1004 = vmatpush.msra.mxu0 0.0
        %1005 = vmatpush.msra.mxu0 0.0
        %1006 = vmatpush.msra.mxu0 %v956
        %1007 = vmatmul.f32.gmra.mxu0 %v942
        %v1008 = vpop.f32.mrf.mxu0
        %v1009 = vadd.f32 0.0, %v1008
        %1010 = vmatmul.f32.gmra.mxu0 %v945
        %v1011 = vpop.f32.mrf.mxu0
        %v1012 = vadd.f32 0.0, %v1011
        %1013 = vmatmul.f32.gmra.mxu0 %v948
        %v1014 = vpop.f32.mrf.mxu0
        %v1015 = vadd.f32 0.0, %v1014
        %1016 = vmatmul.f32.gmra.mxu0 %v951
        %v1017 = vpop.f32.mrf.mxu0
        %v1018 = vadd.f32 0.0, %v1017
        %1019 = vdwg.mxu0
        %1020 = vmatpush.msra.mxu0 0.0
        %1021 = vmatpush.msra.mxu0 0.0
        %1022 = vmatpush.msra.mxu0 0.0
        %1023 = vmatpush.msra.mxu0 0.0
        %1024 = vmatpush.msra.mxu0 0.0
        %1025 = vmatpush.msra.mxu0 0.0
        %1026 = vmatpush.msra.mxu0 0.0
        %1027 = vmatpush.msra.mxu0 0.0
        %1028 = vmatpush.msra.mxu0 0.0
        %1029 = vmatpush.msra.mxu0 0.0
        %1030 = vmatpush.msra.mxu0 0.0
        %1031 = vmatpush.msra.mxu0 0.0
        %1032 = vmatpush.msra.mxu0 0.0
        %1033 = vmatpush.msra.mxu0 0.0
        %1034 = vmatpush.msra.mxu0 0.0
        %1035 = vmatpush.msra.mxu0 %v958
        %1036 = vmatmul.f32.gmra.mxu0 %v942
        %v1037 = vpop.f32.mrf.mxu0
        %v1038 = vadd.f32 0.0, %v1037
        %1039 = vmatmul.f32.gmra.mxu0 %v945
        %v1040 = vpop.f32.mrf.mxu0
        %v1041 = vadd.f32 0.0, %v1040
        %1042 = vmatmul.f32.gmra.mxu0 %v948
        %v1043 = vpop.f32.mrf.mxu0
        %v1044 = vadd.f32 0.0, %v1043
        %1045 = vmatmul.f32.gmra.mxu0 %v951
        %v1046 = vpop.f32.mrf.mxu0
        %v1047 = vadd.f32 0.0, %v1046
        %1048 = vdwg.mxu0
        %1049 = vmatpush.msra.mxu0 0.0
        %1050 = vmatpush.msra.mxu0 0.0
        %1051 = vmatpush.msra.mxu0 0.0
        %1052 = vmatpush.msra.mxu0 0.0
        %1053 = vmatpush.msra.mxu0 0.0
        %1054 = vmatpush.msra.mxu0 0.0
        %1055 = vmatpush.msra.mxu0 0.0
        %1056 = vmatpush.msra.mxu0 0.0
        %1057 = vmatpush.msra.mxu0 0.0
        %1058 = vmatpush.msra.mxu0 0.0
        %1059 = vmatpush.msra.mxu0 0.0
        %1060 = vmatpush.msra.mxu0 0.0
        %1061 = vmatpush.msra.mxu0 0.0
        %1062 = vmatpush.msra.mxu0 0.0
        %1063 = vmatpush.msra.mxu0 0.0
        %1064 = vmatpush.msra.mxu0 %v960
        %1065 = vmatmul.f32.gmra.mxu0 %v942
        %v1066 = vpop.f32.mrf.mxu0
        %v1067 = vadd.f32 0.0, %v1066
        %1068 = vmatmul.f32.gmra.mxu0 %v945
        %v1069 = vpop.f32.mrf.mxu0
        %v1070 = vadd.f32 0.0, %v1069
        %1071 = vmatmul.f32.gmra.mxu0 %v948
        %v1072 = vpop.f32.mrf.mxu0
        %v1073 = vadd.f32 0.0, %v1072
        %1074 = vmatmul.f32.gmra.mxu0 %v951
        %v1075 = vpop.f32.mrf.mxu0
        %v1076 = vadd.f32 0.0, %v1075
        %1077 = vdwg.mxu0
        %v1079 = vsel %vm940, %v895, 0
        %v1082 = vsel %vm940, %v896, 0
        %v1085 = vsel %vm940, %v897, 0
        %v1088 = vsel %vm940, %v898, 0
        %v1091 = vsel %vm953, %v925, 0
        %v1094 = vsel %vm953, %v926, 0
        %v1097 = vsel %vm953, %v927, 0
        %v1100 = vsel %vm953, %v928, 0
        %1102 = vmatpush.msra.mxu0 0.0
        %1103 = vmatpush.msra.mxu0 0.0
        %1104 = vmatpush.msra.mxu0 0.0
        %1105 = vmatpush.msra.mxu0 0.0
        %1106 = vmatpush.msra.mxu0 0.0
        %1107 = vmatpush.msra.mxu0 0.0
        %1108 = vmatpush.msra.mxu0 0.0
        %1109 = vmatpush.msra.mxu0 0.0
        %1110 = vmatpush.msra.mxu0 0.0
        %1111 = vmatpush.msra.mxu0 0.0
        %1112 = vmatpush.msra.mxu0 0.0
        %1113 = vmatpush.msra.mxu0 0.0
        %1114 = vmatpush.msra.mxu0 0.0
        %1115 = vmatpush.msra.mxu0 0.0
        %1116 = vmatpush.msra.mxu0 0.0
        %1117 = vmatpush.msra.mxu0 %v1091
        %1118 = vmatmul.f32.gmra.mxu0 %v1079
        %v1119 = vpop.f32.mrf.mxu0
        %v1120 = vadd.f32 %v980, %v1119
        %1121 = vmatmul.f32.gmra.mxu0 %v1082
        %v1122 = vpop.f32.mrf.mxu0
        %v1123 = vadd.f32 %v983, %v1122
        %1124 = vmatmul.f32.gmra.mxu0 %v1085
        %v1125 = vpop.f32.mrf.mxu0
        %v1126 = vadd.f32 %v986, %v1125
        %1127 = vmatmul.f32.gmra.mxu0 %v1088
        %v1128 = vpop.f32.mrf.mxu0
        %v1129 = vadd.f32 %v989, %v1128
        %1130 = vdwg.mxu0
        %1131 = vmatpush.msra.mxu0 0.0
        %1132 = vmatpush.msra.mxu0 0.0
        %1133 = vmatpush.msra.mxu0 0.0
        %1134 = vmatpush.msra.mxu0 0.0
        %1135 = vmatpush.msra.mxu0 0.0
        %1136 = vmatpush.msra.mxu0 0.0
        %1137 = vmatpush.msra.mxu0 0.0
        %1138 = vmatpush.msra.mxu0 0.0
        %1139 = vmatpush.msra.mxu0 0.0
        %1140 = vmatpush.msra.mxu0 0.0
        %1141 = vmatpush.msra.mxu0 0.0
        %1142 = vmatpush.msra.mxu0 0.0
        %1143 = vmatpush.msra.mxu0 0.0
        %1144 = vmatpush.msra.mxu0 0.0
        %1145 = vmatpush.msra.mxu0 0.0
        %1146 = vmatpush.msra.mxu0 %v1094
        %1147 = vmatmul.f32.gmra.mxu0 %v1079
        %v1148 = vpop.f32.mrf.mxu0
        %v1149 = vadd.f32 %v1009, %v1148
        %1150 = vmatmul.f32.gmra.mxu0 %v1082
        %v1151 = vpop.f32.mrf.mxu0
        %v1152 = vadd.f32 %v1012, %v1151
        %1153 = vmatmul.f32.gmra.mxu0 %v1085
        %v1154 = vpop.f32.mrf.mxu0
        %v1155 = vadd.f32 %v1015, %v1154
        %1156 = vmatmul.f32.gmra.mxu0 %v1088
        %v1157 = vpop.f32.mrf.mxu0
        %v1158 = vadd.f32 %v1018, %v1157
        %1159 = vdwg.mxu0
        %1160 = vmatpush.msra.mxu0 0.0
        %1161 = vmatpush.msra.mxu0 0.0
        %1162 = vmatpush.msra.mxu0 0.0
        %1163 = vmatpush.msra.mxu0 0.0
        %1164 = vmatpush.msra.mxu0 0.0
        %1165 = vmatpush.msra.mxu0 0.0
        %1166 = vmatpush.msra.mxu0 0.0
        %1167 = vmatpush.msra.mxu0 0.0
        %1168 = vmatpush.msra.mxu0 0.0
        %1169 = vmatpush.msra.mxu0 0.0
        %1170 = vmatpush.msra.mxu0 0.0
        %1171 = vmatpush.msra.mxu0 0.0
        %1172 = vmatpush.msra.mxu0 0.0
        %1173 = vmatpush.msra.mxu0 0.0
        %1174 = vmatpush.msra.mxu0 0.0
        %1175 = vmatpush.msra.mxu0 %v1097
        %1176 = vmatmul.f32.gmra.mxu0 %v1079
        %v1177 = vpop.f32.mrf.mxu0
        %v1178 = vadd.f32 %v1038, %v1177
        %1179 = vmatmul.f32.gmra.mxu0 %v1082
        %v1180 = vpop.f32.mrf.mxu0
        %v1181 = vadd.f32 %v1041, %v1180
        %1182 = vmatmul.f32.gmra.mxu0 %v1085
        %v1183 = vpop.f32.mrf.mxu0
        %v1184 = vadd.f32 %v1044, %v1183
        %1185 = vmatmul.f32.gmra.mxu0 %v1088
        %v1186 = vpop.f32.mrf.mxu0
        %v1187 = vadd.f32 %v1047, %v1186
        %1188 = vdwg.mxu0
        %1189 = vmatpush.msra.mxu0 0.0
        %1190 = vmatpush.msra.mxu0 0.0
        %1191 = vmatpush.msra.mxu0 0.0
        %1192 = vmatpush.msra.mxu0 0.0
        %1193 = vmatpush.msra.mxu0 0.0
        %1194 = vmatpush.msra.mxu0 0.0
        %1195 = vmatpush.msra.mxu0 0.0
        %1196 = vmatpush.msra.mxu0 0.0
        %1197 = vmatpush.msra.mxu0 0.0
        %1198 = vmatpush.msra.mxu0 0.0
        %1199 = vmatpush.msra.mxu0 0.0
        %1200 = vmatpush.msra.mxu0 0.0
        %1201 = vmatpush.msra.mxu0 0.0
        %1202 = vmatpush.msra.mxu0 0.0
        %1203 = vmatpush.msra.mxu0 0.0
        %1204 = vmatpush.msra.mxu0 %v1100
        %1205 = vmatmul.f32.gmra.mxu0 %v1079
        %v1206 = vpop.f32.mrf.mxu0
        %v1207 = vadd.f32 %v1067, %v1206
        %1208 = vmatmul.f32.gmra.mxu0 %v1082
        %v1209 = vpop.f32.mrf.mxu0
        %v1210 = vadd.f32 %v1070, %v1209
        %1211 = vmatmul.f32.gmra.mxu0 %v1085
        %v1212 = vpop.f32.mrf.mxu0
        %v1213 = vadd.f32 %v1073, %v1212
        %1214 = vmatmul.f32.gmra.mxu0 %v1088
        %v1215 = vpop.f32.mrf.mxu0
        %v1216 = vadd.f32 %v1076, %v1215
        %1217 = vdwg.mxu0
        %v1218 = vld [vmem:[%s5] sm:$0xff]
        %v1219 = vld [vmem:[%s5 + $0x8] sm:$0xff]
        %v1220 = vld [vmem:[%s5 + $0x10] sm:$0xff]
        %v1221 = vld [vmem:[%s5 + $0x18] sm:$0xff]
        %1223 = vset.pattern.permute.xlu0 0
        %1224 = vperm.xlu0 %1223, %v1218
        %v1225 = vpop.permute.xlu0 %1224
        %1228 = vset.pattern.permute.xlu0 0
        %1229 = vperm.xlu0 %1228, %v1219
        %v1230 = vpop.permute.xlu0 %1229
        %1233 = vset.pattern.permute.xlu0 0
        %1234 = vperm.xlu0 %1233, %v1220
        %v1235 = vpop.permute.xlu0 %1234
        %1238 = vset.pattern.permute.xlu0 0
        %1239 = vperm.xlu0 %1238, %v1221
        %v1240 = vpop.permute.xlu0 %1239
        %v1242 = vadd.f32 %v1120, %v1225
        %v1243 = vadd.f32 %v1149, %v1225
        %v1244 = vadd.f32 %v1178, %v1225
        %v1245 = vadd.f32 %v1207, %v1225
        %v1246 = vadd.f32 %v1123, %v1230
        %v1247 = vadd.f32 %v1152, %v1230
        %v1248 = vadd.f32 %v1181, %v1230
        %v1249 = vadd.f32 %v1210, %v1230
        %v1250 = vadd.f32 %v1126, %v1235
        %v1251 = vadd.f32 %v1155, %v1235
        %v1252 = vadd.f32 %v1184, %v1235
        %v1253 = vadd.f32 %v1213, %v1235
        %v1254 = vadd.f32 %v1129, %v1240
        %v1255 = vadd.f32 %v1158, %v1240
        %v1256 = vadd.f32 %v1187, %v1240
        %v1257 = vadd.f32 %v1216, %v1240
        %v1258 = vmax.f32 %v1242, 0.0
        %v1259 = vmax.f32 %v1243, 0.0
        %v1260 = vmax.f32 %v1244, 0.0
        %v1261 = vmax.f32 %v1245, 0.0
        %v1262 = vmax.f32 %v1246, 0.0
        %v1263 = vmax.f32 %v1247, 0.0
        %v1264 = vmax.f32 %v1248, 0.0
        %v1265 = vmax.f32 %v1249, 0.0
        %v1266 = vmax.f32 %v1250, 0.0
        %v1267 = vmax.f32 %v1251, 0.0
        %v1268 = vmax.f32 %v1252, 0.0
        %v1269 = vmax.f32 %v1253, 0.0
        %v1270 = vmax.f32 %v1254, 0.0
        %v1271 = vmax.f32 %v1255, 0.0
        %v1272 = vmax.f32 %v1256, 0.0
        %v1273 = vmax.f32 %v1257, 0.0
        %v1274 = vld [vmem:[%s6] sm:$0xff]
        %v1275 = vld [vmem:[%s6 + $0x8] sm:$0xff]
        %v1276 = vld [vmem:[%s6 + $0x10] sm:$0xff]
        %v1277 = vld [vmem:[%s6 + $0x18] sm:$0xff]
        %1278 = vrot.lane.b32.xlu0 %v1258, 1
        %v1279 = vpop.permute.xlu0 %1278
        %1280 = vrot.lane.b32.xlu0 %v1262, 1
        %v1281 = vpop.permute.xlu0 %1280
        %1282 = vrot.lane.b32.xlu0 %v1266, 1
        %v1283 = vpop.permute.xlu0 %1282
        %1284 = vrot.lane.b32.xlu0 %v1270, 1
        %v1285 = vpop.permute.xlu0 %1284
        %1286 = vrot.lane.b32.xlu0 %v1259, 1
        %v1287 = vpop.permute.xlu0 %1286
        %1288 = vrot.lane.b32.xlu0 %v1263, 1
        %v1289 = vpop.permute.xlu0 %1288
        %1290 = vrot.lane.b32.xlu0 %v1267, 1
        %v1291 = vpop.permute.xlu0 %1290
        %1292 = vrot.lane.b32.xlu0 %v1271, 1
        %v1293 = vpop.permute.xlu0 %1292
        %1294 = vrot.lane.b32.xlu0 %v1260, 1
        %v1295 = vpop.permute.xlu0 %1294
        %1296 = vrot.lane.b32.xlu0 %v1264, 1
        %v1297 = vpop.permute.xlu0 %1296
        %1298 = vrot.lane.b32.xlu0 %v1268, 1
        %v1299 = vpop.permute.xlu0 %1298
        %1300 = vrot.lane.b32.xlu0 %v1272, 1
        %v1301 = vpop.permute.xlu0 %1300
        %1302 = vrot.lane.b32.xlu0 %v1261, 1
        %v1303 = vpop.permute.xlu0 %1302
        %1304 = vrot.lane.b32.xlu0 %v1265, 1
        %v1305 = vpop.permute.xlu0 %1304
        %1306 = vrot.lane.b32.xlu0 %v1269, 1
        %v1307 = vpop.permute.xlu0 %1306
        %1308 = vrot.lane.b32.xlu0 %v1273, 1
        %v1309 = vpop.permute.xlu0 %1308
        %v1310 = vsel %vm920, %v1295, %v1303
        %v1311 = vsel %vm920, %v1297, %v1305
        %v1312 = vsel %vm920, %v1299, %v1307
        %v1313 = vsel %vm920, %v1301, %v1309
        %v1314 = vsel %vm920, %v1287, %v1295
        %v1315 = vsel %vm920, %v1289, %v1297
        %v1316 = vsel %vm920, %v1291, %v1299
        %v1317 = vsel %vm920, %v1293, %v1301
        %v1318 = vsel %vm920, %v1279, %v1287
        %v1319 = vsel %vm920, %v1281, %v1289
        %v1320 = vsel %vm920, %v1283, %v1291
        %v1321 = vsel %vm920, %v1285, %v1293
        %v1322 = vsel %vm920, %v1303, %v1279
        %v1323 = vsel %vm920, %v1305, %v1281
        %v1324 = vsel %vm920, %v1307, %v1283
        %v1325 = vsel %vm920, %v1309, %v1285
        %v1326 = vmul.f32 %v1322, %v876
        %v1327 = vmul.f32 %v1318, %v877
        %v1328 = vmul.f32 %v1314, %v878
        %v1329 = vmul.f32 %v1310, %v879
        %v1330 = vmul.f32 %v1323, %v876
        %v1331 = vmul.f32 %v1319, %v877
        %v1332 = vmul.f32 %v1315, %v878
        %v1333 = vmul.f32 %v1311, %v879
        %v1334 = vmul.f32 %v1324, %v876
        %v1335 = vmul.f32 %v1320, %v877
        %v1336 = vmul.f32 %v1316, %v878
        %v1337 = vmul.f32 %v1312, %v879
        %v1338 = vmul.f32 %v1325, %v876
        %v1339 = vmul.f32 %v1321, %v877
        %v1340 = vmul.f32 %v1317, %v878
        %v1341 = vmul.f32 %v1313, %v879
        %v1342 = vld [vmem:[%s7] sm:$0xff]
        %v1343 = vld [vmem:[%s7 + $0x8] sm:$0xff]
        %v1344 = vld [vmem:[%s7 + $0x10] sm:$0xff]
        %v1345 = vld [vmem:[%s7 + $0x18] sm:$0xff]
        %vm1346 = vcmask 261120
        %v1348 = vsel %vm1346, %v1342, 0
        %v1351 = vsel %vm1346, %v1343, 0
        %v1354 = vsel %vm1346, %v1344, 0
        %v1357 = vsel %vm1346, %v1345, 0
        %1359 = vmatpush.msra.mxu0 0.0
        %1360 = vmatpush.msra.mxu0 0.0
        %1361 = vmatpush.msra.mxu0 0.0
        %1362 = vmatpush.msra.mxu0 0.0
        %1363 = vmatpush.msra.mxu0 0.0
        %1364 = vmatpush.msra.mxu0 0.0
        %1365 = vmatpush.msra.mxu0 0.0
        %1366 = vmatpush.msra.mxu0 0.0
        %1367 = vmatpush.msra.mxu0 0.0
        %1368 = vmatpush.msra.mxu0 0.0
        %1369 = vmatpush.msra.mxu0 0.0
        %1370 = vmatpush.msra.mxu0 0.0
        %1371 = vmatpush.msra.mxu0 %v1270
        %1372 = vmatpush.msra.mxu0 %v1266
        %1373 = vmatpush.msra.mxu0 %v1262
        %1374 = vmatpush.msra.mxu0 %v1258
        %1375 = vmatmul.f32.gmra.mxu0 %v1348
        %v1376 = vpop.f32.mrf.mxu0
        %v1377 = vadd.f32 0.0, %v1376
        %1378 = vmatmul.f32.gmra.mxu0 %v1351
        %v1379 = vpop.f32.mrf.mxu0
        %v1380 = vadd.f32 0.0, %v1379
        %1381 = vmatmul.f32.gmra.mxu0 %v1354
        %v1382 = vpop.f32.mrf.mxu0
        %v1383 = vadd.f32 0.0, %v1382
        %1384 = vmatmul.f32.gmra.mxu0 %v1357
        %v1385 = vpop.f32.mrf.mxu0
        %v1386 = vadd.f32 0.0, %v1385
        %1387 = vdwg.mxu0
        %1388 = vmatpush.msra.mxu0 0.0
        %1389 = vmatpush.msra.mxu0 0.0
        %1390 = vmatpush.msra.mxu0 0.0
        %1391 = vmatpush.msra.mxu0 0.0
        %1392 = vmatpush.msra.mxu0 0.0
        %1393 = vmatpush.msra.mxu0 0.0
        %1394 = vmatpush.msra.mxu0 0.0
        %1395 = vmatpush.msra.mxu0 0.0
        %1396 = vmatpush.msra.mxu0 0.0
        %1397 = vmatpush.msra.mxu0 0.0
        %1398 = vmatpush.msra.mxu0 0.0
        %1399 = vmatpush.msra.mxu0 0.0
        %1400 = vmatpush.msra.mxu0 %v1271
        %1401 = vmatpush.msra.mxu0 %v1267
        %1402 = vmatpush.msra.mxu0 %v1263
        %1403 = vmatpush.msra.mxu0 %v1259
        %1404 = vmatmul.f32.gmra.mxu0 %v1348
        %v1405 = vpop.f32.mrf.mxu0
        %v1406 = vadd.f32 0.0, %v1405
        %1407 = vmatmul.f32.gmra.mxu0 %v1351
        %v1408 = vpop.f32.mrf.mxu0
        %v1409 = vadd.f32 0.0, %v1408
        %1410 = vmatmul.f32.gmra.mxu0 %v1354
        %v1411 = vpop.f32.mrf.mxu0
        %v1412 = vadd.f32 0.0, %v1411
        %1413 = vmatmul.f32.gmra.mxu0 %v1357
        %v1414 = vpop.f32.mrf.mxu0
        %v1415 = vadd.f32 0.0, %v1414
        %1416 = vdwg.mxu0
        %1417 = vmatpush.msra.mxu0 0.0
        %1418 = vmatpush.msra.mxu0 0.0
        %1419 = vmatpush.msra.mxu0 0.0
        %1420 = vmatpush.msra.mxu0 0.0
        %1421 = vmatpush.msra.mxu0 0.0
        %1422 = vmatpush.msra.mxu0 0.0
        %1423 = vmatpush.msra.mxu0 0.0
        %1424 = vmatpush.msra.mxu0 0.0
        %1425 = vmatpush.msra.mxu0 0.0
        %1426 = vmatpush.msra.mxu0 0.0
        %1427 = vmatpush.msra.mxu0 0.0
        %1428 = vmatpush.msra.mxu0 0.0
        %1429 = vmatpush.msra.mxu0 %v1272
        %1430 = vmatpush.msra.mxu0 %v1268
        %1431 = vmatpush.msra.mxu0 %v1264
        %1432 = vmatpush.msra.mxu0 %v1260
        %1433 = vmatmul.f32.gmra.mxu0 %v1348
        %v1434 = vpop.f32.mrf.mxu0
        %v1435 = vadd.f32 0.0, %v1434
        %1436 = vmatmul.f32.gmra.mxu0 %v1351
        %v1437 = vpop.f32.mrf.mxu0
        %v1438 = vadd.f32 0.0, %v1437
        %1439 = vmatmul.f32.gmra.mxu0 %v1354
        %v1440 = vpop.f32.mrf.mxu0
        %v1441 = vadd.f32 0.0, %v1440
        %1442 = vmatmul.f32.gmra.mxu0 %v1357
        %v1443 = vpop.f32.mrf.mxu0
        %v1444 = vadd.f32 0.0, %v1443
        %1445 = vdwg.mxu0
        %1446 = vmatpush.msra.mxu0 0.0
        %1447 = vmatpush.msra.mxu0 0.0
        %1448 = vmatpush.msra.mxu0 0.0
        %1449 = vmatpush.msra.mxu0 0.0
        %1450 = vmatpush.msra.mxu0 0.0
        %1451 = vmatpush.msra.mxu0 0.0
        %1452 = vmatpush.msra.mxu0 0.0
        %1453 = vmatpush.msra.mxu0 0.0
        %1454 = vmatpush.msra.mxu0 0.0
        %1455 = vmatpush.msra.mxu0 0.0
        %1456 = vmatpush.msra.mxu0 0.0
        %1457 = vmatpush.msra.mxu0 0.0
        %1458 = vmatpush.msra.mxu0 %v1273
        %1459 = vmatpush.msra.mxu0 %v1269
        %1460 = vmatpush.msra.mxu0 %v1265
        %1461 = vmatpush.msra.mxu0 %v1261
        %1462 = vmatmul.f32.gmra.mxu0 %v1348
        %v1463 = vpop.f32.mrf.mxu0
        %v1464 = vadd.f32 0.0, %v1463
        %1465 = vmatmul.f32.gmra.mxu0 %v1351
        %v1466 = vpop.f32.mrf.mxu0
        %v1467 = vadd.f32 0.0, %v1466
        %1468 = vmatmul.f32.gmra.mxu0 %v1354
        %v1469 = vpop.f32.mrf.mxu0
        %v1470 = vadd.f32 0.0, %v1469
        %1471 = vmatmul.f32.gmra.mxu0 %v1357
        %v1472 = vpop.f32.mrf.mxu0
        %v1473 = vadd.f32 0.0, %v1472
        %1474 = vdwg.mxu0
        %v1476 = vsel %vm1346, %v1274, 0
        %v1479 = vsel %vm1346, %v1275, 0
        %v1482 = vsel %vm1346, %v1276, 0
        %v1485 = vsel %vm1346, %v1277, 0
        %1487 = vmatpush.msra.mxu0 0.0
        %1488 = vmatpush.msra.mxu0 0.0
        %1489 = vmatpush.msra.mxu0 0.0
        %1490 = vmatpush.msra.mxu0 0.0
        %1491 = vmatpush.msra.mxu0 0.0
        %1492 = vmatpush.msra.mxu0 0.0
        %1493 = vmatpush.msra.mxu0 0.0
        %1494 = vmatpush.msra.mxu0 0.0
        %1495 = vmatpush.msra.mxu0 0.0
        %1496 = vmatpush.msra.mxu0 0.0
        %1497 = vmatpush.msra.mxu0 0.0
        %1498 = vmatpush.msra.mxu0 0.0
        %1499 = vmatpush.msra.mxu0 %v1338
        %1500 = vmatpush.msra.mxu0 %v1334
        %1501 = vmatpush.msra.mxu0 %v1330
        %1502 = vmatpush.msra.mxu0 %v1326
        %1503 = vmatmul.f32.gmra.mxu0 %v1476
        %v1504 = vpop.f32.mrf.mxu0
        %v1505 = vadd.f32 %v1377, %v1504
        %1506 = vmatmul.f32.gmra.mxu0 %v1479
        %v1507 = vpop.f32.mrf.mxu0
        %v1508 = vadd.f32 %v1380, %v1507
        %1509 = vmatmul.f32.gmra.mxu0 %v1482
        %v1510 = vpop.f32.mrf.mxu0
        %v1511 = vadd.f32 %v1383, %v1510
        %1512 = vmatmul.f32.gmra.mxu0 %v1485
        %v1513 = vpop.f32.mrf.mxu0
        %v1514 = vadd.f32 %v1386, %v1513
        %1515 = vdwg.mxu0
        %1516 = vmatpush.msra.mxu0 0.0
        %1517 = vmatpush.msra.mxu0 0.0
        %1518 = vmatpush.msra.mxu0 0.0
        %1519 = vmatpush.msra.mxu0 0.0
        %1520 = vmatpush.msra.mxu0 0.0
        %1521 = vmatpush.msra.mxu0 0.0
        %1522 = vmatpush.msra.mxu0 0.0
        %1523 = vmatpush.msra.mxu0 0.0
        %1524 = vmatpush.msra.mxu0 0.0
        %1525 = vmatpush.msra.mxu0 0.0
        %1526 = vmatpush.msra.mxu0 0.0
        %1527 = vmatpush.msra.mxu0 0.0
        %1528 = vmatpush.msra.mxu0 %v1339
        %1529 = vmatpush.msra.mxu0 %v1335
        %1530 = vmatpush.msra.mxu0 %v1331
        %1531 = vmatpush.msra.mxu0 %v1327
        %1532 = vmatmul.f32.gmra.mxu0 %v1476
        %v1533 = vpop.f32.mrf.mxu0
        %v1534 = vadd.f32 %v1406, %v1533
        %1535 = vmatmul.f32.gmra.mxu0 %v1479
        %v1536 = vpop.f32.mrf.mxu0
        %v1537 = vadd.f32 %v1409, %v1536
        %1538 = vmatmul.f32.gmra.mxu0 %v1482
        %v1539 = vpop.f32.mrf.mxu0
        %v1540 = vadd.f32 %v1412, %v1539
        %1541 = vmatmul.f32.gmra.mxu0 %v1485
        %v1542 = vpop.f32.mrf.mxu0
        %v1543 = vadd.f32 %v1415, %v1542
        %1544 = vdwg.mxu0
        %1545 = vmatpush.msra.mxu0 0.0
        %1546 = vmatpush.msra.mxu0 0.0
        %1547 = vmatpush.msra.mxu0 0.0
        %1548 = vmatpush.msra.mxu0 0.0
        %1549 = vmatpush.msra.mxu0 0.0
        %1550 = vmatpush.msra.mxu0 0.0
        %1551 = vmatpush.msra.mxu0 0.0
        %1552 = vmatpush.msra.mxu0 0.0
        %1553 = vmatpush.msra.mxu0 0.0
        %1554 = vmatpush.msra.mxu0 0.0
        %1555 = vmatpush.msra.mxu0 0.0
        %1556 = vmatpush.msra.mxu0 0.0
        %1557 = vmatpush.msra.mxu0 %v1340
        %1558 = vmatpush.msra.mxu0 %v1336
        %1559 = vmatpush.msra.mxu0 %v1332
        %1560 = vmatpush.msra.mxu0 %v1328
        %1561 = vmatmul.f32.gmra.mxu0 %v1476
        %v1562 = vpop.f32.mrf.mxu0
        %v1563 = vadd.f32 %v1435, %v1562
        %1564 = vmatmul.f32.gmra.mxu0 %v1479
        %v1565 = vpop.f32.mrf.mxu0
        %v1566 = vadd.f32 %v1438, %v1565
        %1567 = vmatmul.f32.gmra.mxu0 %v1482
        %v1568 = vpop.f32.mrf.mxu0
        %v1569 = vadd.f32 %v1441, %v1568
        %1570 = vmatmul.f32.gmra.mxu0 %v1485
        %v1571 = vpop.f32.mrf.mxu0
        %v1572 = vadd.f32 %v1444, %v1571
        %1573 = vdwg.mxu0
        %1574 = vmatpush.msra.mxu0 0.0
        %1575 = vmatpush.msra.mxu0 0.0
        %1576 = vmatpush.msra.mxu0 0.0
        %1577 = vmatpush.msra.mxu0 0.0
        %1578 = vmatpush.msra.mxu0 0.0
        %1579 = vmatpush.msra.mxu0 0.0
        %1580 = vmatpush.msra.mxu0 0.0
        %1581 = vmatpush.msra.mxu0 0.0
        %1582 = vmatpush.msra.mxu0 0.0
        %1583 = vmatpush.msra.mxu0 0.0
        %1584 = vmatpush.msra.mxu0 0.0
        %1585 = vmatpush.msra.mxu0 0.0
        %1586 = vmatpush.msra.mxu0 %v1341
        %1587 = vmatpush.msra.mxu0 %v1337
        %1588 = vmatpush.msra.mxu0 %v1333
        %1589 = vmatpush.msra.mxu0 %v1329
        %1590 = vmatmul.f32.gmra.mxu0 %v1476
        %v1591 = vpop.f32.mrf.mxu0
        %v1592 = vadd.f32 %v1464, %v1591
        %1593 = vmatmul.f32.gmra.mxu0 %v1479
        %v1594 = vpop.f32.mrf.mxu0
        %v1595 = vadd.f32 %v1467, %v1594
        %1596 = vmatmul.f32.gmra.mxu0 %v1482
        %v1597 = vpop.f32.mrf.mxu0
        %v1598 = vadd.f32 %v1470, %v1597
        %1599 = vmatmul.f32.gmra.mxu0 %v1485
        %v1600 = vpop.f32.mrf.mxu0
        %v1601 = vadd.f32 %v1473, %v1600
        %1602 = vdwg.mxu0
        %v1603 = vld [vmem:[%s8] sm:$0xff]
        %v1604 = vld [vmem:[%s8 + $0x8] sm:$0xff]
        %v1605 = vld [vmem:[%s8 + $0x10] sm:$0xff]
        %v1606 = vld [vmem:[%s8 + $0x18] sm:$0xff]
        %1608 = vset.pattern.permute.xlu0 0
        %1609 = vperm.xlu0 %1608, %v1603
        %v1610 = vpop.permute.xlu0 %1609
        %1613 = vset.pattern.permute.xlu0 0
        %1614 = vperm.xlu0 %1613, %v1604
        %v1615 = vpop.permute.xlu0 %1614
        %1618 = vset.pattern.permute.xlu0 0
        %1619 = vperm.xlu0 %1618, %v1605
        %v1620 = vpop.permute.xlu0 %1619
        %1623 = vset.pattern.permute.xlu0 0
        %1624 = vperm.xlu0 %1623, %v1606
        %v1625 = vpop.permute.xlu0 %1624
        %v1627 = vadd.f32 %v1505, %v1610
        %v1628 = vadd.f32 %v1534, %v1610
        %v1629 = vadd.f32 %v1563, %v1610
        %v1630 = vadd.f32 %v1592, %v1610
        %v1631 = vadd.f32 %v1508, %v1615
        %v1632 = vadd.f32 %v1537, %v1615
        %v1633 = vadd.f32 %v1566, %v1615
        %v1634 = vadd.f32 %v1595, %v1615
        %v1635 = vadd.f32 %v1511, %v1620
        %v1636 = vadd.f32 %v1540, %v1620
        %v1637 = vadd.f32 %v1569, %v1620
        %v1638 = vadd.f32 %v1598, %v1620
        %v1639 = vadd.f32 %v1514, %v1625
        %v1640 = vadd.f32 %v1543, %v1625
        %v1641 = vadd.f32 %v1572, %v1625
        %v1642 = vadd.f32 %v1601, %v1625
        %v1643 = vmax.f32 %v1627, 0.0
        %v1644 = vmax.f32 %v1628, 0.0
        %v1645 = vmax.f32 %v1629, 0.0
        %v1646 = vmax.f32 %v1630, 0.0
        %v1647 = vmax.f32 %v1631, 0.0
        %v1648 = vmax.f32 %v1632, 0.0
        %v1649 = vmax.f32 %v1633, 0.0
        %v1650 = vmax.f32 %v1634, 0.0
        %v1651 = vmax.f32 %v1635, 0.0
        %v1652 = vmax.f32 %v1636, 0.0
        %v1653 = vmax.f32 %v1637, 0.0
        %v1654 = vmax.f32 %v1638, 0.0
        %v1655 = vmax.f32 %v1639, 0.0
        %v1656 = vmax.f32 %v1640, 0.0
        %v1657 = vmax.f32 %v1641, 0.0
        %v1658 = vmax.f32 %v1642, 0.0
        %v1659 = vld [vmem:[%s9] sm:$0xff]
        %v1660 = vld [vmem:[%s9 + $0x8] sm:$0xff]
        %v1661 = vld [vmem:[%s9 + $0x10] sm:$0xff]
        %v1662 = vld [vmem:[%s9 + $0x18] sm:$0xff]
        %v1663 = vld [vmem:[%s10] sm:$0xff]
        %v1664 = vld [vmem:[%s10 + $0x8] sm:$0xff]
        %v1665 = vld [vmem:[%s10 + $0x10] sm:$0xff]
        %v1666 = vld [vmem:[%s10 + $0x18] sm:$0xff]
        %1668 = vset.pattern.permute.xlu0 0
        %1669 = vperm.xlu0 %1668, %v1663
        %v1670 = vpop.permute.xlu0 %1669
        %1673 = vset.pattern.permute.xlu0 0
        %1674 = vperm.xlu0 %1673, %v1664
        %v1675 = vpop.permute.xlu0 %1674
        %1678 = vset.pattern.permute.xlu0 0
        %1679 = vperm.xlu0 %1678, %v1665
        %v1680 = vpop.permute.xlu0 %1679
        %1683 = vset.pattern.permute.xlu0 0
        %1684 = vperm.xlu0 %1683, %v1666
        %v1685 = vpop.permute.xlu0 %1684
        %1687 = vst [vmem:[#allocation1] ss:$2 sm:$0xff] %v892
        %s1688 = scalar_lea.vmem [#allocation1], 16
        %1689 = vst [vmem:[%s1688] ss:$2 sm:$0xff] %v893
        %v1690 = vld.sshfl [vmem:[#allocation1] sm:$0xff pattern:$0x75316420]
        %v1691 = vld.sshfl [vmem:[#allocation1 + $0x8] sm:$0xff pattern:$0x75316420]
        %v1692 = vld.sshfl [vmem:[#allocation1 + $0x10] sm:$0xff pattern:$0x75316420]
        %v1693 = vld.sshfl [vmem:[#allocation1 + $0x18] sm:$0xff pattern:$0x75316420]
        %v1695 = vsel %vm940, %v1659, 0
        %v1698 = vsel %vm940, %v1660, 0
        %v1701 = vsel %vm940, %v1661, 0
        %v1704 = vsel %vm940, %v1662, 0
        %v1706 = vsel %vm953, %v1690, 0
        %v1708 = vsel %vm953, %v1691, 0
        %v1710 = vsel %vm953, %v1692, 0
        %v1712 = vsel %vm953, %v1693, 0
        %1714 = vmatpush.msra.mxu0 0.0
        %1715 = vmatpush.msra.mxu0 0.0
        %1716 = vmatpush.msra.mxu0 0.0
        %1717 = vmatpush.msra.mxu0 0.0
        %1718 = vmatpush.msra.mxu0 0.0
        %1719 = vmatpush.msra.mxu0 0.0
        %1720 = vmatpush.msra.mxu0 0.0
        %1721 = vmatpush.msra.mxu0 0.0
        %1722 = vmatpush.msra.mxu0 0.0
        %1723 = vmatpush.msra.mxu0 0.0
        %1724 = vmatpush.msra.mxu0 0.0
        %1725 = vmatpush.msra.mxu0 0.0
        %1726 = vmatpush.msra.mxu0 0.0
        %1727 = vmatpush.msra.mxu0 0.0
        %1728 = vmatpush.msra.mxu0 0.0
        %1729 = vmatpush.msra.mxu0 %v1706
        %1730 = vmatmul.f32.gmra.mxu0 %v1695
        %v1731 = vpop.f32.mrf.mxu0
        %v1732 = vadd.f32 %v1670, %v1731
        %1733 = vmatmul.f32.gmra.mxu0 %v1698
        %v1734 = vpop.f32.mrf.mxu0
        %v1735 = vadd.f32 %v1675, %v1734
        %1736 = vmatmul.f32.gmra.mxu0 %v1701
        %v1737 = vpop.f32.mrf.mxu0
        %v1738 = vadd.f32 %v1680, %v1737
        %1739 = vmatmul.f32.gmra.mxu0 %v1704
        %v1740 = vpop.f32.mrf.mxu0
        %v1741 = vadd.f32 %v1685, %v1740
        %1742 = vdwg.mxu0
        %1743 = vmatpush.msra.mxu0 0.0
        %1744 = vmatpush.msra.mxu0 0.0
        %1745 = vmatpush.msra.mxu0 0.0
        %1746 = vmatpush.msra.mxu0 0.0
        %1747 = vmatpush.msra.mxu0 0.0
        %1748 = vmatpush.msra.mxu0 0.0
        %1749 = vmatpush.msra.mxu0 0.0
        %1750 = vmatpush.msra.mxu0 0.0
        %1751 = vmatpush.msra.mxu0 0.0
        %1752 = vmatpush.msra.mxu0 0.0
        %1753 = vmatpush.msra.mxu0 0.0
        %1754 = vmatpush.msra.mxu0 0.0
        %1755 = vmatpush.msra.mxu0 0.0
        %1756 = vmatpush.msra.mxu0 0.0
        %1757 = vmatpush.msra.mxu0 0.0
        %1758 = vmatpush.msra.mxu0 %v1708
        %1759 = vmatmul.f32.gmra.mxu0 %v1695
        %v1760 = vpop.f32.mrf.mxu0
        %v1761 = vadd.f32 %v1670, %v1760
        %1762 = vmatmul.f32.gmra.mxu0 %v1698
        %v1763 = vpop.f32.mrf.mxu0
        %v1764 = vadd.f32 %v1675, %v1763
        %1765 = vmatmul.f32.gmra.mxu0 %v1701
        %v1766 = vpop.f32.mrf.mxu0
        %v1767 = vadd.f32 %v1680, %v1766
        %1768 = vmatmul.f32.gmra.mxu0 %v1704
        %v1769 = vpop.f32.mrf.mxu0
        %v1770 = vadd.f32 %v1685, %v1769
        %1771 = vdwg.mxu0
        %1772 = vmatpush.msra.mxu0 0.0
        %1773 = vmatpush.msra.mxu0 0.0
        %1774 = vmatpush.msra.mxu0 0.0
        %1775 = vmatpush.msra.mxu0 0.0
        %1776 = vmatpush.msra.mxu0 0.0
        %1777 = vmatpush.msra.mxu0 0.0
        %1778 = vmatpush.msra.mxu0 0.0
        %1779 = vmatpush.msra.mxu0 0.0
        %1780 = vmatpush.msra.mxu0 0.0
        %1781 = vmatpush.msra.mxu0 0.0
        %1782 = vmatpush.msra.mxu0 0.0
        %1783 = vmatpush.msra.mxu0 0.0
        %1784 = vmatpush.msra.mxu0 0.0
        %1785 = vmatpush.msra.mxu0 0.0
        %1786 = vmatpush.msra.mxu0 0.0
        %1787 = vmatpush.msra.mxu0 %v1710
        %1788 = vmatmul.f32.gmra.mxu0 %v1695
        %v1789 = vpop.f32.mrf.mxu0
        %v1790 = vadd.f32 %v1670, %v1789
        %1791 = vmatmul.f32.gmra.mxu0 %v1698
        %v1792 = vpop.f32.mrf.mxu0
        %v1793 = vadd.f32 %v1675, %v1792
        %1794 = vmatmul.f32.gmra.mxu0 %v1701
        %v1795 = vpop.f32.mrf.mxu0
        %v1796 = vadd.f32 %v1680, %v1795
        %1797 = vmatmul.f32.gmra.mxu0 %v1704
        %v1798 = vpop.f32.mrf.mxu0
        %v1799 = vadd.f32 %v1685, %v1798
        %1800 = vdwg.mxu0
        %1801 = vmatpush.msra.mxu0 0.0
        %1802 = vmatpush.msra.mxu0 0.0
        %1803 = vmatpush.msra.mxu0 0.0
        %1804 = vmatpush.msra.mxu0 0.0
        %1805 = vmatpush.msra.mxu0 0.0
        %1806 = vmatpush.msra.mxu0 0.0
        %1807 = vmatpush.msra.mxu0 0.0
        %1808 = vmatpush.msra.mxu0 0.0
        %1809 = vmatpush.msra.mxu0 0.0
        %1810 = vmatpush.msra.mxu0 0.0
        %1811 = vmatpush.msra.mxu0 0.0
        %1812 = vmatpush.msra.mxu0 0.0
        %1813 = vmatpush.msra.mxu0 0.0
        %1814 = vmatpush.msra.mxu0 0.0
        %1815 = vmatpush.msra.mxu0 0.0
        %1816 = vmatpush.msra.mxu0 %v1712
        %1817 = vmatmul.f32.gmra.mxu0 %v1695
        %v1818 = vpop.f32.mrf.mxu0
        %v1819 = vadd.f32 %v1670, %v1818
        %1820 = vmatmul.f32.gmra.mxu0 %v1698
        %v1821 = vpop.f32.mrf.mxu0
        %v1822 = vadd.f32 %v1675, %v1821
        %1823 = vmatmul.f32.gmra.mxu0 %v1701
        %v1824 = vpop.f32.mrf.mxu0
        %v1825 = vadd.f32 %v1680, %v1824
        %1826 = vmatmul.f32.gmra.mxu0 %v1704
        %v1827 = vpop.f32.mrf.mxu0
        %v1828 = vadd.f32 %v1685, %v1827
        %1829 = vdwg.mxu0
        %v1830 = vadd.f32 %v1643, %v1732
        %v1831 = vadd.f32 %v1644, %v1761
        %v1832 = vadd.f32 %v1645, %v1790
        %v1833 = vadd.f32 %v1646, %v1819
        %v1834 = vadd.f32 %v1647, %v1735
        %v1835 = vadd.f32 %v1648, %v1764
        %v1836 = vadd.f32 %v1649, %v1793
        %v1837 = vadd.f32 %v1650, %v1822
        %v1838 = vadd.f32 %v1651, %v1738
        %v1839 = vadd.f32 %v1652, %v1767
        %v1840 = vadd.f32 %v1653, %v1796
        %v1841 = vadd.f32 %v1654, %v1825
        %v1842 = vadd.f32 %v1655, %v1741
        %v1843 = vadd.f32 %v1656, %v1770
        %v1844 = vadd.f32 %v1657, %v1799
        %v1845 = vadd.f32 %v1658, %v1828
        %v1846 = vmax.f32 %v1830, 0.0
        %v1847 = vmax.f32 %v1831, 0.0
        %v1848 = vmax.f32 %v1832, 0.0
        %v1849 = vmax.f32 %v1833, 0.0
        %v1850 = vmax.f32 %v1834, 0.0
        %v1851 = vmax.f32 %v1835, 0.0
        %v1852 = vmax.f32 %v1836, 0.0
        %v1853 = vmax.f32 %v1837, 0.0
        %v1854 = vmax.f32 %v1838, 0.0
        %v1855 = vmax.f32 %v1839, 0.0
        %v1856 = vmax.f32 %v1840, 0.0
        %v1857 = vmax.f32 %v1841, 0.0
        %v1858 = vmax.f32 %v1842, 0.0
        %v1859 = vmax.f32 %v1843, 0.0
        %v1860 = vmax.f32 %v1844, 0.0
        %v1861 = vmax.f32 %v1845, 0.0
        %v1862 = vld [vmem:[%s11] sm:$0xff]
        %v1863 = vld [vmem:[%s11 + $0x8] sm:$0xff]
        %v1864 = vld [vmem:[%s11 + $0x10] sm:$0xff]
        %v1865 = vld [vmem:[%s11 + $0x18] sm:$0xff]
        %1866 = vrot.lane.b32.xlu0 %v1846, 2
        %v1867 = vpop.permute.xlu0 %1866
        %1868 = vrot.lane.b32.xlu0 %v1850, 2
        %v1869 = vpop.permute.xlu0 %1868
        %1870 = vrot.lane.b32.xlu0 %v1854, 2
        %v1871 = vpop.permute.xlu0 %1870
        %1872 = vrot.lane.b32.xlu0 %v1858, 2
        %v1873 = vpop.permute.xlu0 %1872
        %1874 = vrot.lane.b32.xlu0 %v1847, 2
        %v1875 = vpop.permute.xlu0 %1874
        %1876 = vrot.lane.b32.xlu0 %v1851, 2
        %v1877 = vpop.permute.xlu0 %1876
        %1878 = vrot.lane.b32.xlu0 %v1855, 2
        %v1879 = vpop.permute.xlu0 %1878
        %1880 = vrot.lane.b32.xlu0 %v1859, 2
        %v1881 = vpop.permute.xlu0 %1880
        %1882 = vrot.lane.b32.xlu0 %v1848, 2
        %v1883 = vpop.permute.xlu0 %1882
        %1884 = vrot.lane.b32.xlu0 %v1852, 2
        %v1885 = vpop.permute.xlu0 %1884
        %1886 = vrot.lane.b32.xlu0 %v1856, 2
        %v1887 = vpop.permute.xlu0 %1886
        %1888 = vrot.lane.b32.xlu0 %v1860, 2
        %v1889 = vpop.permute.xlu0 %1888
        %1890 = vrot.lane.b32.xlu0 %v1849, 2
        %v1891 = vpop.permute.xlu0 %1890
        %1892 = vrot.lane.b32.xlu0 %v1853, 2
        %v1893 = vpop.permute.xlu0 %1892
        %1894 = vrot.lane.b32.xlu0 %v1857, 2
        %v1895 = vpop.permute.xlu0 %1894
        %1896 = vrot.lane.b32.xlu0 %v1861, 2
        %v1897 = vpop.permute.xlu0 %1896
        %vm1898 = vcmp.lt.s32.totalorder %v816, 2
        %v1899 = vsel %vm1898, %v1883, %v1891
        %v1900 = vsel %vm1898, %v1885, %v1893
        %v1901 = vsel %vm1898, %v1887, %v1895
        %v1902 = vsel %vm1898, %v1889, %v1897
        %v1903 = vsel %vm1898, %v1875, %v1883
        %v1904 = vsel %vm1898, %v1877, %v1885
        %v1905 = vsel %vm1898, %v1879, %v1887
        %v1906 = vsel %vm1898, %v1881, %v1889
        %v1907 = vsel %vm1898, %v1867, %v1875
        %v1908 = vsel %vm1898, %v1869, %v1877
        %v1909 = vsel %vm1898, %v1871, %v1879
        %v1910 = vsel %vm1898, %v1873, %v1881
        %v1911 = vsel %vm1898, %v1891, %v1867
        %v1912 = vsel %vm1898, %v1893, %v1869
        %v1913 = vsel %vm1898, %v1895, %v1871
        %v1914 = vsel %vm1898, %v1897, %v1873
        %v1915 = vmul.f32 %v1911, %v888
        %v1916 = vmul.f32 %v1907, %v889
        %v1917 = vmul.f32 %v1903, %v890
        %v1918 = vmul.f32 %v1899, %v891
        %v1919 = vmul.f32 %v1912, %v888
        %v1920 = vmul.f32 %v1908, %v889
        %v1921 = vmul.f32 %v1904, %v890
        %v1922 = vmul.f32 %v1900, %v891
        %v1923 = vmul.f32 %v1913, %v888
        %v1924 = vmul.f32 %v1909, %v889
        %v1925 = vmul.f32 %v1905, %v890
        %v1926 = vmul.f32 %v1901, %v891
        %v1927 = vmul.f32 %v1914, %v888
        %v1928 = vmul.f32 %v1910, %v889
        %v1929 = vmul.f32 %v1906, %v890
        %v1930 = vmul.f32 %v1902, %v891
        %v1931 = vld [vmem:[%s12] sm:$0xff]
        %v1932 = vld [vmem:[%s12 + $0x8] sm:$0xff]
        %v1933 = vld [vmem:[%s12 + $0x10] sm:$0xff]
        %v1934 = vld [vmem:[%s12 + $0x18] sm:$0xff]
        %v1936 = vsel %vm1346, %v1931, 0
        %v1939 = vsel %vm1346, %v1932, 0
        %v1942 = vsel %vm1346, %v1933, 0
        %v1945 = vsel %vm1346, %v1934, 0
        %1947 = vmatpush.msra.mxu0 0.0
        %1948 = vmatpush.msra.mxu0 0.0
        %1949 = vmatpush.msra.mxu0 0.0
        %1950 = vmatpush.msra.mxu0 0.0
        %1951 = vmatpush.msra.mxu0 0.0
        %1952 = vmatpush.msra.mxu0 0.0
        %1953 = vmatpush.msra.mxu0 0.0
        %1954 = vmatpush.msra.mxu0 0.0
        %1955 = vmatpush.msra.mxu0 0.0
        %1956 = vmatpush.msra.mxu0 0.0
        %1957 = vmatpush.msra.mxu0 0.0
        %1958 = vmatpush.msra.mxu0 0.0
        %1959 = vmatpush.msra.mxu0 %v1858
        %1960 = vmatpush.msra.mxu0 %v1854
        %1961 = vmatpush.msra.mxu0 %v1850
        %1962 = vmatpush.msra.mxu0 %v1846
        %1963 = vmatmul.f32.gmra.mxu0 %v1936
        %v1964 = vpop.f32.mrf.mxu0
        %v1965 = vadd.f32 0.0, %v1964
        %1966 = vmatmul.f32.gmra.mxu0 %v1939
        %v1967 = vpop.f32.mrf.mxu0
        %v1968 = vadd.f32 0.0, %v1967
        %1969 = vmatmul.f32.gmra.mxu0 %v1942
        %v1970 = vpop.f32.mrf.mxu0
        %v1971 = vadd.f32 0.0, %v1970
        %1972 = vmatmul.f32.gmra.mxu0 %v1945
        %v1973 = vpop.f32.mrf.mxu0
        %v1974 = vadd.f32 0.0, %v1973
        %1975 = vdwg.mxu0
        %1976 = vmatpush.msra.mxu0 0.0
        %1977 = vmatpush.msra.mxu0 0.0
        %1978 = vmatpush.msra.mxu0 0.0
        %1979 = vmatpush.msra.mxu0 0.0
        %1980 = vmatpush.msra.mxu0 0.0
        %1981 = vmatpush.msra.mxu0 0.0
        %1982 = vmatpush.msra.mxu0 0.0
        %1983 = vmatpush.msra.mxu0 0.0
        %1984 = vmatpush.msra.mxu0 0.0
        %1985 = vmatpush.msra.mxu0 0.0
        %1986 = vmatpush.msra.mxu0 0.0
        %1987 = vmatpush.msra.mxu0 0.0
        %1988 = vmatpush.msra.mxu0 %v1859
        %1989 = vmatpush.msra.mxu0 %v1855
        %1990 = vmatpush.msra.mxu0 %v1851
        %1991 = vmatpush.msra.mxu0 %v1847
        %1992 = vmatmul.f32.gmra.mxu0 %v1936
        %v1993 = vpop.f32.mrf.mxu0
        %v1994 = vadd.f32 0.0, %v1993
        %1995 = vmatmul.f32.gmra.mxu0 %v1939
        %v1996 = vpop.f32.mrf.mxu0
        %v1997 = vadd.f32 0.0, %v1996
        %1998 = vmatmul.f32.gmra.mxu0 %v1942
        %v1999 = vpop.f32.mrf.mxu0
        %v2000 = vadd.f32 0.0, %v1999
        %2001 = vmatmul.f32.gmra.mxu0 %v1945
        %v2002 = vpop.f32.mrf.mxu0
        %v2003 = vadd.f32 0.0, %v2002
        %2004 = vdwg.mxu0
        %2005 = vmatpush.msra.mxu0 0.0
        %2006 = vmatpush.msra.mxu0 0.0
        %2007 = vmatpush.msra.mxu0 0.0
        %2008 = vmatpush.msra.mxu0 0.0
        %2009 = vmatpush.msra.mxu0 0.0
        %2010 = vmatpush.msra.mxu0 0.0
        %2011 = vmatpush.msra.mxu0 0.0
        %2012 = vmatpush.msra.mxu0 0.0
        %2013 = vmatpush.msra.mxu0 0.0
        %2014 = vmatpush.msra.mxu0 0.0
        %2015 = vmatpush.msra.mxu0 0.0
        %2016 = vmatpush.msra.mxu0 0.0
        %2017 = vmatpush.msra.mxu0 %v1860
        %2018 = vmatpush.msra.mxu0 %v1856
        %2019 = vmatpush.msra.mxu0 %v1852
        %2020 = vmatpush.msra.mxu0 %v1848
        %2021 = vmatmul.f32.gmra.mxu0 %v1936
        %v2022 = vpop.f32.mrf.mxu0
        %v2023 = vadd.f32 0.0, %v2022
        %2024 = vmatmul.f32.gmra.mxu0 %v1939
        %v2025 = vpop.f32.mrf.mxu0
        %v2026 = vadd.f32 0.0, %v2025
        %2027 = vmatmul.f32.gmra.mxu0 %v1942
        %v2028 = vpop.f32.mrf.mxu0
        %v2029 = vadd.f32 0.0, %v2028
        %2030 = vmatmul.f32.gmra.mxu0 %v1945
        %v2031 = vpop.f32.mrf.mxu0
        %v2032 = vadd.f32 0.0, %v2031
        %2033 = vdwg.mxu0
        %2034 = vmatpush.msra.mxu0 0.0
        %2035 = vmatpush.msra.mxu0 0.0
        %2036 = vmatpush.msra.mxu0 0.0
        %2037 = vmatpush.msra.mxu0 0.0
        %2038 = vmatpush.msra.mxu0 0.0
        %2039 = vmatpush.msra.mxu0 0.0
        %2040 = vmatpush.msra.mxu0 0.0
        %2041 = vmatpush.msra.mxu0 0.0
        %2042 = vmatpush.msra.mxu0 0.0
        %2043 = vmatpush.msra.mxu0 0.0
        %2044 = vmatpush.msra.mxu0 0.0
        %2045 = vmatpush.msra.mxu0 0.0
        %2046 = vmatpush.msra.mxu0 %v1861
        %2047 = vmatpush.msra.mxu0 %v1857
        %2048 = vmatpush.msra.mxu0 %v1853
        %2049 = vmatpush.msra.mxu0 %v1849
        %2050 = vmatmul.f32.gmra.mxu0 %v1936
        %v2051 = vpop.f32.mrf.mxu0
        %v2052 = vadd.f32 0.0, %v2051
        %2053 = vmatmul.f32.gmra.mxu0 %v1939
        %v2054 = vpop.f32.mrf.mxu0
        %v2055 = vadd.f32 0.0, %v2054
        %2056 = vmatmul.f32.gmra.mxu0 %v1942
        %v2057 = vpop.f32.mrf.mxu0
        %v2058 = vadd.f32 0.0, %v2057
        %2059 = vmatmul.f32.gmra.mxu0 %v1945
        %v2060 = vpop.f32.mrf.mxu0
        %v2061 = vadd.f32 0.0, %v2060
        %2062 = vdwg.mxu0
        %v2064 = vsel %vm1346, %v1862, 0
        %v2067 = vsel %vm1346, %v1863, 0
        %v2070 = vsel %vm1346, %v1864, 0
        %v2073 = vsel %vm1346, %v1865, 0
        %2075 = vmatpush.msra.mxu0 0.0
        %2076 = vmatpush.msra.mxu0 0.0
        %2077 = vmatpush.msra.mxu0 0.0
        %2078 = vmatpush.msra.mxu0 0.0
        %2079 = vmatpush.msra.mxu0 0.0
        %2080 = vmatpush.msra.mxu0 0.0
        %2081 = vmatpush.msra.mxu0 0.0
        %2082 = vmatpush.msra.mxu0 0.0
        %2083 = vmatpush.msra.mxu0 0.0
        %2084 = vmatpush.msra.mxu0 0.0
        %2085 = vmatpush.msra.mxu0 0.0
        %2086 = vmatpush.msra.mxu0 0.0
        %2087 = vmatpush.msra.mxu0 %v1927
        %2088 = vmatpush.msra.mxu0 %v1923
        %2089 = vmatpush.msra.mxu0 %v1919
        %2090 = vmatpush.msra.mxu0 %v1915
        %2091 = vmatmul.f32.gmra.mxu0 %v2064
        %v2092 = vpop.f32.mrf.mxu0
        %v2093 = vadd.f32 %v1965, %v2092
        %2094 = vmatmul.f32.gmra.mxu0 %v2067
        %v2095 = vpop.f32.mrf.mxu0
        %v2096 = vadd.f32 %v1968, %v2095
        %2097 = vmatmul.f32.gmra.mxu0 %v2070
        %v2098 = vpop.f32.mrf.mxu0
        %v2099 = vadd.f32 %v1971, %v2098
        %2100 = vmatmul.f32.gmra.mxu0 %v2073
        %v2101 = vpop.f32.mrf.mxu0
        %v2102 = vadd.f32 %v1974, %v2101
        %2103 = vdwg.mxu0
        %2104 = vmatpush.msra.mxu0 0.0
        %2105 = vmatpush.msra.mxu0 0.0
        %2106 = vmatpush.msra.mxu0 0.0
        %2107 = vmatpush.msra.mxu0 0.0
        %2108 = vmatpush.msra.mxu0 0.0
        %2109 = vmatpush.msra.mxu0 0.0
        %2110 = vmatpush.msra.mxu0 0.0
        %2111 = vmatpush.msra.mxu0 0.0
        %2112 = vmatpush.msra.mxu0 0.0
        %2113 = vmatpush.msra.mxu0 0.0
        %2114 = vmatpush.msra.mxu0 0.0
        %2115 = vmatpush.msra.mxu0 0.0
        %2116 = vmatpush.msra.mxu0 %v1928
        %2117 = vmatpush.msra.mxu0 %v1924
        %2118 = vmatpush.msra.mxu0 %v1920
        %2119 = vmatpush.msra.mxu0 %v1916
        %2120 = vmatmul.f32.gmra.mxu0 %v2064
        %v2121 = vpop.f32.mrf.mxu0
        %v2122 = vadd.f32 %v1994, %v2121
        %2123 = vmatmul.f32.gmra.mxu0 %v2067
        %v2124 = vpop.f32.mrf.mxu0
        %v2125 = vadd.f32 %v1997, %v2124
        %2126 = vmatmul.f32.gmra.mxu0 %v2070
        %v2127 = vpop.f32.mrf.mxu0
        %v2128 = vadd.f32 %v2000, %v2127
        %2129 = vmatmul.f32.gmra.mxu0 %v2073
        %v2130 = vpop.f32.mrf.mxu0
        %v2131 = vadd.f32 %v2003, %v2130
        %2132 = vdwg.mxu0
        %2133 = vmatpush.msra.mxu0 0.0
        %2134 = vmatpush.msra.mxu0 0.0
        %2135 = vmatpush.msra.mxu0 0.0
        %2136 = vmatpush.msra.mxu0 0.0
        %2137 = vmatpush.msra.mxu0 0.0
        %2138 = vmatpush.msra.mxu0 0.0
        %2139 = vmatpush.msra.mxu0 0.0
        %2140 = vmatpush.msra.mxu0 0.0
        %2141 = vmatpush.msra.mxu0 0.0
        %2142 = vmatpush.msra.mxu0 0.0
        %2143 = vmatpush.msra.mxu0 0.0
        %2144 = vmatpush.msra.mxu0 0.0
        %2145 = vmatpush.msra.mxu0 %v1929
        %2146 = vmatpush.msra.mxu0 %v1925
        %2147 = vmatpush.msra.mxu0 %v1921
        %2148 = vmatpush.msra.mxu0 %v1917
        %2149 = vmatmul.f32.gmra.mxu0 %v2064
        %v2150 = vpop.f32.mrf.mxu0
        %v2151 = vadd.f32 %v2023, %v2150
        %2152 = vmatmul.f32.gmra.mxu0 %v2067
        %v2153 = vpop.f32.mrf.mxu0
        %v2154 = vadd.f32 %v2026, %v2153
        %2155 = vmatmul.f32.gmra.mxu0 %v2070
        %v2156 = vpop.f32.mrf.mxu0
        %v2157 = vadd.f32 %v2029, %v2156
        %2158 = vmatmul.f32.gmra.mxu0 %v2073
        %v2159 = vpop.f32.mrf.mxu0
        %v2160 = vadd.f32 %v2032, %v2159
        %2161 = vdwg.mxu0
        %2162 = vmatpush.msra.mxu0 0.0
        %2163 = vmatpush.msra.mxu0 0.0
        %2164 = vmatpush.msra.mxu0 0.0
        %2165 = vmatpush.msra.mxu0 0.0
        %2166 = vmatpush.msra.mxu0 0.0
        %2167 = vmatpush.msra.mxu0 0.0
        %2168 = vmatpush.msra.mxu0 0.0
        %2169 = vmatpush.msra.mxu0 0.0
        %2170 = vmatpush.msra.mxu0 0.0
        %2171 = vmatpush.msra.mxu0 0.0
        %2172 = vmatpush.msra.mxu0 0.0
        %2173 = vmatpush.msra.mxu0 0.0
        %2174 = vmatpush.msra.mxu0 %v1930
        %2175 = vmatpush.msra.mxu0 %v1926
        %2176 = vmatpush.msra.mxu0 %v1922
        %2177 = vmatpush.msra.mxu0 %v1918
        %2178 = vmatmul.f32.gmra.mxu0 %v2064
        %v2179 = vpop.f32.mrf.mxu0
        %v2180 = vadd.f32 %v2052, %v2179
        %2181 = vmatmul.f32.gmra.mxu0 %v2067
        %v2182 = vpop.f32.mrf.mxu0
        %v2183 = vadd.f32 %v2055, %v2182
        %2184 = vmatmul.f32.gmra.mxu0 %v2070
        %v2185 = vpop.f32.mrf.mxu0
        %v2186 = vadd.f32 %v2058, %v2185
        %2187 = vmatmul.f32.gmra.mxu0 %v2073
        %v2188 = vpop.f32.mrf.mxu0
        %v2189 = vadd.f32 %v2061, %v2188
        %2190 = vdwg.mxu0
        %v2191 = vld [vmem:[%s13] sm:$0xff]
        %v2192 = vld [vmem:[%s13 + $0x8] sm:$0xff]
        %v2193 = vld [vmem:[%s13 + $0x10] sm:$0xff]
        %v2194 = vld [vmem:[%s13 + $0x18] sm:$0xff]
        %2196 = vset.pattern.permute.xlu0 0
        %2197 = vperm.xlu0 %2196, %v2191
        %v2198 = vpop.permute.xlu0 %2197
        %2201 = vset.pattern.permute.xlu0 0
        %2202 = vperm.xlu0 %2201, %v2192
        %v2203 = vpop.permute.xlu0 %2202
        %2206 = vset.pattern.permute.xlu0 0
        %2207 = vperm.xlu0 %2206, %v2193
        %v2208 = vpop.permute.xlu0 %2207
        %2211 = vset.pattern.permute.xlu0 0
        %2212 = vperm.xlu0 %2211, %v2194
        %v2213 = vpop.permute.xlu0 %2212
        %v2215 = vadd.f32 %v2093, %v2198
        %v2216 = vadd.f32 %v2122, %v2198
        %v2217 = vadd.f32 %v2151, %v2198
        %v2218 = vadd.f32 %v2180, %v2198
        %v2219 = vadd.f32 %v2096, %v2203
        %v2220 = vadd.f32 %v2125, %v2203
        %v2221 = vadd.f32 %v2154, %v2203
        %v2222 = vadd.f32 %v2183, %v2203
        %v2223 = vadd.f32 %v2099, %v2208
        %v2224 = vadd.f32 %v2128, %v2208
        %v2225 = vadd.f32 %v2157, %v2208
        %v2226 = vadd.f32 %v2186, %v2208
        %v2227 = vadd.f32 %v2102, %v2213
        %v2228 = vadd.f32 %v2131, %v2213
        %v2229 = vadd.f32 %v2160, %v2213
        %v2230 = vadd.f32 %v2189, %v2213
        %v2231 = vmax.f32 %v2215, 0.0
        %v2232 = vmax.f32 %v2216, 0.0
        %v2233 = vmax.f32 %v2217, 0.0
        %v2234 = vmax.f32 %v2218, 0.0
        %v2235 = vmax.f32 %v2219, 0.0
        %v2236 = vmax.f32 %v2220, 0.0
        %v2237 = vmax.f32 %v2221, 0.0
        %v2238 = vmax.f32 %v2222, 0.0
        %v2239 = vmax.f32 %v2223, 0.0
        %v2240 = vmax.f32 %v2224, 0.0
        %v2241 = vmax.f32 %v2225, 0.0
        %v2242 = vmax.f32 %v2226, 0.0
        %v2243 = vmax.f32 %v2227, 0.0
        %v2244 = vmax.f32 %v2228, 0.0
        %v2245 = vmax.f32 %v2229, 0.0
        %v2246 = vmax.f32 %v2230, 0.0
        %v2247 = vld [vmem:[%s14] sm:$0xff]
        %v2248 = vld [vmem:[%s14 + $0x8] sm:$0xff]
        %v2249 = vld [vmem:[%s14 + $0x10] sm:$0xff]
        %v2250 = vld [vmem:[%s14 + $0x18] sm:$0xff]
        %2251 = vrot.lane.b32.xlu0 %v2231, 2
        %v2252 = vpop.permute.xlu0 %2251
        %2253 = vrot.lane.b32.xlu0 %v2235, 2
        %v2254 = vpop.permute.xlu0 %2253
        %2255 = vrot.lane.b32.xlu0 %v2239, 2
        %v2256 = vpop.permute.xlu0 %2255
        %2257 = vrot.lane.b32.xlu0 %v2243, 2
        %v2258 = vpop.permute.xlu0 %2257
        %2259 = vrot.lane.b32.xlu0 %v2232, 2
        %v2260 = vpop.permute.xlu0 %2259
        %2261 = vrot.lane.b32.xlu0 %v2236, 2
        %v2262 = vpop.permute.xlu0 %2261
        %2263 = vrot.lane.b32.xlu0 %v2240, 2
        %v2264 = vpop.permute.xlu0 %2263
        %2265 = vrot.lane.b32.xlu0 %v2244, 2
        %v2266 = vpop.permute.xlu0 %2265
        %2267 = vrot.lane.b32.xlu0 %v2233, 2
        %v2268 = vpop.permute.xlu0 %2267
        %2269 = vrot.lane.b32.xlu0 %v2237, 2
        %v2270 = vpop.permute.xlu0 %2269
        %2271 = vrot.lane.b32.xlu0 %v2241, 2
        %v2272 = vpop.permute.xlu0 %2271
        %2273 = vrot.lane.b32.xlu0 %v2245, 2
        %v2274 = vpop.permute.xlu0 %2273
        %2275 = vrot.lane.b32.xlu0 %v2234, 2
        %v2276 = vpop.permute.xlu0 %2275
        %2277 = vrot.lane.b32.xlu0 %v2238, 2
        %v2278 = vpop.permute.xlu0 %2277
        %2279 = vrot.lane.b32.xlu0 %v2242, 2
        %v2280 = vpop.permute.xlu0 %2279
        %2281 = vrot.lane.b32.xlu0 %v2246, 2
        %v2282 = vpop.permute.xlu0 %2281
        %v2283 = vsel %vm1898, %v2268, %v2276
        %v2284 = vsel %vm1898, %v2270, %v2278
        %v2285 = vsel %vm1898, %v2272, %v2280
        %v2286 = vsel %vm1898, %v2274, %v2282
        %v2287 = vsel %vm1898, %v2260, %v2268
        %v2288 = vsel %vm1898, %v2262, %v2270
        %v2289 = vsel %vm1898, %v2264, %v2272
        %v2290 = vsel %vm1898, %v2266, %v2274
        %v2291 = vsel %vm1898, %v2252, %v2260
        %v2292 = vsel %vm1898, %v2254, %v2262
        %v2293 = vsel %vm1898, %v2256, %v2264
        %v2294 = vsel %vm1898, %v2258, %v2266
        %v2295 = vsel %vm1898, %v2276, %v2252
        %v2296 = vsel %vm1898, %v2278, %v2254
        %v2297 = vsel %vm1898, %v2280, %v2256
        %v2298 = vsel %vm1898, %v2282, %v2258
        %v2299 = vmul.f32 %v2295, %v888
        %v2300 = vmul.f32 %v2291, %v889
        %v2301 = vmul.f32 %v2287, %v890
        %v2302 = vmul.f32 %v2283, %v891
        %v2303 = vmul.f32 %v2296, %v888
        %v2304 = vmul.f32 %v2292, %v889
        %v2305 = vmul.f32 %v2288, %v890
        %v2306 = vmul.f32 %v2284, %v891
        %v2307 = vmul.f32 %v2297, %v888
        %v2308 = vmul.f32 %v2293, %v889
        %v2309 = vmul.f32 %v2289, %v890
        %v2310 = vmul.f32 %v2285, %v891
        %v2311 = vmul.f32 %v2298, %v888
        %v2312 = vmul.f32 %v2294, %v889
        %v2313 = vmul.f32 %v2290, %v890
        %v2314 = vmul.f32 %v2286, %v891
        %v2315 = vld [vmem:[%s15] sm:$0xff]
        %v2316 = vld [vmem:[%s15 + $0x8] sm:$0xff]
        %v2317 = vld [vmem:[%s15 + $0x10] sm:$0xff]
        %v2318 = vld [vmem:[%s15 + $0x18] sm:$0xff]
        %v2320 = vsel %vm1346, %v2315, 0
        %v2323 = vsel %vm1346, %v2316, 0
        %v2326 = vsel %vm1346, %v2317, 0
        %v2329 = vsel %vm1346, %v2318, 0
        %2331 = vmatpush.msra.mxu0 0.0
        %2332 = vmatpush.msra.mxu0 0.0
        %2333 = vmatpush.msra.mxu0 0.0
        %2334 = vmatpush.msra.mxu0 0.0
        %2335 = vmatpush.msra.mxu0 0.0
        %2336 = vmatpush.msra.mxu0 0.0
        %2337 = vmatpush.msra.mxu0 0.0
        %2338 = vmatpush.msra.mxu0 0.0
        %2339 = vmatpush.msra.mxu0 0.0
        %2340 = vmatpush.msra.mxu0 0.0
        %2341 = vmatpush.msra.mxu0 0.0
        %2342 = vmatpush.msra.mxu0 0.0
        %2343 = vmatpush.msra.mxu0 %v2243
        %2344 = vmatpush.msra.mxu0 %v2239
        %2345 = vmatpush.msra.mxu0 %v2235
        %2346 = vmatpush.msra.mxu0 %v2231
        %2347 = vmatmul.f32.gmra.mxu0 %v2320
        %v2348 = vpop.f32.mrf.mxu0
        %v2349 = vadd.f32 0.0, %v2348
        %2350 = vmatmul.f32.gmra.mxu0 %v2323
        %v2351 = vpop.f32.mrf.mxu0
        %v2352 = vadd.f32 0.0, %v2351
        %2353 = vmatmul.f32.gmra.mxu0 %v2326
        %v2354 = vpop.f32.mrf.mxu0
        %v2355 = vadd.f32 0.0, %v2354
        %2356 = vmatmul.f32.gmra.mxu0 %v2329
        %v2357 = vpop.f32.mrf.mxu0
        %v2358 = vadd.f32 0.0, %v2357
        %2359 = vdwg.mxu0
        %2360 = vmatpush.msra.mxu0 0.0
        %2361 = vmatpush.msra.mxu0 0.0
        %2362 = vmatpush.msra.mxu0 0.0
        %2363 = vmatpush.msra.mxu0 0.0
        %2364 = vmatpush.msra.mxu0 0.0
        %2365 = vmatpush.msra.mxu0 0.0
        %2366 = vmatpush.msra.mxu0 0.0
        %2367 = vmatpush.msra.mxu0 0.0
        %2368 = vmatpush.msra.mxu0 0.0
        %2369 = vmatpush.msra.mxu0 0.0
        %2370 = vmatpush.msra.mxu0 0.0
        %2371 = vmatpush.msra.mxu0 0.0
        %2372 = vmatpush.msra.mxu0 %v2244
        %2373 = vmatpush.msra.mxu0 %v2240
        %2374 = vmatpush.msra.mxu0 %v2236
        %2375 = vmatpush.msra.mxu0 %v2232
        %2376 = vmatmul.f32.gmra.mxu0 %v2320
        %v2377 = vpop.f32.mrf.mxu0
        %v2378 = vadd.f32 0.0, %v2377
        %2379 = vmatmul.f32.gmra.mxu0 %v2323
        %v2380 = vpop.f32.mrf.mxu0
        %v2381 = vadd.f32 0.0, %v2380
        %2382 = vmatmul.f32.gmra.mxu0 %v2326
        %v2383 = vpop.f32.mrf.mxu0
        %v2384 = vadd.f32 0.0, %v2383
        %2385 = vmatmul.f32.gmra.mxu0 %v2329
        %v2386 = vpop.f32.mrf.mxu0
        %v2387 = vadd.f32 0.0, %v2386
        %2388 = vdwg.mxu0
        %2389 = vmatpush.msra.mxu0 0.0
        %2390 = vmatpush.msra.mxu0 0.0
        %2391 = vmatpush.msra.mxu0 0.0
        %2392 = vmatpush.msra.mxu0 0.0
        %2393 = vmatpush.msra.mxu0 0.0
        %2394 = vmatpush.msra.mxu0 0.0
        %2395 = vmatpush.msra.mxu0 0.0
        %2396 = vmatpush.msra.mxu0 0.0
        %2397 = vmatpush.msra.mxu0 0.0
        %2398 = vmatpush.msra.mxu0 0.0
        %2399 = vmatpush.msra.mxu0 0.0
        %2400 = vmatpush.msra.mxu0 0.0
        %2401 = vmatpush.msra.mxu0 %v2245
        %2402 = vmatpush.msra.mxu0 %v2241
        %2403 = vmatpush.msra.mxu0 %v2237
        %2404 = vmatpush.msra.mxu0 %v2233
        %2405 = vmatmul.f32.gmra.mxu0 %v2320
        %v2406 = vpop.f32.mrf.mxu0
        %v2407 = vadd.f32 0.0, %v2406
        %2408 = vmatmul.f32.gmra.mxu0 %v2323
        %v2409 = vpop.f32.mrf.mxu0
        %v2410 = vadd.f32 0.0, %v2409
        %2411 = vmatmul.f32.gmra.mxu0 %v2326
        %v2412 = vpop.f32.mrf.mxu0
        %v2413 = vadd.f32 0.0, %v2412
        %2414 = vmatmul.f32.gmra.mxu0 %v2329
        %v2415 = vpop.f32.mrf.mxu0
        %v2416 = vadd.f32 0.0, %v2415
        %2417 = vdwg.mxu0
        %2418 = vmatpush.msra.mxu0 0.0
        %2419 = vmatpush.msra.mxu0 0.0
        %2420 = vmatpush.msra.mxu0 0.0
        %2421 = vmatpush.msra.mxu0 0.0
        %2422 = vmatpush.msra.mxu0 0.0
        %2423 = vmatpush.msra.mxu0 0.0
        %2424 = vmatpush.msra.mxu0 0.0
        %2425 = vmatpush.msra.mxu0 0.0
        %2426 = vmatpush.msra.mxu0 0.0
        %2427 = vmatpush.msra.mxu0 0.0
        %2428 = vmatpush.msra.mxu0 0.0
        %2429 = vmatpush.msra.mxu0 0.0
        %2430 = vmatpush.msra.mxu0 %v2246
        %2431 = vmatpush.msra.mxu0 %v2242
        %2432 = vmatpush.msra.mxu0 %v2238
        %2433 = vmatpush.msra.mxu0 %v2234
        %2434 = vmatmul.f32.gmra.mxu0 %v2320
        %v2435 = vpop.f32.mrf.mxu0
        %v2436 = vadd.f32 0.0, %v2435
        %2437 = vmatmul.f32.gmra.mxu0 %v2323
        %v2438 = vpop.f32.mrf.mxu0
        %v2439 = vadd.f32 0.0, %v2438
        %2440 = vmatmul.f32.gmra.mxu0 %v2326
        %v2441 = vpop.f32.mrf.mxu0
        %v2442 = vadd.f32 0.0, %v2441
        %2443 = vmatmul.f32.gmra.mxu0 %v2329
        %v2444 = vpop.f32.mrf.mxu0
        %v2445 = vadd.f32 0.0, %v2444
        %2446 = vdwg.mxu0
        %v2448 = vsel %vm1346, %v2247, 0
        %v2451 = vsel %vm1346, %v2248, 0
        %v2454 = vsel %vm1346, %v2249, 0
        %v2457 = vsel %vm1346, %v2250, 0
        %2459 = vmatpush.msra.mxu0 0.0
        %2460 = vmatpush.msra.mxu0 0.0
        %2461 = vmatpush.msra.mxu0 0.0
        %2462 = vmatpush.msra.mxu0 0.0
        %2463 = vmatpush.msra.mxu0 0.0
        %2464 = vmatpush.msra.mxu0 0.0
        %2465 = vmatpush.msra.mxu0 0.0
        %2466 = vmatpush.msra.mxu0 0.0
        %2467 = vmatpush.msra.mxu0 0.0
        %2468 = vmatpush.msra.mxu0 0.0
        %2469 = vmatpush.msra.mxu0 0.0
        %2470 = vmatpush.msra.mxu0 0.0
        %2471 = vmatpush.msra.mxu0 %v2311
        %2472 = vmatpush.msra.mxu0 %v2307
        %2473 = vmatpush.msra.mxu0 %v2303
        %2474 = vmatpush.msra.mxu0 %v2299
        %2475 = vmatmul.f32.gmra.mxu0 %v2448
        %v2476 = vpop.f32.mrf.mxu0
        %v2477 = vadd.f32 %v2349, %v2476
        %2478 = vmatmul.f32.gmra.mxu0 %v2451
        %v2479 = vpop.f32.mrf.mxu0
        %v2480 = vadd.f32 %v2352, %v2479
        %2481 = vmatmul.f32.gmra.mxu0 %v2454
        %v2482 = vpop.f32.mrf.mxu0
        %v2483 = vadd.f32 %v2355, %v2482
        %2484 = vmatmul.f32.gmra.mxu0 %v2457
        %v2485 = vpop.f32.mrf.mxu0
        %v2486 = vadd.f32 %v2358, %v2485
        %2487 = vdwg.mxu0
        %2488 = vmatpush.msra.mxu0 0.0
        %2489 = vmatpush.msra.mxu0 0.0
        %2490 = vmatpush.msra.mxu0 0.0
        %2491 = vmatpush.msra.mxu0 0.0
        %2492 = vmatpush.msra.mxu0 0.0
        %2493 = vmatpush.msra.mxu0 0.0
        %2494 = vmatpush.msra.mxu0 0.0
        %2495 = vmatpush.msra.mxu0 0.0
        %2496 = vmatpush.msra.mxu0 0.0
        %2497 = vmatpush.msra.mxu0 0.0
        %2498 = vmatpush.msra.mxu0 0.0
        %2499 = vmatpush.msra.mxu0 0.0
        %2500 = vmatpush.msra.mxu0 %v2312
        %2501 = vmatpush.msra.mxu0 %v2308
        %2502 = vmatpush.msra.mxu0 %v2304
        %2503 = vmatpush.msra.mxu0 %v2300
        %2504 = vmatmul.f32.gmra.mxu0 %v2448
        %v2505 = vpop.f32.mrf.mxu0
        %v2506 = vadd.f32 %v2378, %v2505
        %2507 = vmatmul.f32.gmra.mxu0 %v2451
        %v2508 = vpop.f32.mrf.mxu0
        %v2509 = vadd.f32 %v2381, %v2508
        %2510 = vmatmul.f32.gmra.mxu0 %v2454
        %v2511 = vpop.f32.mrf.mxu0
        %v2512 = vadd.f32 %v2384, %v2511
        %2513 = vmatmul.f32.gmra.mxu0 %v2457
        %v2514 = vpop.f32.mrf.mxu0
        %v2515 = vadd.f32 %v2387, %v2514
        %2516 = vdwg.mxu0
        %2517 = vmatpush.msra.mxu0 0.0
        %2518 = vmatpush.msra.mxu0 0.0
        %2519 = vmatpush.msra.mxu0 0.0
        %2520 = vmatpush.msra.mxu0 0.0
        %2521 = vmatpush.msra.mxu0 0.0
        %2522 = vmatpush.msra.mxu0 0.0
        %2523 = vmatpush.msra.mxu0 0.0
        %2524 = vmatpush.msra.mxu0 0.0
        %2525 = vmatpush.msra.mxu0 0.0
        %2526 = vmatpush.msra.mxu0 0.0
        %2527 = vmatpush.msra.mxu0 0.0
        %2528 = vmatpush.msra.mxu0 0.0
        %2529 = vmatpush.msra.mxu0 %v2313
        %2530 = vmatpush.msra.mxu0 %v2309
        %2531 = vmatpush.msra.mxu0 %v2305
        %2532 = vmatpush.msra.mxu0 %v2301
        %2533 = vmatmul.f32.gmra.mxu0 %v2448
        %v2534 = vpop.f32.mrf.mxu0
        %v2535 = vadd.f32 %v2407, %v2534
        %2536 = vmatmul.f32.gmra.mxu0 %v2451
        %v2537 = vpop.f32.mrf.mxu0
        %v2538 = vadd.f32 %v2410, %v2537
        %2539 = vmatmul.f32.gmra.mxu0 %v2454
        %v2540 = vpop.f32.mrf.mxu0
        %v2541 = vadd.f32 %v2413, %v2540
        %2542 = vmatmul.f32.gmra.mxu0 %v2457
        %v2543 = vpop.f32.mrf.mxu0
        %v2544 = vadd.f32 %v2416, %v2543
        %2545 = vdwg.mxu0
        %2546 = vmatpush.msra.mxu0 0.0
        %2547 = vmatpush.msra.mxu0 0.0
        %2548 = vmatpush.msra.mxu0 0.0
        %2549 = vmatpush.msra.mxu0 0.0
        %2550 = vmatpush.msra.mxu0 0.0
        %2551 = vmatpush.msra.mxu0 0.0
        %2552 = vmatpush.msra.mxu0 0.0
        %2553 = vmatpush.msra.mxu0 0.0
        %2554 = vmatpush.msra.mxu0 0.0
        %2555 = vmatpush.msra.mxu0 0.0
        %2556 = vmatpush.msra.mxu0 0.0
        %2557 = vmatpush.msra.mxu0 0.0
        %2558 = vmatpush.msra.mxu0 %v2314
        %2559 = vmatpush.msra.mxu0 %v2310
        %2560 = vmatpush.msra.mxu0 %v2306
        %2561 = vmatpush.msra.mxu0 %v2302
        %2562 = vmatmul.f32.gmra.mxu0 %v2448
        %v2563 = vpop.f32.mrf.mxu0
        %v2564 = vadd.f32 %v2436, %v2563
        %2565 = vmatmul.f32.gmra.mxu0 %v2451
        %v2566 = vpop.f32.mrf.mxu0
        %v2567 = vadd.f32 %v2439, %v2566
        %2568 = vmatmul.f32.gmra.mxu0 %v2454
        %v2569 = vpop.f32.mrf.mxu0
        %v2570 = vadd.f32 %v2442, %v2569
        %2571 = vmatmul.f32.gmra.mxu0 %v2457
        %v2572 = vpop.f32.mrf.mxu0
        %v2573 = vadd.f32 %v2445, %v2572
        %2574 = vdwg.mxu0
        %v2575 = vld [vmem:[%s16] sm:$0xff]
        %v2576 = vld [vmem:[%s16 + $0x8] sm:$0xff]
        %v2577 = vld [vmem:[%s16 + $0x10] sm:$0xff]
        %v2578 = vld [vmem:[%s16 + $0x18] sm:$0xff]
        %2580 = vset.pattern.permute.xlu0 0
        %2581 = vperm.xlu0 %2580, %v2575
        %v2582 = vpop.permute.xlu0 %2581
        %2585 = vset.pattern.permute.xlu0 0
        %2586 = vperm.xlu0 %2585, %v2576
        %v2587 = vpop.permute.xlu0 %2586
        %2590 = vset.pattern.permute.xlu0 0
        %2591 = vperm.xlu0 %2590, %v2577
        %v2592 = vpop.permute.xlu0 %2591
        %2595 = vset.pattern.permute.xlu0 0
        %2596 = vperm.xlu0 %2595, %v2578
        %v2597 = vpop.permute.xlu0 %2596
        %v2599 = vadd.f32 %v2477, %v2582
        %v2600 = vadd.f32 %v2506, %v2582
        %v2601 = vadd.f32 %v2535, %v2582
        %v2602 = vadd.f32 %v2564, %v2582
        %v2603 = vadd.f32 %v2480, %v2587
        %v2604 = vadd.f32 %v2509, %v2587
        %v2605 = vadd.f32 %v2538, %v2587
        %v2606 = vadd.f32 %v2567, %v2587
        %v2607 = vadd.f32 %v2483, %v2592
        %v2608 = vadd.f32 %v2512, %v2592
        %v2609 = vadd.f32 %v2541, %v2592
        %v2610 = vadd.f32 %v2570, %v2592
        %v2611 = vadd.f32 %v2486, %v2597
        %v2612 = vadd.f32 %v2515, %v2597
        %v2613 = vadd.f32 %v2544, %v2597
        %v2614 = vadd.f32 %v2573, %v2597
        %v2615 = vmax.f32 %v2599, 0.0
        %v2616 = vmax.f32 %v2600, 0.0
        %v2617 = vmax.f32 %v2601, 0.0
        %v2618 = vmax.f32 %v2602, 0.0
        %v2619 = vmax.f32 %v2603, 0.0
        %v2620 = vmax.f32 %v2604, 0.0
        %v2621 = vmax.f32 %v2605, 0.0
        %v2622 = vmax.f32 %v2606, 0.0
        %v2623 = vmax.f32 %v2607, 0.0
        %v2624 = vmax.f32 %v2608, 0.0
        %v2625 = vmax.f32 %v2609, 0.0
        %v2626 = vmax.f32 %v2610, 0.0
        %v2627 = vmax.f32 %v2611, 0.0
        %v2628 = vmax.f32 %v2612, 0.0
        %v2629 = vmax.f32 %v2613, 0.0
        %v2630 = vmax.f32 %v2614, 0.0
        %v2631 = vadd.f32 %v2615, %v1846
        %v2632 = vadd.f32 %v2616, %v1847
        %v2633 = vadd.f32 %v2617, %v1848
        %v2634 = vadd.f32 %v2618, %v1849
        %v2635 = vadd.f32 %v2619, %v1850
        %v2636 = vadd.f32 %v2620, %v1851
        %v2637 = vadd.f32 %v2621, %v1852
        %v2638 = vadd.f32 %v2622, %v1853
        %v2639 = vadd.f32 %v2623, %v1854
        %v2640 = vadd.f32 %v2624, %v1855
        %v2641 = vadd.f32 %v2625, %v1856
        %v2642 = vadd.f32 %v2626, %v1857
        %v2643 = vadd.f32 %v2627, %v1858
        %v2644 = vadd.f32 %v2628, %v1859
        %v2645 = vadd.f32 %v2629, %v1860
        %v2646 = vadd.f32 %v2630, %v1861
        %v2647 = vmax.f32 %v2631, 0.0
        %v2648 = vmax.f32 %v2632, 0.0
        %v2649 = vmax.f32 %v2633, 0.0
        %v2650 = vmax.f32 %v2634, 0.0
        %v2651 = vmax.f32 %v2635, 0.0
        %v2652 = vmax.f32 %v2636, 0.0
        %v2653 = vmax.f32 %v2637, 0.0
        %v2654 = vmax.f32 %v2638, 0.0
        %v2655 = vmax.f32 %v2639, 0.0
        %v2656 = vmax.f32 %v2640, 0.0
        %v2657 = vmax.f32 %v2641, 0.0
        %v2658 = vmax.f32 %v2642, 0.0
        %v2659 = vmax.f32 %v2643, 0.0
        %v2660 = vmax.f32 %v2644, 0.0
        %v2661 = vmax.f32 %v2645, 0.0
        %v2662 = vmax.f32 %v2646, 0.0
        %v2663 = vld [vmem:[%s17] sm:$0xff]
        %v2664 = vld [vmem:[%s17 + $0x8] sm:$0xff]
        %v2665 = vld [vmem:[%s17 + $0x10] sm:$0xff]
        %v2666 = vld [vmem:[%s17 + $0x18] sm:$0xff]
        %v2667 = vld [vmem:[%s17 + $0x20] sm:$0xf]
        %v2668 = vld [vmem:[%s18] sm:$0xff]
        %v2669 = vld [vmem:[%s18 + $0x8] sm:$0xff]
        %v2670 = vld [vmem:[%s18 + $0x10] sm:$0xff]
        %v2671 = vld [vmem:[%s18 + $0x18] sm:$0xff]
        %v2672 = vld [vmem:[%s18 + $0x20] sm:$0xf]
        %2674 = vset.pattern.permute.xlu0 0
        %2675 = vperm.xlu0 %2674, %v2668
        %v2676 = vpop.permute.xlu0 %2675
        %2679 = vset.pattern.permute.xlu0 0
        %2680 = vperm.xlu0 %2679, %v2669
        %v2681 = vpop.permute.xlu0 %2680
        %2684 = vset.pattern.permute.xlu0 0
        %2685 = vperm.xlu0 %2684, %v2670
        %v2686 = vpop.permute.xlu0 %2685
        %2689 = vset.pattern.permute.xlu0 0
        %2690 = vperm.xlu0 %2689, %v2671
        %v2691 = vpop.permute.xlu0 %2690
        %2694 = vset.pattern.permute.xlu0 0
        %2695 = vperm.xlu0 %2694, %v2672
        %v2696 = vpop.permute.xlu0 %2695
        %v2699 = vperm.slane %v894, 0
        %v2700 = vperm.slane %v894, 1
        %v2701 = vperm.slane %v894, 2
        %v2702 = vperm.slane %v894, 3
        %v2707 = vmul.f32 %v2676, %v2699
        %v2708 = vmul.f32 %v2676, %v2700
        %v2709 = vmul.f32 %v2676, %v2701
        %v2710 = vmul.f32 %v2676, %v2702
        %v2711 = vmul.f32 %v2681, %v2699
        %v2712 = vmul.f32 %v2681, %v2700
        %v2713 = vmul.f32 %v2681, %v2701
        %v2714 = vmul.f32 %v2681, %v2702
        %v2715 = vmul.f32 %v2686, %v2699
        %v2716 = vmul.f32 %v2686, %v2700
        %v2717 = vmul.f32 %v2686, %v2701
        %v2718 = vmul.f32 %v2686, %v2702
        %v2719 = vmul.f32 %v2691, %v2699
        %v2720 = vmul.f32 %v2691, %v2700
        %v2721 = vmul.f32 %v2691, %v2701
        %v2722 = vmul.f32 %v2691, %v2702
        %v2723 = vmul.f32 %v2696, %v2699
        %v2724 = vmul.f32 %v2696, %v2700
        %v2725 = vmul.f32 %v2696, %v2701
        %v2726 = vmul.f32 %v2696, %v2702
        %v2728 = vsel %vm1346, %v2663, 0
        %v2731 = vsel %vm1346, %v2664, 0
        %v2734 = vsel %vm1346, %v2665, 0
        %v2737 = vsel %vm1346, %v2666, 0
        %v2740 = vsel %vm1346, %v2667, 0
        %2742 = vmatpush.msra.mxu0 0.0
        %2743 = vmatpush.msra.mxu0 0.0
        %2744 = vmatpush.msra.mxu0 0.0
        %2745 = vmatpush.msra.mxu0 0.0
        %2746 = vmatpush.msra.mxu0 0.0
        %2747 = vmatpush.msra.mxu0 0.0
        %2748 = vmatpush.msra.mxu0 0.0
        %2749 = vmatpush.msra.mxu0 0.0
        %2750 = vmatpush.msra.mxu0 0.0
        %2751 = vmatpush.msra.mxu0 0.0
        %2752 = vmatpush.msra.mxu0 0.0
        %2753 = vmatpush.msra.mxu0 0.0
        %2754 = vmatpush.msra.mxu0 %v2659
        %2755 = vmatpush.msra.mxu0 %v2655
        %2756 = vmatpush.msra.mxu0 %v2651
        %2757 = vmatpush.msra.mxu0 %v2647
        %2758 = vmatmul.f32.gmra.mxu0 %v2728
        %v2759 = vpop.f32.mrf.mxu0
        %v2760 = vadd.f32 %v2707, %v2759
        %2761 = vmatmul.f32.gmra.mxu0 %v2731
        %v2762 = vpop.f32.mrf.mxu0
        %v2763 = vadd.f32 %v2711, %v2762
        %2764 = vmatmul.f32.gmra.mxu0 %v2734
        %v2765 = vpop.f32.mrf.mxu0
        %v2766 = vadd.f32 %v2715, %v2765
        %2767 = vmatmul.f32.gmra.mxu0 %v2737
        %v2768 = vpop.f32.mrf.mxu0
        %v2769 = vadd.f32 %v2719, %v2768
        %2770 = vmatmul.f32.gmra.mxu0 %v2740
        %v2771 = vpop.f32.mrf.mxu0
        %v2772 = vadd.f32 %v2723, %v2771
        %2773 = vdwg.mxu0
        %2774 = vmatpush.msra.mxu0 0.0
        %2775 = vmatpush.msra.mxu0 0.0
        %2776 = vmatpush.msra.mxu0 0.0
        %2777 = vmatpush.msra.mxu0 0.0
        %2778 = vmatpush.msra.mxu0 0.0
        %2779 = vmatpush.msra.mxu0 0.0
        %2780 = vmatpush.msra.mxu0 0.0
        %2781 = vmatpush.msra.mxu0 0.0
        %2782 = vmatpush.msra.mxu0 0.0
        %2783 = vmatpush.msra.mxu0 0.0
        %2784 = vmatpush.msra.mxu0 0.0
        %2785 = vmatpush.msra.mxu0 0.0
        %2786 = vmatpush.msra.mxu0 %v2660
        %2787 = vmatpush.msra.mxu0 %v2656
        %2788 = vmatpush.msra.mxu0 %v2652
        %2789 = vmatpush.msra.mxu0 %v2648
        %2790 = vmatmul.f32.gmra.mxu0 %v2728
        %v2791 = vpop.f32.mrf.mxu0
        %v2792 = vadd.f32 %v2708, %v2791
        %2793 = vmatmul.f32.gmra.mxu0 %v2731
        %v2794 = vpop.f32.mrf.mxu0
        %v2795 = vadd.f32 %v2712, %v2794
        %2796 = vmatmul.f32.gmra.mxu0 %v2734
        %v2797 = vpop.f32.mrf.mxu0
        %v2798 = vadd.f32 %v2716, %v2797
        %2799 = vmatmul.f32.gmra.mxu0 %v2737
        %v2800 = vpop.f32.mrf.mxu0
        %v2801 = vadd.f32 %v2720, %v2800
        %2802 = vmatmul.f32.gmra.mxu0 %v2740
        %v2803 = vpop.f32.mrf.mxu0
        %v2804 = vadd.f32 %v2724, %v2803
        %2805 = vdwg.mxu0
        %2806 = vmatpush.msra.mxu0 0.0
        %2807 = vmatpush.msra.mxu0 0.0
        %2808 = vmatpush.msra.mxu0 0.0
        %2809 = vmatpush.msra.mxu0 0.0
        %2810 = vmatpush.msra.mxu0 0.0
        %2811 = vmatpush.msra.mxu0 0.0
        %2812 = vmatpush.msra.mxu0 0.0
        %2813 = vmatpush.msra.mxu0 0.0
        %2814 = vmatpush.msra.mxu0 0.0
        %2815 = vmatpush.msra.mxu0 0.0
        %2816 = vmatpush.msra.mxu0 0.0
        %2817 = vmatpush.msra.mxu0 0.0
        %2818 = vmatpush.msra.mxu0 %v2661
        %2819 = vmatpush.msra.mxu0 %v2657
        %2820 = vmatpush.msra.mxu0 %v2653
        %2821 = vmatpush.msra.mxu0 %v2649
        %2822 = vmatmul.f32.gmra.mxu0 %v2728
        %v2823 = vpop.f32.mrf.mxu0
        %v2824 = vadd.f32 %v2709, %v2823
        %2825 = vmatmul.f32.gmra.mxu0 %v2731
        %v2826 = vpop.f32.mrf.mxu0
        %v2827 = vadd.f32 %v2713, %v2826
        %2828 = vmatmul.f32.gmra.mxu0 %v2734
        %v2829 = vpop.f32.mrf.mxu0
        %v2830 = vadd.f32 %v2717, %v2829
        %2831 = vmatmul.f32.gmra.mxu0 %v2737
        %v2832 = vpop.f32.mrf.mxu0
        %v2833 = vadd.f32 %v2721, %v2832
        %2834 = vmatmul.f32.gmra.mxu0 %v2740
        %v2835 = vpop.f32.mrf.mxu0
        %v2836 = vadd.f32 %v2725, %v2835
        %2837 = vdwg.mxu0
        %2838 = vmatpush.msra.mxu0 0.0
        %2839 = vmatpush.msra.mxu0 0.0
        %2840 = vmatpush.msra.mxu0 0.0
        %2841 = vmatpush.msra.mxu0 0.0
        %2842 = vmatpush.msra.mxu0 0.0
        %2843 = vmatpush.msra.mxu0 0.0
        %2844 = vmatpush.msra.mxu0 0.0
        %2845 = vmatpush.msra.mxu0 0.0
        %2846 = vmatpush.msra.mxu0 0.0
        %2847 = vmatpush.msra.mxu0 0.0
        %2848 = vmatpush.msra.mxu0 0.0
        %2849 = vmatpush.msra.mxu0 0.0
        %2850 = vmatpush.msra.mxu0 %v2662
        %2851 = vmatpush.msra.mxu0 %v2658
        %2852 = vmatpush.msra.mxu0 %v2654
        %2853 = vmatpush.msra.mxu0 %v2650
        %2854 = vmatmul.f32.gmra.mxu0 %v2728
        %v2855 = vpop.f32.mrf.mxu0
        %v2856 = vadd.f32 %v2710, %v2855
        %2857 = vmatmul.f32.gmra.mxu0 %v2731
        %v2858 = vpop.f32.mrf.mxu0
        %v2859 = vadd.f32 %v2714, %v2858
        %2860 = vmatmul.f32.gmra.mxu0 %v2734
        %v2861 = vpop.f32.mrf.mxu0
        %v2862 = vadd.f32 %v2718, %v2861
        %2863 = vmatmul.f32.gmra.mxu0 %v2737
        %v2864 = vpop.f32.mrf.mxu0
        %v2865 = vadd.f32 %v2722, %v2864
        %2866 = vmatmul.f32.gmra.mxu0 %v2740
        %v2867 = vpop.f32.mrf.mxu0
        %v2868 = vadd.f32 %v2726, %v2867
        %2869 = vdwg.mxu0
        %v2870 = vld [vmem:[%s19] sm:$0xff]
        %v2871 = vld [vmem:[%s19 + $0x8] sm:$0xff]
        %v2872 = vld [vmem:[%s19 + $0x10] sm:$0xff]
        %v2873 = vld [vmem:[%s19 + $0x18] sm:$0xff]
        %v2874 = vld [vmem:[%s19 + $0x20] sm:$0xf]
        %2876 = vset.pattern.permute.xlu0 0
        %2877 = vperm.xlu0 %2876, %v2870
        %v2878 = vpop.permute.xlu0 %2877
        %2881 = vset.pattern.permute.xlu0 0
        %2882 = vperm.xlu0 %2881, %v2871
        %v2883 = vpop.permute.xlu0 %2882
        %2886 = vset.pattern.permute.xlu0 0
        %2887 = vperm.xlu0 %2886, %v2872
        %v2888 = vpop.permute.xlu0 %2887
        %2891 = vset.pattern.permute.xlu0 0
        %2892 = vperm.xlu0 %2891, %v2873
        %v2893 = vpop.permute.xlu0 %2892
        %2896 = vset.pattern.permute.xlu0 0
        %2897 = vperm.xlu0 %2896, %v2874
        %v2898 = vpop.permute.xlu0 %2897
        %v2900 = vadd.f32 %v2760, %v2878
        %v2901 = vadd.f32 %v2792, %v2878
        %v2902 = vadd.f32 %v2824, %v2878
        %v2903 = vadd.f32 %v2856, %v2878
        %v2904 = vadd.f32 %v2763, %v2883
        %v2905 = vadd.f32 %v2795, %v2883
        %v2906 = vadd.f32 %v2827, %v2883
        %v2907 = vadd.f32 %v2859, %v2883
        %v2908 = vadd.f32 %v2766, %v2888
        %v2909 = vadd.f32 %v2798, %v2888
        %v2910 = vadd.f32 %v2830, %v2888
        %v2911 = vadd.f32 %v2862, %v2888
        %v2912 = vadd.f32 %v2769, %v2893
        %v2913 = vadd.f32 %v2801, %v2893
        %v2914 = vadd.f32 %v2833, %v2893
        %v2915 = vadd.f32 %v2865, %v2893
        %v2916 = vadd.f32 %v2772, %v2898
        %v2917 = vadd.f32 %v2804, %v2898
        %v2918 = vadd.f32 %v2836, %v2898
        %v2919 = vadd.f32 %v2868, %v2898
        %v2920 = vmax.f32 %v2900, 0.0
        %v2921 = vmax.f32 %v2901, 0.0
        %v2922 = vmax.f32 %v2902, 0.0
        %v2923 = vmax.f32 %v2903, 0.0
        %v2924 = vmax.f32 %v2904, 0.0
        %v2925 = vmax.f32 %v2905, 0.0
        %v2926 = vmax.f32 %v2906, 0.0
        %v2927 = vmax.f32 %v2907, 0.0
        %v2928 = vmax.f32 %v2908, 0.0
        %v2929 = vmax.f32 %v2909, 0.0
        %v2930 = vmax.f32 %v2910, 0.0
        %v2931 = vmax.f32 %v2911, 0.0
        %v2932 = vmax.f32 %v2912, 0.0
        %v2933 = vmax.f32 %v2913, 0.0
        %v2934 = vmax.f32 %v2914, 0.0
        %v2935 = vmax.f32 %v2915, 0.0
        %v2936 = vmax.f32 %v2916, 0.0
        %v2937 = vmax.f32 %v2917, 0.0
        %v2938 = vmax.f32 %v2918, 0.0
        %v2939 = vmax.f32 %v2919, 0.0
        %v2940 = vld [vmem:[%s20] sm:$0xff]
        %v2941 = vld [vmem:[%s20 + $0x8] sm:$0xff]
        %v2942 = vld [vmem:[%s20 + $0x10] sm:$0xff]
        %v2943 = vld [vmem:[%s20 + $0x18] sm:$0xff]
        %v2944 = vld [vmem:[%s20 + $0x20] sm:$0xf]
        %v2945 = vld [vmem:[%s21] sm:$0xff]
        %v2946 = vld [vmem:[%s21 + $0x8] sm:$0xff]
        %v2947 = vld [vmem:[%s21 + $0x10] sm:$0xff]
        %v2948 = vld [vmem:[%s21 + $0x18] sm:$0xff]
        %v2949 = vld [vmem:[%s21 + $0x20] sm:$0xf]
        %2951 = vset.pattern.permute.xlu0 0
        %2952 = vperm.xlu0 %2951, %v2945
        %v2953 = vpop.permute.xlu0 %2952
        %2956 = vset.pattern.permute.xlu0 0
        %2957 = vperm.xlu0 %2956, %v2946
        %v2958 = vpop.permute.xlu0 %2957
        %2961 = vset.pattern.permute.xlu0 0
        %2962 = vperm.xlu0 %2961, %v2947
        %v2963 = vpop.permute.xlu0 %2962
        %2966 = vset.pattern.permute.xlu0 0
        %2967 = vperm.xlu0 %2966, %v2948
        %v2968 = vpop.permute.xlu0 %2967
        %2971 = vset.pattern.permute.xlu0 0
        %2972 = vperm.xlu0 %2971, %v2949
        %v2973 = vpop.permute.xlu0 %2972
        %vm2975 = vcmask 293888
        %v2977 = vsel %vm2975, %v2940, 0
        %v2980 = vsel %vm2975, %v2941, 0
        %v2983 = vsel %vm2975, %v2942, 0
        %v2986 = vsel %vm2975, %v2943, 0
        %v2989 = vsel %vm2975, %v2944, 0
        %v2992 = vsel %vm953, %v2936, 0
        %v2995 = vsel %vm953, %v2937, 0
        %v2998 = vsel %vm953, %v2938, 0
        %v3001 = vsel %vm953, %v2939, 0
        %3003 = vmatpush.msra.mxu0 0.0
        %3004 = vmatpush.msra.mxu0 0.0
        %3005 = vmatpush.msra.mxu0 0.0
        %3006 = vmatpush.msra.mxu0 0.0
        %3007 = vmatpush.msra.mxu0 0.0
        %3008 = vmatpush.msra.mxu0 0.0
        %3009 = vmatpush.msra.mxu0 0.0
        %3010 = vmatpush.msra.mxu0 0.0
        %3011 = vmatpush.msra.mxu0 0.0
        %3012 = vmatpush.msra.mxu0 0.0
        %3013 = vmatpush.msra.mxu0 0.0
        %3014 = vmatpush.msra.mxu0 %v2992
        %3015 = vmatpush.msra.mxu0 %v2932
        %3016 = vmatpush.msra.mxu0 %v2928
        %3017 = vmatpush.msra.mxu0 %v2924
        %3018 = vmatpush.msra.mxu0 %v2920
        %3019 = vmatmul.f32.gmra.mxu0 %v2977
        %v3020 = vpop.f32.mrf.mxu0
        %v3021 = vadd.f32 %v2953, %v3020
        %3022 = vmatmul.f32.gmra.mxu0 %v2980
        %v3023 = vpop.f32.mrf.mxu0
        %v3024 = vadd.f32 %v2958, %v3023
        %3025 = vmatmul.f32.gmra.mxu0 %v2983
        %v3026 = vpop.f32.mrf.mxu0
        %v3027 = vadd.f32 %v2963, %v3026
        %3028 = vmatmul.f32.gmra.mxu0 %v2986
        %v3029 = vpop.f32.mrf.mxu0
        %v3030 = vadd.f32 %v2968, %v3029
        %3031 = vmatmul.f32.gmra.mxu0 %v2989
        %v3032 = vpop.f32.mrf.mxu0
        %v3033 = vadd.f32 %v2973, %v3032
        %3034 = vdwg.mxu0
        %3035 = vmatpush.msra.mxu0 0.0
        %3036 = vmatpush.msra.mxu0 0.0
        %3037 = vmatpush.msra.mxu0 0.0
        %3038 = vmatpush.msra.mxu0 0.0
        %3039 = vmatpush.msra.mxu0 0.0
        %3040 = vmatpush.msra.mxu0 0.0
        %3041 = vmatpush.msra.mxu0 0.0
        %3042 = vmatpush.msra.mxu0 0.0
        %3043 = vmatpush.msra.mxu0 0.0
        %3044 = vmatpush.msra.mxu0 0.0
        %3045 = vmatpush.msra.mxu0 0.0
        %3046 = vmatpush.msra.mxu0 %v2995
        %3047 = vmatpush.msra.mxu0 %v2933
        %3048 = vmatpush.msra.mxu0 %v2929
        %3049 = vmatpush.msra.mxu0 %v2925
        %3050 = vmatpush.msra.mxu0 %v2921
        %3051 = vmatmul.f32.gmra.mxu0 %v2977
        %v3052 = vpop.f32.mrf.mxu0
        %v3053 = vadd.f32 %v2953, %v3052
        %3054 = vmatmul.f32.gmra.mxu0 %v2980
        %v3055 = vpop.f32.mrf.mxu0
        %v3056 = vadd.f32 %v2958, %v3055
        %3057 = vmatmul.f32.gmra.mxu0 %v2983
        %v3058 = vpop.f32.mrf.mxu0
        %v3059 = vadd.f32 %v2963, %v3058
        %3060 = vmatmul.f32.gmra.mxu0 %v2986
        %v3061 = vpop.f32.mrf.mxu0
        %v3062 = vadd.f32 %v2968, %v3061
        %3063 = vmatmul.f32.gmra.mxu0 %v2989
        %v3064 = vpop.f32.mrf.mxu0
        %v3065 = vadd.f32 %v2973, %v3064
        %3066 = vdwg.mxu0
        %3067 = vmatpush.msra.mxu0 0.0
        %3068 = vmatpush.msra.mxu0 0.0
        %3069 = vmatpush.msra.mxu0 0.0
        %3070 = vmatpush.msra.mxu0 0.0
        %3071 = vmatpush.msra.mxu0 0.0
        %3072 = vmatpush.msra.mxu0 0.0
        %3073 = vmatpush.msra.mxu0 0.0
        %3074 = vmatpush.msra.mxu0 0.0
        %3075 = vmatpush.msra.mxu0 0.0
        %3076 = vmatpush.msra.mxu0 0.0
        %3077 = vmatpush.msra.mxu0 0.0
        %3078 = vmatpush.msra.mxu0 %v2998
        %3079 = vmatpush.msra.mxu0 %v2934
        %3080 = vmatpush.msra.mxu0 %v2930
        %3081 = vmatpush.msra.mxu0 %v2926
        %3082 = vmatpush.msra.mxu0 %v2922
        %3083 = vmatmul.f32.gmra.mxu0 %v2977
        %v3084 = vpop.f32.mrf.mxu0
        %v3085 = vadd.f32 %v2953, %v3084
        %3086 = vmatmul.f32.gmra.mxu0 %v2980
        %v3087 = vpop.f32.mrf.mxu0
        %v3088 = vadd.f32 %v2958, %v3087
        %3089 = vmatmul.f32.gmra.mxu0 %v2983
        %v3090 = vpop.f32.mrf.mxu0
        %v3091 = vadd.f32 %v2963, %v3090
        %3092 = vmatmul.f32.gmra.mxu0 %v2986
        %v3093 = vpop.f32.mrf.mxu0
        %v3094 = vadd.f32 %v2968, %v3093
        %3095 = vmatmul.f32.gmra.mxu0 %v2989
        %v3096 = vpop.f32.mrf.mxu0
        %v3097 = vadd.f32 %v2973, %v3096
        %3098 = vdwg.mxu0
        %3099 = vmatpush.msra.mxu0 0.0
        %3100 = vmatpush.msra.mxu0 0.0
        %3101 = vmatpush.msra.mxu0 0.0
        %3102 = vmatpush.msra.mxu0 0.0
        %3103 = vmatpush.msra.mxu0 0.0
        %3104 = vmatpush.msra.mxu0 0.0
        %3105 = vmatpush.msra.mxu0 0.0
        %3106 = vmatpush.msra.mxu0 0.0
        %3107 = vmatpush.msra.mxu0 0.0
        %3108 = vmatpush.msra.mxu0 0.0
        %3109 = vmatpush.msra.mxu0 0.0
        %3110 = vmatpush.msra.mxu0 %v3001
        %3111 = vmatpush.msra.mxu0 %v2935
        %3112 = vmatpush.msra.mxu0 %v2931
        %3113 = vmatpush.msra.mxu0 %v2927
        %3114 = vmatpush.msra.mxu0 %v2923
        %3115 = vmatmul.f32.gmra.mxu0 %v2977
        %v3116 = vpop.f32.mrf.mxu0
        %v3117 = vadd.f32 %v2953, %v3116
        %3118 = vmatmul.f32.gmra.mxu0 %v2980
        %v3119 = vpop.f32.mrf.mxu0
        %v3120 = vadd.f32 %v2958, %v3119
        %3121 = vmatmul.f32.gmra.mxu0 %v2983
        %v3122 = vpop.f32.mrf.mxu0
        %v3123 = vadd.f32 %v2963, %v3122
        %3124 = vmatmul.f32.gmra.mxu0 %v2986
        %v3125 = vpop.f32.mrf.mxu0
        %v3126 = vadd.f32 %v2968, %v3125
        %3127 = vmatmul.f32.gmra.mxu0 %v2989
        %v3128 = vpop.f32.mrf.mxu0
        %v3129 = vadd.f32 %v2973, %v3128
        %3130 = vdwg.mxu0
        %v3131 = vmax.f32 %v3021, 0.0
        %v3132 = vmax.f32 %v3053, 0.0
        %v3133 = vmax.f32 %v3085, 0.0
        %v3134 = vmax.f32 %v3117, 0.0
        %v3135 = vmax.f32 %v3024, 0.0
        %v3136 = vmax.f32 %v3056, 0.0
        %v3137 = vmax.f32 %v3088, 0.0
        %v3138 = vmax.f32 %v3120, 0.0
        %v3139 = vmax.f32 %v3027, 0.0
        %v3140 = vmax.f32 %v3059, 0.0
        %v3141 = vmax.f32 %v3091, 0.0
        %v3142 = vmax.f32 %v3123, 0.0
        %v3143 = vmax.f32 %v3030, 0.0
        %v3144 = vmax.f32 %v3062, 0.0
        %v3145 = vmax.f32 %v3094, 0.0
        %v3146 = vmax.f32 %v3126, 0.0
        %v3147 = vmax.f32 %v3033, 0.0
        %v3148 = vmax.f32 %v3065, 0.0
        %v3149 = vmax.f32 %v3097, 0.0
        %v3150 = vmax.f32 %v3129, 0.0
        %v3151 = vld [vmem:[%s22] sm:$0x1]
        %v3152 = vld [vmem:[#allocation2] sm:$0x1]
        %3154 = vset.pattern.permute.xlu0 0
        %3155 = vperm.xlu0 %3154, %v3152
        %v3156 = vpop.permute.xlu0 %3155
        %v3158 = vperm.slane %v3156, 0
        %v3160 = vsel %vm2975, %v3151, 0
        %v3163 = vsel %vm953, %v3147, 0
        %v3166 = vsel %vm953, %v3148, 0
        %v3169 = vsel %vm953, %v3149, 0
        %v3172 = vsel %vm953, %v3150, 0
        %3174 = vmatpush.msra.mxu0 0.0
        %3175 = vmatpush.msra.mxu0 0.0
        %3176 = vmatpush.msra.mxu0 0.0
        %3177 = vmatpush.msra.mxu0 0.0
        %3178 = vmatpush.msra.mxu0 0.0
        %3179 = vmatpush.msra.mxu0 0.0
        %3180 = vmatpush.msra.mxu0 0.0
        %3181 = vmatpush.msra.mxu0 0.0
        %3182 = vmatpush.msra.mxu0 0.0
        %3183 = vmatpush.msra.mxu0 0.0
        %3184 = vmatpush.msra.mxu0 0.0
        %3185 = vmatpush.msra.mxu0 %v3163
        %3186 = vmatpush.msra.mxu0 %v3143
        %3187 = vmatpush.msra.mxu0 %v3139
        %3188 = vmatpush.msra.mxu0 %v3135
        %3189 = vmatpush.msra.mxu0 %v3131
        %3190 = vmatmul.f32.gmra.mxu0 %v3160
        %v3191 = vpop.f32.mrf.mxu0
        %v3192 = vadd.f32 %v3158, %v3191
        %3193 = vdwg.mxu0
        %3194 = vmatpush.msra.mxu0 0.0
        %3195 = vmatpush.msra.mxu0 0.0
        %3196 = vmatpush.msra.mxu0 0.0
        %3197 = vmatpush.msra.mxu0 0.0
        %3198 = vmatpush.msra.mxu0 0.0
        %3199 = vmatpush.msra.mxu0 0.0
        %3200 = vmatpush.msra.mxu0 0.0
        %3201 = vmatpush.msra.mxu0 0.0
        %3202 = vmatpush.msra.mxu0 0.0
        %3203 = vmatpush.msra.mxu0 0.0
        %3204 = vmatpush.msra.mxu0 0.0
        %3205 = vmatpush.msra.mxu0 %v3166
        %3206 = vmatpush.msra.mxu0 %v3144
        %3207 = vmatpush.msra.mxu0 %v3140
        %3208 = vmatpush.msra.mxu0 %v3136
        %3209 = vmatpush.msra.mxu0 %v3132
        %3210 = vmatmul.f32.gmra.mxu0 %v3160
        %v3211 = vpop.f32.mrf.mxu0
        %v3212 = vadd.f32 %v3158, %v3211
        %3213 = vdwg.mxu0
        %3214 = vmatpush.msra.mxu0 0.0
        %3215 = vmatpush.msra.mxu0 0.0
        %3216 = vmatpush.msra.mxu0 0.0
        %3217 = vmatpush.msra.mxu0 0.0
        %3218 = vmatpush.msra.mxu0 0.0
        %3219 = vmatpush.msra.mxu0 0.0
        %3220 = vmatpush.msra.mxu0 0.0
        %3221 = vmatpush.msra.mxu0 0.0
        %3222 = vmatpush.msra.mxu0 0.0
        %3223 = vmatpush.msra.mxu0 0.0
        %3224 = vmatpush.msra.mxu0 0.0
        %3225 = vmatpush.msra.mxu0 %v3169
        %3226 = vmatpush.msra.mxu0 %v3145
        %3227 = vmatpush.msra.mxu0 %v3141
        %3228 = vmatpush.msra.mxu0 %v3137
        %3229 = vmatpush.msra.mxu0 %v3133
        %3230 = vmatmul.f32.gmra.mxu0 %v3160
        %v3231 = vpop.f32.mrf.mxu0
        %v3232 = vadd.f32 %v3158, %v3231
        %3233 = vdwg.mxu0
        %3234 = vmatpush.msra.mxu0 0.0
        %3235 = vmatpush.msra.mxu0 0.0
        %3236 = vmatpush.msra.mxu0 0.0
        %3237 = vmatpush.msra.mxu0 0.0
        %3238 = vmatpush.msra.mxu0 0.0
        %3239 = vmatpush.msra.mxu0 0.0
        %3240 = vmatpush.msra.mxu0 0.0
        %3241 = vmatpush.msra.mxu0 0.0
        %3242 = vmatpush.msra.mxu0 0.0
        %3243 = vmatpush.msra.mxu0 0.0
        %3244 = vmatpush.msra.mxu0 0.0
        %3245 = vmatpush.msra.mxu0 %v3172
        %3246 = vmatpush.msra.mxu0 %v3146
        %3247 = vmatpush.msra.mxu0 %v3142
        %3248 = vmatpush.msra.mxu0 %v3138
        %3249 = vmatpush.msra.mxu0 %v3134
        %3250 = vmatmul.f32.gmra.mxu0 %v3160
        %v3251 = vpop.f32.mrf.mxu0
        %v3252 = vadd.f32 %v3158, %v3251
        %3253 = vdwg.mxu0
        %v3254 = vadd.f32 %v3192, %v2699
        %v3255 = vadd.f32 %v3212, %v2700
        %v3256 = vadd.f32 %v3232, %v2701
        %v3257 = vadd.f32 %v3252, %v2702
        %v3262 = vrot.slane %v3255, 7
        %v3263 = vrot.slane %v3256, 6
        %v3264 = vrot.slane %v3257, 5
        %vm3265 = vcmask 1040384
        %v3266 = vsel %vm3265, %v3254, %v3262
        %vm3267 = vcmask 1042434
        %v3268 = vsel %vm3267, %v3263, %v3264
        %vm3269 = vcmask 1041408
        %v3270 = vsel %vm3269, %v3266, %v3268
        %v3272 = vlaneseq
        %vm3273 = vcmp.ge.s32.totalorder %v3272, 0
        %vm3274 = vcmp.lt.s32.totalorder %v3272, 512
        %vm3275 = vmand %vm3273, %vm3274
        %3276 = vst.msk [vmem:[%s789] sm:$0xf] %vm3275, %v3270
        %v3277 = vld [vmem:[%s809] sm:$0xf]
        %v3279 = vperm.slane %v3277, 0
        %v3280 = vperm.slane %v3277, 1
        %v3281 = vperm.slane %v3277, 2
        %v3282 = vperm.slane %v3277, 3
        %v3287 = vsub.f32 %v3254, %v3279
        %v3288 = vsub.f32 %v3255, %v3280
        %v3289 = vsub.f32 %v3256, %v3281
        %v3290 = vsub.f32 %v3257, %v3282
        %v3291 = vmul.f32 %v3287, %v3287
        %v3292 = vmul.f32 %v3288, %v3288
        %v3293 = vmul.f32 %v3289, %v3289
        %v3294 = vmul.f32 %v3290, %v3290
        %v3295 = vsel %vm3265, %v3291, 0.0
        %v3296 = vsel %vm3265, %v3292, 0.0
        %v3297 = vadd.f32 %v3295, %v3296
        %v3298 = vsel %vm3265, %v3293, 0.0
        %v3299 = vadd.f32 %v3297, %v3298
        %v3300 = vsel %vm3265, %v3294, 0.0
        %v3301 = vadd.f32 %v3299, %v3300
        %3302 = vadd.xlane.f32.xlu0 %v3301
        %v3303 = vpop.xlane.xlu0 %3302
        %vm3304 = vcmask 0
        %3305 = vst.msk [vmem:[%s814] sm:$0x1] %vm3304, %v3303
        %s3306 = sand.u32 %s569, 1
        %s3307 = scalar_lea.sflag [#allocation4], %s3306
        %s3308 = sand.u32 %s569, 1
        %s3309 = smul.addr %s3308, 4
        %s3310 = scalar_lea.vmem [#allocation3], %s3309
        %p3311 = scmp.lt.s32.totalorder %s42, 1
        %s3312 = scalar_select %p3311, %s42, 1
        %s3313 = scalar_lea.vmem %s25, %s3312
        // Predicated region
        $region117: #{tpu_custom_call.1} parent=115 // pred_check
          %p3314 = pneg %p579
        $region118: #{tpu_custom_call.1} parent=115 // pred_check_branch
          %3316 = sbr.rel (%p3314) target = $region120
        $region119: #{tpu_custom_call.1} parent=115 // pred_region
          %s3317 = smul.u32 4, %s42
          %3319 = vsyncadd %s3307, 0
          %s3320 = scalar_lea.hbm %s24, %s3317
          %s3322 = sshll.u32 %s3310, 4
          %s3323 = int_to_ptr.vmem [resolvable:$true] %s3322
          %s3324 = sshll.u32 %s3320, 4
          %s3325 = int_to_ptr.hbm [resolvable:$true] %s3324
          %3327 = dma.vmem_to_hbm [thread:$0]  %s3323, 64, %s3325, %s3307
        $region120: #{tpu_custom_call.1} parent=115 // pred_fallthru
          _
        // Predicated region
        $region121: #{tpu_custom_call.1} parent=115 // pred_check
          %p3328 = pneg %p605
        $region122: #{tpu_custom_call.1} parent=115 // pred_check_branch
          %3330 = sbr.rel (%p3328) target = $region124
        $region123: #{tpu_custom_call.1} parent=115 // pred_region
          _
        $region124: #{tpu_custom_call.1} parent=115 // pred_fallthru
          _
      $region116: #{tpu_custom_call.1} parent=5 // pred_fallthru
        _
      %p3331 = scmp.le.s32.totalorder 2, %s37
      // Predicated region
      $region125: #{tpu_custom_call.1} parent=5 // pred_check
        %p3332 = pneg %p3331
      $region126: #{tpu_custom_call.1} parent=5 // pred_check_branch
        %3334 = sbr.rel (%p3332) target = $region128
      $region127: #{tpu_custom_call.1} parent=5 // pred_region
        %s3335 = ssub.s32 %s37, 2
        // Predicated region
        $region129: #{tpu_custom_call.1} parent=127 // pred_check
          %p3336 = pneg %p585
        $region130: #{tpu_custom_call.1} parent=127 // pred_check_branch
          %3338 = sbr.rel (%p3336) target = $region132
        $region131: #{tpu_custom_call.1} parent=127 // pred_region
          %s3339 = sand.u32 %s570, 1
          %s3340 = scalar_lea.sflag [#allocation4], %s3339
          %s3341 = sand.u32 %s570, 1
          %s3342 = smul.addr %s3341, 4
          %s3343 = scalar_lea.vmem [#allocation3], %s3342
          %3345 = dma.done %s3340, 64
        $region132: #{tpu_custom_call.1} parent=127 // pred_fallthru
          _
        // Predicated region
        $region133: #{tpu_custom_call.1} parent=127 // pred_check
          %p3346 = pneg %p611
        $region134: #{tpu_custom_call.1} parent=127 // pred_check_branch
          %3348 = sbr.rel (%p3346) target = $region136
        $region135: #{tpu_custom_call.1} parent=127 // pred_region
          %p3349 = scmp.lt.s32.totalorder %s43, 1
          %s3350 = scalar_select %p3349, %s43, 1
          %s3351 = scalar_lea.vmem %s25, %s3350
        $region136: #{tpu_custom_call.1} parent=127 // pred_fallthru
          _
      $region128: #{tpu_custom_call.1} parent=5 // pred_fallthru
        _
    $region6: #{tpu_custom_call.1} parent=1 // loop_footer
      %s41 = sadd.s32 1, %s37
    $region7: #{tpu_custom_call.1} parent=1 // loop_footer_branch
      %36 = sbr.rel target = $region3
    $region8: #{tpu_custom_call.1} parent=1 // loop_exit
      _
    %3352 = vsyncpa [#allocation4], 1
    %s3353 = scalar_lea.sflag [#allocation4], 1
    %3354 = vsyncpa %s3353, 1

</llo_original>
